<compile_context>
chip_gen: v5e
topology: v5e:2x2
jax: 0.10.0
libtpu: 0.0.40
codegen_flags: <defaults>
</compile_context>

<pallas_src>
import functools

import jax
import jax.numpy as jnp
from jax.experimental import pallas as pl
from jax.experimental.pallas import tpu as pltpu


def _round_up(v, m):
    return ((v + m - 1) // m) * m


def _actor_kernel(x_ref, w_in_ref, b_in_ref, w1_ref, b1_ref, w2_ref, b2_ref,
                  w_out_ref, b_out_ref, o_ref, *, a0, a1p):
    """One grid step processes TB samples; samples live in the lane dim."""
    tb = x_ref.shape[1]

    # Conv1d(kernel_size=1): (H0*L, C*L) @ (C*L, TB) -> (H0*L, TB); rows=(h,l).
    h1t = jnp.dot(w_in_ref[...], x_ref[...], preferred_element_type=jnp.float32)
    h1t = jnp.maximum(h1t + b_in_ref[...], 0.0)

    # fc1 as one block-diagonal matmul: (H0*H0, H0*L) @ (H0*L, TB); rows=(h,j).
    h2t = jnp.dot(w1_ref[...], h1t, preferred_element_type=jnp.float32)
    h2t = jnp.maximum(h2t + b1_ref[...], 0.0)

    # fc2 as one block-diagonal matmul: (H0*H1, H0*H0) @ (H0*H0, TB); rows=(h,k)
    # = h*H1 + k, which is exactly the PyTorch .view(N, -1) flatten order.
    h3t = jnp.dot(w2_ref[...], h2t, preferred_element_type=jnp.float32)
    h3t = jnp.maximum(h3t + b2_ref[...], 0.0)

    # Output layer: (A0*A1P, H0*H1) @ (H0*H1, TB) + bias.  Padded rows have
    # weight 0 and bias -1e30, so they vanish in the softmax below.
    logits = jnp.dot(w_out_ref[...], h3t,
                     preferred_element_type=jnp.float32) + b_out_ref[...]

    # Softmax over each action group of A1P=8 sublane-aligned rows:
    # (A0*A1P, TB) -> (A0, A1P, TB), reduce over axis=1, single full store.
    lg = logits.reshape(a0, a1p, tb)
    m = jnp.max(lg, axis=1, keepdims=True)
    e = jnp.exp(lg - m)                       # padded rows -> exp(-1e30-m) == 0
    s = jnp.sum(e, axis=1, keepdims=True)
    p = e * pl.reciprocal(s, approx=False)    # exact normalization
    o_ref[...] = p.reshape(a0 * a1p, tb).astype(o_ref.dtype)


def _choose_tb(n, block_batch):
    """Lane-aligned batch tile; >= 2 grid steps when possible (v7x megacore)."""
    block_batch = _round_up(block_batch, 128)
    np128 = _round_up(n, 128)
    if np128 <= 128:
        return 128
    tb = min(block_batch, _round_up(np128 // 2, 128))
    return max(tb, 128)


def prepare_actor_params(params, action_space):
    """Expand PyTorch-layout params into lane-dense block-diagonal kernel
    weights.  Runs once per parameter set (hoisted out of the hot path)."""
    w_in, b_in, w1, b1, w2, b2, w_out, b_out = params
    H0, C = w_in.shape
    L = w1.shape[1]
    H1 = w2.shape[0]
    A0, A1 = action_space
    A1P = _round_up(A1, 8)

    f32 = jnp.float32
    eye_l = jnp.eye(L, dtype=f32)
    eye_h = jnp.eye(H0, dtype=f32)

    # Conv1d(k=1) over all L positions: [(h,l),(c,l')] = W_in[h,c]*delta(l,l')
    w_in_big = jnp.einsum('hc,lm->hlcm', w_in.astype(f32),
                          eye_l).reshape(H0 * L, C * L)
    b_in_big = jnp.repeat(b_in.astype(f32), L).reshape(H0 * L, 1)

    # fc1 block-diagonal: [(h,j),(m,l)] = delta(h,m) * W1[j,l]
    w1_big = jnp.einsum('hm,jl->hjml', eye_h,
                        w1.astype(f32)).reshape(H0 * H0, H0 * L)
    b1_big = jnp.tile(b1.astype(f32), H0).reshape(H0 * H0, 1)

    # fc2 block-diagonal: [(h,k),(m,j)] = delta(h,m) * W2[k,j]
    w2_big = jnp.einsum('hm,kj->hkmj', eye_h,
                        w2.astype(f32)).reshape(H0 * H1, H0 * H0)
    b2_big = jnp.tile(b2.astype(f32), H0).reshape(H0 * H1, 1)

    # Output layer with each action group padded A1 -> A1P rows.
    w_out_p = jnp.pad(w_out.astype(f32).reshape(A0, A1, H0 * H1),
                      ((0, 0), (0, A1P - A1), (0, 0))).reshape(A0 * A1P, H0 * H1)
    b_out_p = jnp.pad(b_out.astype(f32).reshape(A0, A1),
                      ((0, 0), (0, A1P - A1)),
                      constant_values=-1e30).reshape(A0 * A1P, 1)

    return (w_in_big, b_in_big, w1_big, b1_big, w2_big, b2_big,
            w_out_p, b_out_p)


def make_actor_forward(params, action_space, *, block_batch=512):
    """Returns a jitted forward: x (N, C, L) -> softmax probs (N, A0, A1)."""
    A0, A1 = action_space
    A1P = _round_up(A1, 8)
    prepared = prepare_actor_params(params, action_space)
    kernel = functools.partial(_actor_kernel, a0=A0, a1p=A1P)

    def const_spec(arr):
        nd = arr.ndim
        return pl.BlockSpec(arr.shape, lambda nb, _nd=nd: (0,) * _nd)

    @jax.jit
    def fwd(x):
        N, C, L = x.shape
        TB = _choose_tb(N, block_batch)
        Np = _round_up(N, TB)

        # Samples into the lane dimension: (C*L, N), padded to a TB multiple.
        x_t = jnp.transpose(x, (1, 2, 0)).reshape(C * L, N).astype(jnp.float32)
        if Np != N:
            x_t = jnp.pad(x_t, ((0, 0), (0, Np - N)))

        out_t = pl.pallas_call(
            kernel,
            out_shape=jax.ShapeDtypeStruct((A0 * A1P, Np), jnp.float32),
            grid_spec=pltpu.PrefetchScalarGridSpec(
                num_scalar_prefetch=0,
                grid=(Np // TB,),
                in_specs=[pl.BlockSpec((C * L, TB), lambda nb: (0, nb))]
                         + [const_spec(a) for a in prepared],
                out_specs=pl.BlockSpec((A0 * A1P, TB), lambda nb: (0, nb)),
            ),
            compiler_params=pltpu.CompilerParams(
                dimension_semantics=("parallel",),
                vmem_limit_bytes=32 * 1024 * 1024),
        )(x_t, *prepared)

        # Gather the A1 valid rows of each padded group; back to (N, A0, A1).
        out3 = out_t[:, :N].reshape(A0, A1P, N)[:, :A1, :]
        return jnp.transpose(out3, (2, 0, 1))

    return fwd


def make_params(key, C, L, H0, H1, A0, A1):
    """Deterministic synthetic parameters matching the PyTorch layer shapes."""
    nA = A0 * A1
    ks = jax.random.split(key, 8)
    u = lambda k, shape, lim: jax.random.uniform(
        k, shape, jnp.float32, minval=-lim, maxval=lim)
    w_in = u(ks[0], (H0, C), 1.0 / jnp.sqrt(H0))   # Conv1d weight (k=1 squeezed)
    b_in = u(ks[1], (H0,), 1.0 / jnp.sqrt(C))
    w1 = u(ks[2], (H0, L), 1.0 / jnp.sqrt(H0))     # fc1: Linear(L, H0)
    b1 = u(ks[3], (H0,), 1.0 / jnp.sqrt(L))
    w2 = u(ks[4], (H1, H0), 1.0 / jnp.sqrt(H0))    # fc2: Linear(H0, H1)
    b2 = u(ks[5], (H1,), 1.0 / jnp.sqrt(H0))
    w_out = u(ks[6], (nA, H0 * H1), 0.003)         # output_layer
    b_out = u(ks[7], (nA,), 1.0 / jnp.sqrt(H0 * H1))
    return (w_in, b_in, w1, b1, w2, b2, w_out, b_out)


def reference_forward(x, params, action_space):
    """Pure-JAX replica of the PyTorch forward for validation."""
    w_in, b_in, w1, b1, w2, b2, w_out, b_out = params
    N = x.shape[0]
    A0, A1 = action_space
    h1 = jax.nn.relu(jnp.einsum('hc,ncl->nhl', w_in, x) + b_in[None, :, None])
    h2 = jax.nn.relu(jnp.einsum('nhl,jl->nhj', h1, w1) + b1[None, None, :])
    h3 = jax.nn.relu(jnp.einsum('nhj,kj->nhk', h2, w2) + b2[None, None, :])
    flat = h3.reshape(N, -1)
    logits = (flat @ w_out.T + b_out).reshape(N, A0, A1)
    return jax.nn.softmax(logits, axis=-1)


if __name__ == "__main__":
    # Small shapes consistent with the module:
    #   nS = (C, L) = (4, 8), hidden_dims = (32, 16), nA = (3, 5), batch N = 256
    # (N = 256 exercises the batched grid: 2 steps of TB = 128 samples each.)
    N, C, L = 256, 4, 8
    H0, H1 = 32, 16
    A0, A1 = 3, 5

    key = jax.random.PRNGKey(0)
    k_x, k_p = jax.random.split(key)
    x = jax.random.normal(k_x, (N, C, L), dtype=jnp.float32)
    params = make_params(k_p, C, L, H0, H1, A0, A1)

    fwd = make_actor_forward(params, (A0, A1))
    out = jax.block_until_ready(fwd(x))

    ref = reference_forward(x, params, (A0, A1))
    assert out.shape == (N, A0, A1), out.shape
    max_err = float(jnp.max(jnp.abs(out - ref)))
    assert bool(jnp.allclose(out, ref, atol=5e-5, rtol=1e-4)), max_err
    # probabilities sum to 1 along the last axis
    assert bool(jnp.allclose(jnp.sum(out, axis=-1), 1.0, atol=1e-5))

    print("KERNEL_OK")
</pallas_src>

<mosaic_0001>
module attributes {stable_mosaic.version = 11 : i64} {
  func.func @_actor_kernel(%arg0: i32, %arg1: memref<32x128xf32, #tpu.memory_space<vmem>>, %arg2: memref<256x32xf32, #tpu.memory_space<vmem>>, %arg3: memref<256x1xf32, #tpu.memory_space<vmem>>, %arg4: memref<1024x256xf32, #tpu.memory_space<vmem>>, %arg5: memref<1024x1xf32, #tpu.memory_space<vmem>>, %arg6: memref<512x1024xf32, #tpu.memory_space<vmem>>, %arg7: memref<512x1xf32, #tpu.memory_space<vmem>>, %arg8: memref<24x512xf32, #tpu.memory_space<vmem>>, %arg9: memref<24x1xf32, #tpu.memory_space<vmem>>, %arg10: memref<24x128xf32, #tpu.memory_space<vmem>>) attributes {dimension_semantics = [#tpu.dimension_semantics<parallel>], iteration_bounds = array<i64: 2>, scalar_prefetch = 0 : i64, scratch_operands = 0 : i64, tpu.core_type = #tpu.core_type<tc>, window_params = [{transform_indices = @transform_0, window_bounds = array<i64: 32, 128>}, {pipeline_mode = #tpu.pipeline_mode<synchronous>, transform_indices = @transform_1, window_bounds = array<i64: 256, 32>}, {pipeline_mode = #tpu.pipeline_mode<synchronous>, transform_indices = @transform_2, window_bounds = array<i64: 256, 1>}, {pipeline_mode = #tpu.pipeline_mode<synchronous>, transform_indices = @transform_3, window_bounds = array<i64: 1024, 256>}, {pipeline_mode = #tpu.pipeline_mode<synchronous>, transform_indices = @transform_4, window_bounds = array<i64: 1024, 1>}, {pipeline_mode = #tpu.pipeline_mode<synchronous>, transform_indices = @transform_5, window_bounds = array<i64: 512, 1024>}, {pipeline_mode = #tpu.pipeline_mode<synchronous>, transform_indices = @transform_6, window_bounds = array<i64: 512, 1>}, {pipeline_mode = #tpu.pipeline_mode<synchronous>, transform_indices = @transform_7, window_bounds = array<i64: 24, 512>}, {pipeline_mode = #tpu.pipeline_mode<synchronous>, transform_indices = @transform_8, window_bounds = array<i64: 24, 1>}, {transform_indices = @transform_9, window_bounds = array<i64: 24, 128>}]} {
    %c0 = arith.constant 0 : index
    %c0_0 = arith.constant 0 : index
    %0 = vector.load %arg2[%c0, %c0_0] : memref<256x32xf32, #tpu.memory_space<vmem>>, vector<256x32xf32>
    %c0_1 = arith.constant 0 : index
    %c0_2 = arith.constant 0 : index
    %1 = vector.load %arg1[%c0_1, %c0_2] : memref<32x128xf32, #tpu.memory_space<vmem>>, vector<32x128xf32>
    %cst = arith.constant dense<0.000000e+00> : vector<256x128xf32>
    %2 = tpu.matmul %0, %1, %cst {dimension_numbers = #tpu.dot_dimension_numbers<[1], [0], [0], [1], [0, 0, 1, 1], [], []>} : vector<256x32xf32>, vector<32x128xf32>, vector<256x128xf32> -> vector<256x128xf32>
    %c0_3 = arith.constant 0 : index
    %c0_4 = arith.constant 0 : index
    %3 = vector.load %arg3[%c0_3, %c0_4] : memref<256x1xf32, #tpu.memory_space<vmem>>, vector<256x1xf32>
    %4 = vector.broadcast %3 : vector<256x1xf32> to vector<256x128xf32>
    %5 = arith.addf %2, %4 : vector<256x128xf32>
    %cst_5 = arith.constant 0.000000e+00 : f32
    %6 = vector.broadcast %cst_5 : f32 to vector<256x128xf32>
    %7 = arith.maximumf %5, %6 : vector<256x128xf32>
    %c0_6 = arith.constant 0 : index
    %c0_7 = arith.constant 0 : index
    %8 = vector.load %arg4[%c0_6, %c0_7] : memref<1024x256xf32, #tpu.memory_space<vmem>>, vector<1024x256xf32>
    %cst_8 = arith.constant dense<0.000000e+00> : vector<1024x128xf32>
    %9 = tpu.matmul %8, %7, %cst_8 {dimension_numbers = #tpu.dot_dimension_numbers<[1], [0], [0], [1], [0, 0, 1, 1], [], []>} : vector<1024x256xf32>, vector<256x128xf32>, vector<1024x128xf32> -> vector<1024x128xf32>
    %c0_9 = arith.constant 0 : index
    %c0_10 = arith.constant 0 : index
    %10 = vector.load %arg5[%c0_9, %c0_10] : memref<1024x1xf32, #tpu.memory_space<vmem>>, vector<1024x1xf32>
    %11 = vector.broadcast %10 : vector<1024x1xf32> to vector<1024x128xf32>
    %12 = arith.addf %9, %11 : vector<1024x128xf32>
    %cst_11 = arith.constant 0.000000e+00 : f32
    %13 = vector.broadcast %cst_11 : f32 to vector<1024x128xf32>
    %14 = arith.maximumf %12, %13 : vector<1024x128xf32>
    %c0_12 = arith.constant 0 : index
    %c0_13 = arith.constant 0 : index
    %15 = vector.load %arg6[%c0_12, %c0_13] : memref<512x1024xf32, #tpu.memory_space<vmem>>, vector<512x1024xf32>
    %cst_14 = arith.constant dense<0.000000e+00> : vector<512x128xf32>
    %16 = tpu.matmul %15, %14, %cst_14 {dimension_numbers = #tpu.dot_dimension_numbers<[1], [0], [0], [1], [0, 0, 1, 1], [], []>} : vector<512x1024xf32>, vector<1024x128xf32>, vector<512x128xf32> -> vector<512x128xf32>
    %c0_15 = arith.constant 0 : index
    %c0_16 = arith.constant 0 : index
    %17 = vector.load %arg7[%c0_15, %c0_16] : memref<512x1xf32, #tpu.memory_space<vmem>>, vector<512x1xf32>
    %18 = vector.broadcast %17 : vector<512x1xf32> to vector<512x128xf32>
    %19 = arith.addf %16, %18 : vector<512x128xf32>
    %cst_17 = arith.constant 0.000000e+00 : f32
    %20 = vector.broadcast %cst_17 : f32 to vector<512x128xf32>
    %21 = arith.maximumf %19, %20 : vector<512x128xf32>
    %c0_18 = arith.constant 0 : index
    %c0_19 = arith.constant 0 : index
    %22 = vector.load %arg8[%c0_18, %c0_19] : memref<24x512xf32, #tpu.memory_space<vmem>>, vector<24x512xf32>
    %cst_20 = arith.constant dense<0.000000e+00> : vector<24x128xf32>
    %23 = tpu.matmul %22, %21, %cst_20 {dimension_numbers = #tpu.dot_dimension_numbers<[1], [0], [0], [1], [0, 0, 1, 1], [], []>} : vector<24x512xf32>, vector<512x128xf32>, vector<24x128xf32> -> vector<24x128xf32>
    %c0_21 = arith.constant 0 : index
    %c0_22 = arith.constant 0 : index
    %24 = vector.load %arg9[%c0_21, %c0_22] : memref<24x1xf32, #tpu.memory_space<vmem>>, vector<24x1xf32>
    %25 = vector.broadcast %24 : vector<24x1xf32> to vector<24x128xf32>
    %26 = arith.addf %23, %25 : vector<24x128xf32>
    %27 = vector.shape_cast %26 : vector<24x128xf32> to vector<3x8x128xf32>
    %cst_23 = arith.constant dense<0xFF800000> : vector<3x128xf32>
    %28 = vector.multi_reduction <maximumf>, %27, %cst_23 [1] : vector<3x8x128xf32> to vector<3x128xf32>
    %29 = vector.shape_cast %28 : vector<3x128xf32> to vector<3x1x128xf32>
    %30 = vector.broadcast %29 : vector<3x1x128xf32> to vector<3x8x128xf32>
    %31 = arith.subf %27, %30 : vector<3x8x128xf32>
    %32 = math.exp %31 : vector<3x8x128xf32>
    %cst_24 = arith.constant dense<0.000000e+00> : vector<3x128xf32>
    %33 = vector.multi_reduction <add>, %32, %cst_24 [1] : vector<3x8x128xf32> to vector<3x128xf32>
    %34 = vector.shape_cast %33 : vector<3x128xf32> to vector<3x1x128xf32>
    %35 = tpu.reciprocal %34 : vector<3x1x128xf32> -> vector<3x1x128xf32>
    %36 = vector.broadcast %35 : vector<3x1x128xf32> to vector<3x8x128xf32>
    %37 = arith.mulf %32, %36 : vector<3x8x128xf32>
    %38 = vector.shape_cast %37 : vector<3x8x128xf32> to vector<24x128xf32>
    %c0_25 = arith.constant 0 : index
    %c0_26 = arith.constant 0 : index
    %39 = vector.load %arg10[%c0_25, %c0_26] : memref<24x128xf32, #tpu.memory_space<vmem>>, vector<24x128xf32>
    tpu.vector_store %arg10[%c0_25, %c0_26], %38 {strides = array<i32>} : memref<24x128xf32, #tpu.memory_space<vmem>>, vector<24x128xf32>,
    return
  }
  func.func @transform_0(%arg0: i32) -> (i32, i32) {
    %c0_i32 = arith.constant 0 : i32
    %c0_i32_0 = arith.constant 0 : i32
    return %c0_i32, %arg0 : i32, i32
  }
  func.func @transform_1(%arg0: i32) -> (i32, i32) {
    %c0_i32 = arith.constant 0 : i32
    %c0_i32_0 = arith.constant 0 : i32
    %c0_i32_1 = arith.constant 0 : i32
    return %c0_i32, %c0_i32_0 : i32, i32
  }
  func.func @transform_2(%arg0: i32) -> (i32, i32) {
    %c0_i32 = arith.constant 0 : i32
    %c0_i32_0 = arith.constant 0 : i32
    %c0_i32_1 = arith.constant 0 : i32
    return %c0_i32, %c0_i32_0 : i32, i32
  }
  func.func @transform_3(%arg0: i32) -> (i32, i32) {
    %c0_i32 = arith.constant 0 : i32
    %c0_i32_0 = arith.constant 0 : i32
    %c0_i32_1 = arith.constant 0 : i32
    return %c0_i32, %c0_i32_0 : i32, i32
  }
  func.func @transform_4(%arg0: i32) -> (i32, i32) {
    %c0_i32 = arith.constant 0 : i32
    %c0_i32_0 = arith.constant 0 : i32
    %c0_i32_1 = arith.constant 0 : i32
    return %c0_i32, %c0_i32_0 : i32, i32
  }
  func.func @transform_5(%arg0: i32) -> (i32, i32) {
    %c0_i32 = arith.constant 0 : i32
    %c0_i32_0 = arith.constant 0 : i32
    %c0_i32_1 = arith.constant 0 : i32
    return %c0_i32, %c0_i32_0 : i32, i32
  }
  func.func @transform_6(%arg0: i32) -> (i32, i32) {
    %c0_i32 = arith.constant 0 : i32
    %c0_i32_0 = arith.constant 0 : i32
    %c0_i32_1 = arith.constant 0 : i32
    return %c0_i32, %c0_i32_0 : i32, i32
  }
  func.func @transform_7(%arg0: i32) -> (i32, i32) {
    %c0_i32 = arith.constant 0 : i32
    %c0_i32_0 = arith.constant 0 : i32
    %c0_i32_1 = arith.constant 0 : i32
    return %c0_i32, %c0_i32_0 : i32, i32
  }
  func.func @transform_8(%arg0: i32) -> (i32, i32) {
    %c0_i32 = arith.constant 0 : i32
    %c0_i32_0 = arith.constant 0 : i32
    %c0_i32_1 = arith.constant 0 : i32
    return %c0_i32, %c0_i32_0 : i32, i32
  }
  func.func @transform_9(%arg0: i32) -> (i32, i32) {
    %c0_i32 = arith.constant 0 : i32
    %c0_i32_0 = arith.constant 0 : i32
    return %c0_i32, %arg0 : i32, i32
  }
}

</mosaic_0001>

<llo_original>
// kernel: fwd.1
$region0: #{fwd.1}
  #allocation0 [shape = 'u32[]', space=smem, size = 0x4, offset = 0x4, fixed_abs, tag = 'smem constant byte address 0x4 - core index']
  #allocation1 [shape = 'u32[72,128]{1,0:T(1,128)}', space=vmem, size = 0x9000, scoped, tag = 'internal scratch']
  %s0 = inlined_call_operand.hbm [shape: f32[32,256], index: 0, kind: input, shape index: {}]
  %s1 = inlined_call_operand.hbm [shape: f32[256,32], index: 1, kind: input, shape index: {}]
  %s2 = inlined_call_operand.hbm [shape: f32[256,1], index: 2, kind: input, shape index: {}]
  %s3 = inlined_call_operand.hbm [shape: f32[1024,256], index: 3, kind: input, shape index: {}]
  %s4 = inlined_call_operand.hbm [shape: f32[1024,1], index: 4, kind: input, shape index: {}]
  %s5 = inlined_call_operand.hbm [shape: f32[512,1024], index: 5, kind: input, shape index: {}]
  %s6 = inlined_call_operand.hbm [shape: f32[512,1], index: 6, kind: input, shape index: {}]
  %s7 = inlined_call_operand.hbm [shape: f32[24,512], index: 7, kind: input, shape index: {}]
  %s8 = inlined_call_operand.hbm [shape: f32[24,1], index: 8, kind: input, shape index: {}]
  %s9 = inlined_call_operand.vmem [shape: f32[24,256], index: 9, kind: output, shape index: {}]
  %s10 = sld [smem:[#allocation0]]
  $region139: #{fwd.1} parent=0
    _
  %s12 = ssub.s32 1, %s10
  %s13 = scalar_select 0, %s12, %s10
  $region1: #{fwd.1} parent=0
    #allocation2 [shape = 'u8[32768]{0}', space=vmem, size = 0x8000, scoped, tag = 'input window, operand 0']
    #allocation3 [shape = 's32[2]{0}', space=sflag, size = 0x8, scoped, tag = 'scoped memory for fwd.1']
    #allocation4 [shape = 'u8[131072]{0}', space=vmem, size = 0x20000, scoped, tag = 'input window, operand 1, single buffered']
    #allocation5 [shape = 's32[1]{0}', space=sflag, size = 0x4, scoped, tag = 'scoped memory for fwd.1']
    #allocation6 [shape = 'u8[131072]{0}', space=vmem, size = 0x20000, scoped, tag = 'input window, operand 2, single buffered']
    #allocation7 [shape = 'u8[1048576]{0}', space=vmem, size = 0x100000, scoped, tag = 'input window, operand 3, single buffered']
    #allocation8 [shape = 's32[1]{0}', space=sflag, size = 0x4, scoped, tag = 'scoped memory for fwd.1']
    #allocation9 [shape = 'u8[524288]{0}', space=vmem, size = 0x80000, scoped, tag = 'input window, operand 4, single buffered']
    #allocation10 [shape = 'u8[2097152]{0}', space=vmem, size = 0x200000, scoped, tag = 'input window, operand 5, single buffered']
    #allocation11 [shape = 's32[1]{0}', space=sflag, size = 0x4, scoped, tag = 'scoped memory for fwd.1']
    #allocation12 [shape = 'u8[262144]{0}', space=vmem, size = 0x40000, scoped, tag = 'input window, operand 6, single buffered']
    #allocation13 [shape = 'u8[49152]{0}', space=vmem, size = 0xc000, scoped, tag = 'input window, operand 7, single buffered']
    #allocation14 [shape = 's32[1]{0}', space=sflag, size = 0x4, scoped, tag = 'scoped memory for fwd.1']
    #allocation15 [shape = 'u8[12288]{0}', space=vmem, size = 0x3000, scoped, tag = 'input window, operand 8, single buffered']
    #allocation16 [shape = 'u8[24576]{0}', space=vmem, size = 0x6000, scoped, tag = 'output window, operand 0']
    %14 = vsyncpa [#allocation3], 0
    %s15 = scalar_lea.sflag [#allocation3], 1
    %16 = vsyncpa %s15, 0
    %17 = vsyncpa [#allocation5], 0
    %18 = vsyncpa [#allocation8], 0
    %19 = vsyncpa [#allocation11], 0
    %20 = vsyncpa [#allocation14], 0
    loop: start=0, step=1, limit=4
    $region2: #{fwd.1} parent=1 // loop_pre_header
      _
    $region3: #{fwd.1} parent=1 // loop_header
      %s22 = sphi 0, %s26
      %p23 = scmp.ge.s32.totalorder %s22, 4
      %s32 = sphi 0, %s34
      %s35 = sphi 0, %s32
      %s36 = sphi 0, %s35
      %s52 = sphi 0, %s36
      %s56 = sphi 0, %s56
      %s58 = sphi 0, %s56
      %s59 = sphi 0, %s58
      %s73 = sphi 0, %s59
      %s77 = sphi 0, %s77
      %s79 = sphi 0, %s77
      %s80 = sphi 0, %s79
      %s94 = sphi 0, %s80
      %s98 = sphi 0, %s98
      %s100 = sphi 0, %s98
      %s101 = sphi 0, %s100
      %s115 = sphi 0, %s101
      %s119 = sphi 0, %s119
      %s121 = sphi 0, %s119
      %s122 = sphi 0, %s121
      %s136 = sphi 0, %s122
      %s140 = sphi 0, %s140
      %s142 = sphi 0, %s140
      %s143 = sphi 0, %s142
      %s157 = sphi 0, %s143
      %s161 = sphi 0, %s161
      %s163 = sphi 0, %s161
      %s164 = sphi 0, %s163
      %s178 = sphi 0, %s164
      %s182 = sphi 0, %s182
      %s184 = sphi 0, %s182
      %s185 = sphi 0, %s184
      %s199 = sphi 0, %s185
      %s203 = sphi 0, %s203
      %s205 = sphi 0, %s203
      %s206 = sphi 0, %s205
      %s220 = sphi 0, %s206
      %s226 = sphi 0, %s228
      %s229 = sphi 0, %s226
      %s230 = sphi 0, %s229
      %s246 = sphi 0, %s230
    $region4: #{fwd.1} parent=1 // loop_header_branch
      %25 = sbr.rel (%p23) target = $region8
    $region5: #{fwd.1} parent=1 // loop_body
      %s27 = ssub.s32 %s22, 1
      %s28 = ssub.s32 %s22, 2
      %s29 = sadd.s32 %s22, 1
      %s30 = ssub.s32 %s22, %s29
      %p31 = scmp.eq.s32.totalorder %s30, 0
      %s33 = sadd.s32 %s32, 1
      %s34 = scalar_select %p31, %s32, %s33
      %p37 = pneg %p31
      %p38 = scmp.eq.s32.totalorder %s22, 1
      %p39 = por %p37, %p38
      %p40 = scmp.ne.s32.totalorder %s32, %s35
      %p41 = scmp.eq.s32.totalorder %s22, 0
      %p42 = por %p40, %p41
      %p43 = scmp.ne.s32.totalorder %s32, %s35
      %p44 = scmp.eq.s32.totalorder %s27, 1
      %p45 = por %p43, %p44
      %p46 = scmp.ne.s32.totalorder %s35, %s36
      %p47 = scmp.eq.s32.totalorder %s27, 0
      %p48 = por %p46, %p47
      %p49 = scmp.ne.s32.totalorder %s35, %s36
      %p50 = scmp.eq.s32.totalorder %s28, 1
      %p51 = por %p49, %p50
      %p53 = scmp.ne.s32.totalorder %s36, %s52
      %p54 = scmp.eq.s32.totalorder %s28, 0
      %p55 = por %p53, %p54
      %s57 = sadd.s32 %s56, 1
      %p60 = scmp.eq.s32.totalorder %s22, 1
      %p61 = scmp.ne.s32.totalorder %s56, %s58
      %p62 = scmp.eq.s32.totalorder %s22, 0
      %p63 = por %p61, %p62
      %p64 = scmp.ne.s32.totalorder %s56, %s58
      %p65 = scmp.eq.s32.totalorder %s27, 1
      %p66 = por %p64, %p65
      %p67 = scmp.ne.s32.totalorder %s58, %s59
      %p68 = scmp.eq.s32.totalorder %s27, 0
      %p69 = por %p67, %p68
      %p70 = scmp.ne.s32.totalorder %s58, %s59
      %p71 = scmp.eq.s32.totalorder %s28, 1
      %p72 = por %p70, %p71
      %p74 = scmp.ne.s32.totalorder %s59, %s73
      %p75 = scmp.eq.s32.totalorder %s28, 0
      %p76 = por %p74, %p75
      %s78 = sadd.s32 %s77, 1
      %p81 = scmp.eq.s32.totalorder %s22, 1
      %p82 = scmp.ne.s32.totalorder %s77, %s79
      %p83 = scmp.eq.s32.totalorder %s22, 0
      %p84 = por %p82, %p83
      %p85 = scmp.ne.s32.totalorder %s77, %s79
      %p86 = scmp.eq.s32.totalorder %s27, 1
      %p87 = por %p85, %p86
      %p88 = scmp.ne.s32.totalorder %s79, %s80
      %p89 = scmp.eq.s32.totalorder %s27, 0
      %p90 = por %p88, %p89
      %p91 = scmp.ne.s32.totalorder %s79, %s80
      %p92 = scmp.eq.s32.totalorder %s28, 1
      %p93 = por %p91, %p92
      %p95 = scmp.ne.s32.totalorder %s80, %s94
      %p96 = scmp.eq.s32.totalorder %s28, 0
      %p97 = por %p95, %p96
      %s99 = sadd.s32 %s98, 1
      %p102 = scmp.eq.s32.totalorder %s22, 1
      %p103 = scmp.ne.s32.totalorder %s98, %s100
      %p104 = scmp.eq.s32.totalorder %s22, 0
      %p105 = por %p103, %p104
      %p106 = scmp.ne.s32.totalorder %s98, %s100
      %p107 = scmp.eq.s32.totalorder %s27, 1
      %p108 = por %p106, %p107
      %p109 = scmp.ne.s32.totalorder %s100, %s101
      %p110 = scmp.eq.s32.totalorder %s27, 0
      %p111 = por %p109, %p110
      %p112 = scmp.ne.s32.totalorder %s100, %s101
      %p113 = scmp.eq.s32.totalorder %s28, 1
      %p114 = por %p112, %p113
      %p116 = scmp.ne.s32.totalorder %s101, %s115
      %p117 = scmp.eq.s32.totalorder %s28, 0
      %p118 = por %p116, %p117
      %s120 = sadd.s32 %s119, 1
      %p123 = scmp.eq.s32.totalorder %s22, 1
      %p124 = scmp.ne.s32.totalorder %s119, %s121
      %p125 = scmp.eq.s32.totalorder %s22, 0
      %p126 = por %p124, %p125
      %p127 = scmp.ne.s32.totalorder %s119, %s121
      %p128 = scmp.eq.s32.totalorder %s27, 1
      %p129 = por %p127, %p128
      %p130 = scmp.ne.s32.totalorder %s121, %s122
      %p131 = scmp.eq.s32.totalorder %s27, 0
      %p132 = por %p130, %p131
      %p133 = scmp.ne.s32.totalorder %s121, %s122
      %p134 = scmp.eq.s32.totalorder %s28, 1
      %p135 = por %p133, %p134
      %p137 = scmp.ne.s32.totalorder %s122, %s136
      %p138 = scmp.eq.s32.totalorder %s28, 0
      %p139 = por %p137, %p138
      %s141 = sadd.s32 %s140, 1
      %p144 = scmp.eq.s32.totalorder %s22, 1
      %p145 = scmp.ne.s32.totalorder %s140, %s142
      %p146 = scmp.eq.s32.totalorder %s22, 0
      %p147 = por %p145, %p146
      %p148 = scmp.ne.s32.totalorder %s140, %s142
      %p149 = scmp.eq.s32.totalorder %s27, 1
      %p150 = por %p148, %p149
      %p151 = scmp.ne.s32.totalorder %s142, %s143
      %p152 = scmp.eq.s32.totalorder %s27, 0
      %p153 = por %p151, %p152
      %p154 = scmp.ne.s32.totalorder %s142, %s143
      %p155 = scmp.eq.s32.totalorder %s28, 1
      %p156 = por %p154, %p155
      %p158 = scmp.ne.s32.totalorder %s143, %s157
      %p159 = scmp.eq.s32.totalorder %s28, 0
      %p160 = por %p158, %p159
      %s162 = sadd.s32 %s161, 1
      %p165 = scmp.eq.s32.totalorder %s22, 1
      %p166 = scmp.ne.s32.totalorder %s161, %s163
      %p167 = scmp.eq.s32.totalorder %s22, 0
      %p168 = por %p166, %p167
      %p169 = scmp.ne.s32.totalorder %s161, %s163
      %p170 = scmp.eq.s32.totalorder %s27, 1
      %p171 = por %p169, %p170
      %p172 = scmp.ne.s32.totalorder %s163, %s164
      %p173 = scmp.eq.s32.totalorder %s27, 0
      %p174 = por %p172, %p173
      %p175 = scmp.ne.s32.totalorder %s163, %s164
      %p176 = scmp.eq.s32.totalorder %s28, 1
      %p177 = por %p175, %p176
      %p179 = scmp.ne.s32.totalorder %s164, %s178
      %p180 = scmp.eq.s32.totalorder %s28, 0
      %p181 = por %p179, %p180
      %s183 = sadd.s32 %s182, 1
      %p186 = scmp.eq.s32.totalorder %s22, 1
      %p187 = scmp.ne.s32.totalorder %s182, %s184
      %p188 = scmp.eq.s32.totalorder %s22, 0
      %p189 = por %p187, %p188
      %p190 = scmp.ne.s32.totalorder %s182, %s184
      %p191 = scmp.eq.s32.totalorder %s27, 1
      %p192 = por %p190, %p191
      %p193 = scmp.ne.s32.totalorder %s184, %s185
      %p194 = scmp.eq.s32.totalorder %s27, 0
      %p195 = por %p193, %p194
      %p196 = scmp.ne.s32.totalorder %s184, %s185
      %p197 = scmp.eq.s32.totalorder %s28, 1
      %p198 = por %p196, %p197
      %p200 = scmp.ne.s32.totalorder %s185, %s199
      %p201 = scmp.eq.s32.totalorder %s28, 0
      %p202 = por %p200, %p201
      %s204 = sadd.s32 %s203, 1
      %p207 = scmp.eq.s32.totalorder %s22, 1
      %p208 = scmp.ne.s32.totalorder %s203, %s205
      %p209 = scmp.eq.s32.totalorder %s22, 0
      %p210 = por %p208, %p209
      %p211 = scmp.ne.s32.totalorder %s203, %s205
      %p212 = scmp.eq.s32.totalorder %s27, 1
      %p213 = por %p211, %p212
      %p214 = scmp.ne.s32.totalorder %s205, %s206
      %p215 = scmp.eq.s32.totalorder %s27, 0
      %p216 = por %p214, %p215
      %p217 = scmp.ne.s32.totalorder %s205, %s206
      %p218 = scmp.eq.s32.totalorder %s28, 1
      %p219 = por %p217, %p218
      %p221 = scmp.ne.s32.totalorder %s206, %s220
      %p222 = scmp.eq.s32.totalorder %s28, 0
      %p223 = por %p221, %p222
      %s224 = ssub.s32 %s22, %s29
      %p225 = scmp.eq.s32.totalorder %s224, 0
      %s227 = sadd.s32 %s226, 1
      %s228 = scalar_select %p225, %s226, %s227
      %p231 = pneg %p225
      %p232 = scmp.eq.s32.totalorder %s22, 1
      %p233 = por %p231, %p232
      %p234 = scmp.ne.s32.totalorder %s226, %s229
      %p235 = scmp.eq.s32.totalorder %s22, 0
      %p236 = por %p234, %p235
      %p237 = scmp.ne.s32.totalorder %s226, %s229
      %p238 = scmp.eq.s32.totalorder %s27, 1
      %p239 = por %p237, %p238
      %p240 = scmp.ne.s32.totalorder %s229, %s230
      %p241 = scmp.eq.s32.totalorder %s27, 0
      %p242 = por %p240, %p241
      %p243 = scmp.ne.s32.totalorder %s229, %s230
      %p244 = scmp.eq.s32.totalorder %s28, 1
      %p245 = por %p243, %p244
      %p247 = scmp.ne.s32.totalorder %s230, %s246
      %p248 = scmp.eq.s32.totalorder %s28, 0
      %p249 = por %p247, %p248
      %p250 = scmp.le.s32.totalorder 1, %s22
      %p251 = scmp.lt.s32.totalorder %s22, 3
      %p252 = pnand %p250, %p251
      %p253 = pneg %p252
      // Predicated region
      $region9: #{fwd.1} parent=5 // pred_check
        _
      $region10: #{fwd.1} parent=5 // pred_check_branch
        %255 = sbr.rel (%p252) target = $region12
      $region11: #{fwd.1} parent=5 // pred_region
        %s256 = ssub.s32 %s22, 1
        // Predicated region
        $region13: #{fwd.1} parent=11 // pred_check
          %p257 = pneg %p69
        $region14: #{fwd.1} parent=11 // pred_check_branch
          %259 = sbr.rel (%p257) target = $region16
        $region15: #{fwd.1} parent=11 // pred_region
          %261 = vsyncadd [#allocation5], 0
          %s262 = sshll.u32 %s1, 4
          %s263 = int_to_ptr.hbm [resolvable:$true] %s262
          %s264 = sshll.u32 [#allocation4], 4
          %s265 = int_to_ptr.vmem [resolvable:$true] %s264
          %270 = dma.hbm_to_vmem [thread:$0]  %s263, 4096, %s265, [#allocation5], 128, 128, 8
        $region16: #{fwd.1} parent=11 // pred_fallthru
          _
        // Predicated region
        $region17: #{fwd.1} parent=11 // pred_check
          %p271 = pneg %p90
        $region18: #{fwd.1} parent=11 // pred_check_branch
          %273 = sbr.rel (%p271) target = $region20
        $region19: #{fwd.1} parent=11 // pred_region
          %275 = vsyncadd [#allocation5], 0
          %s276 = sshll.u32 %s2, 4
          %s277 = int_to_ptr.hbm [resolvable:$true] %s276
          %s278 = sshll.u32 [#allocation6], 4
          %s279 = int_to_ptr.vmem [resolvable:$true] %s278
          %284 = dma.hbm_to_vmem [thread:$0]  %s277, 4096, %s279, [#allocation5], 128, 128, 8
        $region20: #{fwd.1} parent=11 // pred_fallthru
          _
        // Predicated region
        $region21: #{fwd.1} parent=11 // pred_check
          %p285 = pneg %p111
        $region22: #{fwd.1} parent=11 // pred_check_branch
          %287 = sbr.rel (%p285) target = $region24
        $region23: #{fwd.1} parent=11 // pred_region
          %289 = vsyncadd [#allocation8], 0
          %s290 = sshll.u32 %s3, 4
          %s291 = int_to_ptr.hbm [resolvable:$true] %s290
          %s292 = sshll.u32 [#allocation7], 4
          %s293 = int_to_ptr.vmem [resolvable:$true] %s292
          %298 = dma.hbm_to_vmem [thread:$0]  %s291, 32768, %s293, [#allocation8], 256, 256, 16
        $region24: #{fwd.1} parent=11 // pred_fallthru
          _
        // Predicated region
        $region25: #{fwd.1} parent=11 // pred_check
          %p299 = pneg %p132
        $region26: #{fwd.1} parent=11 // pred_check_branch
          %301 = sbr.rel (%p299) target = $region28
        $region27: #{fwd.1} parent=11 // pred_region
          %303 = vsyncadd [#allocation8], 0
          %s304 = sshll.u32 %s4, 4
          %s305 = int_to_ptr.hbm [resolvable:$true] %s304
          %s306 = sshll.u32 [#allocation9], 4
          %s307 = int_to_ptr.vmem [resolvable:$true] %s306
          %312 = dma.hbm_to_vmem [thread:$0]  %s305, 16384, %s307, [#allocation8], 128, 128, 8
        $region28: #{fwd.1} parent=11 // pred_fallthru
          _
        // Predicated region
        $region29: #{fwd.1} parent=11 // pred_check
          %p313 = pneg %p153
        $region30: #{fwd.1} parent=11 // pred_check_branch
          %315 = sbr.rel (%p313) target = $region32
        $region31: #{fwd.1} parent=11 // pred_region
          %317 = vsyncadd [#allocation11], 0
          %s318 = sshll.u32 %s5, 4
          %s319 = int_to_ptr.hbm [resolvable:$true] %s318
          %s320 = sshll.u32 [#allocation10], 4
          %s321 = int_to_ptr.vmem [resolvable:$true] %s320
          %326 = dma.hbm_to_vmem [thread:$0]  %s319, 65536, %s321, [#allocation11], 1024, 1024, 64
        $region32: #{fwd.1} parent=11 // pred_fallthru
          _
        // Predicated region
        $region33: #{fwd.1} parent=11 // pred_check
          %p327 = pneg %p174
        $region34: #{fwd.1} parent=11 // pred_check_branch
          %329 = sbr.rel (%p327) target = $region36
        $region35: #{fwd.1} parent=11 // pred_region
          %331 = vsyncadd [#allocation11], 0
          %s332 = sshll.u32 %s6, 4
          %s333 = int_to_ptr.hbm [resolvable:$true] %s332
          %s334 = sshll.u32 [#allocation12], 4
          %s335 = int_to_ptr.vmem [resolvable:$true] %s334
          %340 = dma.hbm_to_vmem [thread:$0]  %s333, 8192, %s335, [#allocation11], 128, 128, 8
        $region36: #{fwd.1} parent=11 // pred_fallthru
          _
        // Predicated region
        $region37: #{fwd.1} parent=11 // pred_check
          %p341 = pneg %p195
        $region38: #{fwd.1} parent=11 // pred_check_branch
          %343 = sbr.rel (%p341) target = $region40
        $region39: #{fwd.1} parent=11 // pred_region
          %345 = vsyncadd [#allocation14], 0
          %s346 = sshll.u32 %s7, 4
          %s347 = int_to_ptr.hbm [resolvable:$true] %s346
          %s348 = sshll.u32 [#allocation13], 4
          %s349 = int_to_ptr.vmem [resolvable:$true] %s348
          %354 = dma.hbm_to_vmem [thread:$0]  %s347, 1536, %s349, [#allocation14], 512, 512, 32
        $region40: #{fwd.1} parent=11 // pred_fallthru
          _
        // Predicated region
        $region41: #{fwd.1} parent=11 // pred_check
          %p355 = pneg %p216
        $region42: #{fwd.1} parent=11 // pred_check_branch
          %357 = sbr.rel (%p355) target = $region44
        $region43: #{fwd.1} parent=11 // pred_region
          %359 = vsyncadd [#allocation14], 0
          %s360 = sshll.u32 %s8, 4
          %s361 = int_to_ptr.hbm [resolvable:$true] %s360
          %s362 = sshll.u32 [#allocation15], 4
          %s363 = int_to_ptr.vmem [resolvable:$true] %s362
          %368 = dma.hbm_to_vmem [thread:$0]  %s361, 384, %s363, [#allocation14], 128, 128, 8
        $region44: #{fwd.1} parent=11 // pred_fallthru
          _
      $region12: #{fwd.1} parent=5 // pred_fallthru
        _
      %p369 = scmp.lt.s32.totalorder %s22, 2
      // Predicated region
      $region45: #{fwd.1} parent=5 // pred_check
        %p370 = pneg %p369
      $region46: #{fwd.1} parent=5 // pred_check_branch
        %372 = sbr.rel (%p370) target = $region48
      $region47: #{fwd.1} parent=5 // pred_region
        // Predicated region
        $region49: #{fwd.1} parent=47 // pred_check
          %p373 = pneg %p42
        $region50: #{fwd.1} parent=47 // pred_check_branch
          %375 = sbr.rel (%p373) target = $region52
        $region51: #{fwd.1} parent=47 // pred_region
          %s376 = sand.u32 %s32, 1
          %s377 = scalar_lea.sflag [#allocation3], %s376
          %s378 = sand.u32 %s32, 1
          %s379 = smul.addr %s378, 32
          %s380 = scalar_lea.vmem [#allocation2], %s379
          %382 = vsyncadd %s377, 0
          %s383 = smul.addr %s22, 8
          %s384 = scalar_lea.hbm %s0, %s383
          %s385 = sshll.u32 %s384, 4
          %s386 = int_to_ptr.hbm [resolvable:$true] %s385
          %s387 = sshll.u32 %s380, 4
          %s388 = int_to_ptr.vmem [resolvable:$true] %s387
          %393 = dma.hbm_to_vmem [thread:$0]  %s386, 512, %s388, %s377, 256, 128, 8
        $region52: #{fwd.1} parent=47 // pred_fallthru
          _
      $region48: #{fwd.1} parent=5 // pred_fallthru
        _
      %p394 = scmp.le.s32.totalorder 1, %s22
      %p395 = scmp.lt.s32.totalorder %s22, 3
      %p396 = pnand %p394, %p395
      %p397 = pneg %p396
      // Predicated region
      $region53: #{fwd.1} parent=5 // pred_check
        _
      $region54: #{fwd.1} parent=5 // pred_check_branch
        %399 = sbr.rel (%p396) target = $region56
      $region55: #{fwd.1} parent=5 // pred_region
        %s400 = ssub.s32 %s22, 1
        %s401 = sand.u32 %s35, 1
        %s402 = scalar_lea.sflag [#allocation3], %s401
        %s403 = sand.u32 %s35, 1
        %s404 = smul.addr %s403, 32
        %s405 = scalar_lea.vmem [#allocation2], %s404
        // Predicated region
        $region57: #{fwd.1} parent=55 // pred_check
          %p406 = pneg %p48
        $region58: #{fwd.1} parent=55 // pred_check_branch
          %408 = sbr.rel (%p406) target = $region60
        $region59: #{fwd.1} parent=55 // pred_region
          %410 = dma.done %s402, 512
        $region60: #{fwd.1} parent=55 // pred_fallthru
          _
        // Predicated region
        $region61: #{fwd.1} parent=55 // pred_check
          %p411 = pneg %p69
        $region62: #{fwd.1} parent=55 // pred_check_branch
          %413 = sbr.rel (%p411) target = $region64
        $region63: #{fwd.1} parent=55 // pred_region
          %415 = dma.done [#allocation5], 4096
        $region64: #{fwd.1} parent=55 // pred_fallthru
          _
        // Predicated region
        $region65: #{fwd.1} parent=55 // pred_check
          %p416 = pneg %p90
        $region66: #{fwd.1} parent=55 // pred_check_branch
          %418 = sbr.rel (%p416) target = $region68
        $region67: #{fwd.1} parent=55 // pred_region
          %420 = dma.done [#allocation5], 4096
        $region68: #{fwd.1} parent=55 // pred_fallthru
          _
        // Predicated region
        $region69: #{fwd.1} parent=55 // pred_check
          %p421 = pneg %p111
        $region70: #{fwd.1} parent=55 // pred_check_branch
          %423 = sbr.rel (%p421) target = $region72
        $region71: #{fwd.1} parent=55 // pred_region
          %425 = dma.done [#allocation8], 32768
        $region72: #{fwd.1} parent=55 // pred_fallthru
          _
        // Predicated region
        $region73: #{fwd.1} parent=55 // pred_check
          %p426 = pneg %p132
        $region74: #{fwd.1} parent=55 // pred_check_branch
          %428 = sbr.rel (%p426) target = $region76
        $region75: #{fwd.1} parent=55 // pred_region
          %430 = dma.done [#allocation8], 16384
        $region76: #{fwd.1} parent=55 // pred_fallthru
          _
        // Predicated region
        $region77: #{fwd.1} parent=55 // pred_check
          %p431 = pneg %p153
        $region78: #{fwd.1} parent=55 // pred_check_branch
          %433 = sbr.rel (%p431) target = $region80
        $region79: #{fwd.1} parent=55 // pred_region
          %435 = dma.done [#allocation11], 65536
        $region80: #{fwd.1} parent=55 // pred_fallthru
          _
        // Predicated region
        $region81: #{fwd.1} parent=55 // pred_check
          %p436 = pneg %p174
        $region82: #{fwd.1} parent=55 // pred_check_branch
          %438 = sbr.rel (%p436) target = $region84
        $region83: #{fwd.1} parent=55 // pred_region
          %440 = dma.done [#allocation11], 8192
        $region84: #{fwd.1} parent=55 // pred_fallthru
          _
        // Predicated region
        $region85: #{fwd.1} parent=55 // pred_check
          %p441 = pneg %p195
        $region86: #{fwd.1} parent=55 // pred_check_branch
          %443 = sbr.rel (%p441) target = $region88
        $region87: #{fwd.1} parent=55 // pred_region
          %445 = dma.done [#allocation14], 1536
        $region88: #{fwd.1} parent=55 // pred_fallthru
          _
        // Predicated region
        $region89: #{fwd.1} parent=55 // pred_check
          %p446 = pneg %p216
        $region90: #{fwd.1} parent=55 // pred_check_branch
          %448 = sbr.rel (%p446) target = $region92
        $region91: #{fwd.1} parent=55 // pred_region
          %450 = dma.done [#allocation14], 384
        $region92: #{fwd.1} parent=55 // pred_fallthru
          _
        %s451 = sand.u32 %s35, 1
        %s452 = scalar_lea.sflag [#allocation3], %s451
        %s453 = sand.u32 %s35, 1
        %s454 = smul.addr %s453, 32
        %s455 = scalar_lea.vmem [#allocation2], %s454
        %p456 = pneg %p48
        %p457 = pneg %p45
        %p458 = pneg %p69
        %p459 = pneg %p66
        %p460 = pneg %p90
        %p461 = pneg %p87
        %p462 = pneg %p111
        %p463 = pneg %p108
        %p464 = pneg %p132
        %p465 = pneg %p129
        %p466 = pneg %p153
        %p467 = pneg %p150
        %p468 = pneg %p174
        %p469 = pneg %p171
        %p470 = pneg %p195
        %p471 = pneg %p192
        %p472 = pneg %p216
        %p473 = pneg %p213
        %p474 = pneg %p242
        %p475 = pneg %p239
        %s476 = sand.u32 %s229, 1
        %s477 = sand.u32 %s229, 1
        %s478 = smul.addr %s477, 24
        %s479 = scalar_lea.vmem [#allocation16], %s478
        %v480 = vld [vmem:[#allocation4] sm:$0xff]
        %v481 = vld [vmem:[#allocation4 + $0x8] sm:$0xff]
        %v482 = vld [vmem:[#allocation4 + $0x10] sm:$0xff]
        %v483 = vld [vmem:[#allocation4 + $0x18] sm:$0xff]
        %v484 = vld [vmem:[#allocation4 + $0x20] sm:$0xff]
        %v485 = vld [vmem:[#allocation4 + $0x28] sm:$0xff]
        %v486 = vld [vmem:[#allocation4 + $0x30] sm:$0xff]
        %v487 = vld [vmem:[#allocation4 + $0x38] sm:$0xff]
        %v488 = vld [vmem:[#allocation4 + $0x40] sm:$0xff]
        %v489 = vld [vmem:[#allocation4 + $0x48] sm:$0xff]
        %v490 = vld [vmem:[#allocation4 + $0x50] sm:$0xff]
        %v491 = vld [vmem:[#allocation4 + $0x58] sm:$0xff]
        %v492 = vld [vmem:[#allocation4 + $0x60] sm:$0xff]
        %v493 = vld [vmem:[#allocation4 + $0x68] sm:$0xff]
        %v494 = vld [vmem:[#allocation4 + $0x70] sm:$0xff]
        %v495 = vld [vmem:[#allocation4 + $0x78] sm:$0xff]
        %v496 = vld [vmem:[#allocation4 + $0x80] sm:$0xff]
        %v497 = vld [vmem:[#allocation4 + $0x88] sm:$0xff]
        %v498 = vld [vmem:[#allocation4 + $0x90] sm:$0xff]
        %v499 = vld [vmem:[#allocation4 + $0x98] sm:$0xff]
        %v500 = vld [vmem:[#allocation4 + $0xa0] sm:$0xff]
        %v501 = vld [vmem:[#allocation4 + $0xa8] sm:$0xff]
        %v502 = vld [vmem:[#allocation4 + $0xb0] sm:$0xff]
        %v503 = vld [vmem:[#allocation4 + $0xb8] sm:$0xff]
        %v504 = vld [vmem:[#allocation4 + $0xc0] sm:$0xff]
        %v505 = vld [vmem:[#allocation4 + $0xc8] sm:$0xff]
        %v506 = vld [vmem:[#allocation4 + $0xd0] sm:$0xff]
        %v507 = vld [vmem:[#allocation4 + $0xd8] sm:$0xff]
        %v508 = vld [vmem:[#allocation4 + $0xe0] sm:$0xff]
        %v509 = vld [vmem:[#allocation4 + $0xe8] sm:$0xff]
        %v510 = vld [vmem:[#allocation4 + $0xf0] sm:$0xff]
        %v511 = vld [vmem:[#allocation4 + $0xf8] sm:$0xff]
        %v512 = vld [vmem:[%s405] sm:$0xff]
        %v513 = vld [vmem:[%s405 + $0x8] sm:$0xff]
        %v514 = vld [vmem:[%s405 + $0x10] sm:$0xff]
        %v515 = vld [vmem:[%s405 + $0x18] sm:$0xff]
        %v516 = vld [vmem:[#allocation6] sm:$0xff]
        %v517 = vld [vmem:[#allocation6 + $0x8] sm:$0xff]
        %v518 = vld [vmem:[#allocation6 + $0x10] sm:$0xff]
        %v519 = vld [vmem:[#allocation6 + $0x18] sm:$0xff]
        %v520 = vld [vmem:[#allocation6 + $0x20] sm:$0xff]
        %v521 = vld [vmem:[#allocation6 + $0x28] sm:$0xff]
        %v522 = vld [vmem:[#allocation6 + $0x30] sm:$0xff]
        %v523 = vld [vmem:[#allocation6 + $0x38] sm:$0xff]
        %v524 = vld [vmem:[#allocation6 + $0x40] sm:$0xff]
        %v525 = vld [vmem:[#allocation6 + $0x48] sm:$0xff]
        %v526 = vld [vmem:[#allocation6 + $0x50] sm:$0xff]
        %v527 = vld [vmem:[#allocation6 + $0x58] sm:$0xff]
        %v528 = vld [vmem:[#allocation6 + $0x60] sm:$0xff]
        %v529 = vld [vmem:[#allocation6 + $0x68] sm:$0xff]
        %v530 = vld [vmem:[#allocation6 + $0x70] sm:$0xff]
        %v531 = vld [vmem:[#allocation6 + $0x78] sm:$0xff]
        %v532 = vld [vmem:[#allocation6 + $0x80] sm:$0xff]
        %v533 = vld [vmem:[#allocation6 + $0x88] sm:$0xff]
        %v534 = vld [vmem:[#allocation6 + $0x90] sm:$0xff]
        %v535 = vld [vmem:[#allocation6 + $0x98] sm:$0xff]
        %v536 = vld [vmem:[#allocation6 + $0xa0] sm:$0xff]
        %v537 = vld [vmem:[#allocation6 + $0xa8] sm:$0xff]
        %v538 = vld [vmem:[#allocation6 + $0xb0] sm:$0xff]
        %v539 = vld [vmem:[#allocation6 + $0xb8] sm:$0xff]
        %v540 = vld [vmem:[#allocation6 + $0xc0] sm:$0xff]
        %v541 = vld [vmem:[#allocation6 + $0xc8] sm:$0xff]
        %v542 = vld [vmem:[#allocation6 + $0xd0] sm:$0xff]
        %v543 = vld [vmem:[#allocation6 + $0xd8] sm:$0xff]
        %v544 = vld [vmem:[#allocation6 + $0xe0] sm:$0xff]
        %v545 = vld [vmem:[#allocation6 + $0xe8] sm:$0xff]
        %v546 = vld [vmem:[#allocation6 + $0xf0] sm:$0xff]
        %v547 = vld [vmem:[#allocation6 + $0xf8] sm:$0xff]
        %549 = vset.pattern.permute.xlu0 0
        %550 = vperm.xlu0 %549, %v516
        %v551 = vpop.permute.xlu0 %550
        %554 = vset.pattern.permute.xlu0 0
        %555 = vperm.xlu0 %554, %v517
        %v556 = vpop.permute.xlu0 %555
        %559 = vset.pattern.permute.xlu0 0
        %560 = vperm.xlu0 %559, %v518
        %v561 = vpop.permute.xlu0 %560
        %564 = vset.pattern.permute.xlu0 0
        %565 = vperm.xlu0 %564, %v519
        %v566 = vpop.permute.xlu0 %565
        %569 = vset.pattern.permute.xlu0 0
        %570 = vperm.xlu0 %569, %v520
        %v571 = vpop.permute.xlu0 %570
        %574 = vset.pattern.permute.xlu0 0
        %575 = vperm.xlu0 %574, %v521
        %v576 = vpop.permute.xlu0 %575
        %579 = vset.pattern.permute.xlu0 0
        %580 = vperm.xlu0 %579, %v522
        %v581 = vpop.permute.xlu0 %580
        %584 = vset.pattern.permute.xlu0 0
        %585 = vperm.xlu0 %584, %v523
        %v586 = vpop.permute.xlu0 %585
        %589 = vset.pattern.permute.xlu0 0
        %590 = vperm.xlu0 %589, %v524
        %v591 = vpop.permute.xlu0 %590
        %594 = vset.pattern.permute.xlu0 0
        %595 = vperm.xlu0 %594, %v525
        %v596 = vpop.permute.xlu0 %595
        %599 = vset.pattern.permute.xlu0 0
        %600 = vperm.xlu0 %599, %v526
        %v601 = vpop.permute.xlu0 %600
        %604 = vset.pattern.permute.xlu0 0
        %605 = vperm.xlu0 %604, %v527
        %v606 = vpop.permute.xlu0 %605
        %609 = vset.pattern.permute.xlu0 0
        %610 = vperm.xlu0 %609, %v528
        %v611 = vpop.permute.xlu0 %610
        %614 = vset.pattern.permute.xlu0 0
        %615 = vperm.xlu0 %614, %v529
        %v616 = vpop.permute.xlu0 %615
        %619 = vset.pattern.permute.xlu0 0
        %620 = vperm.xlu0 %619, %v530
        %v621 = vpop.permute.xlu0 %620
        %624 = vset.pattern.permute.xlu0 0
        %625 = vperm.xlu0 %624, %v531
        %v626 = vpop.permute.xlu0 %625
        %629 = vset.pattern.permute.xlu0 0
        %630 = vperm.xlu0 %629, %v532
        %v631 = vpop.permute.xlu0 %630
        %634 = vset.pattern.permute.xlu0 0
        %635 = vperm.xlu0 %634, %v533
        %v636 = vpop.permute.xlu0 %635
        %639 = vset.pattern.permute.xlu0 0
        %640 = vperm.xlu0 %639, %v534
        %v641 = vpop.permute.xlu0 %640
        %644 = vset.pattern.permute.xlu0 0
        %645 = vperm.xlu0 %644, %v535
        %v646 = vpop.permute.xlu0 %645
        %649 = vset.pattern.permute.xlu0 0
        %650 = vperm.xlu0 %649, %v536
        %v651 = vpop.permute.xlu0 %650
        %654 = vset.pattern.permute.xlu0 0
        %655 = vperm.xlu0 %654, %v537
        %v656 = vpop.permute.xlu0 %655
        %659 = vset.pattern.permute.xlu0 0
        %660 = vperm.xlu0 %659, %v538
        %v661 = vpop.permute.xlu0 %660
        %664 = vset.pattern.permute.xlu0 0
        %665 = vperm.xlu0 %664, %v539
        %v666 = vpop.permute.xlu0 %665
        %669 = vset.pattern.permute.xlu0 0
        %670 = vperm.xlu0 %669, %v540
        %v671 = vpop.permute.xlu0 %670
        %674 = vset.pattern.permute.xlu0 0
        %675 = vperm.xlu0 %674, %v541
        %v676 = vpop.permute.xlu0 %675
        %679 = vset.pattern.permute.xlu0 0
        %680 = vperm.xlu0 %679, %v542
        %v681 = vpop.permute.xlu0 %680
        %684 = vset.pattern.permute.xlu0 0
        %685 = vperm.xlu0 %684, %v543
        %v686 = vpop.permute.xlu0 %685
        %689 = vset.pattern.permute.xlu0 0
        %690 = vperm.xlu0 %689, %v544
        %v691 = vpop.permute.xlu0 %690
        %694 = vset.pattern.permute.xlu0 0
        %695 = vperm.xlu0 %694, %v545
        %v696 = vpop.permute.xlu0 %695
        %699 = vset.pattern.permute.xlu0 0
        %700 = vperm.xlu0 %699, %v546
        %v701 = vpop.permute.xlu0 %700
        %704 = vset.pattern.permute.xlu0 0
        %705 = vperm.xlu0 %704, %v547
        %v706 = vpop.permute.xlu0 %705
        %vm708 = vcmask 261120
        %v710 = vsel %vm708, %v480, 0
        %v713 = vsel %vm708, %v481, 0
        %v716 = vsel %vm708, %v482, 0
        %v719 = vsel %vm708, %v483, 0
        %v722 = vsel %vm708, %v484, 0
        %v725 = vsel %vm708, %v485, 0
        %v728 = vsel %vm708, %v486, 0
        %v731 = vsel %vm708, %v487, 0
        %v734 = vsel %vm708, %v488, 0
        %v737 = vsel %vm708, %v489, 0
        %v740 = vsel %vm708, %v490, 0
        %v743 = vsel %vm708, %v491, 0
        %v746 = vsel %vm708, %v492, 0
        %v749 = vsel %vm708, %v493, 0
        %v752 = vsel %vm708, %v494, 0
        %v755 = vsel %vm708, %v495, 0
        %v758 = vsel %vm708, %v496, 0
        %v761 = vsel %vm708, %v497, 0
        %v764 = vsel %vm708, %v498, 0
        %v767 = vsel %vm708, %v499, 0
        %v770 = vsel %vm708, %v500, 0
        %v773 = vsel %vm708, %v501, 0
        %v776 = vsel %vm708, %v502, 0
        %v779 = vsel %vm708, %v503, 0
        %v782 = vsel %vm708, %v504, 0
        %v785 = vsel %vm708, %v505, 0
        %v788 = vsel %vm708, %v506, 0
        %v791 = vsel %vm708, %v507, 0
        %v794 = vsel %vm708, %v508, 0
        %v797 = vsel %vm708, %v509, 0
        %v800 = vsel %vm708, %v510, 0
        %v803 = vsel %vm708, %v511, 0
        %805 = vmatpush.msra.mxu0 0.0
        %806 = vmatpush.msra.mxu0 0.0
        %807 = vmatpush.msra.mxu0 0.0
        %808 = vmatpush.msra.mxu0 0.0
        %809 = vmatpush.msra.mxu0 0.0
        %810 = vmatpush.msra.mxu0 0.0
        %811 = vmatpush.msra.mxu0 0.0
        %812 = vmatpush.msra.mxu0 0.0
        %813 = vmatpush.msra.mxu0 0.0
        %814 = vmatpush.msra.mxu0 0.0
        %815 = vmatpush.msra.mxu0 0.0
        %816 = vmatpush.msra.mxu0 0.0
        %817 = vmatpush.msra.mxu0 %v515
        %818 = vmatpush.msra.mxu0 %v514
        %819 = vmatpush.msra.mxu0 %v513
        %820 = vmatpush.msra.mxu0 %v512
        %821 = vmatmul.f32.gmra.mxu0 %v710
        %v822 = vpop.f32.mrf.mxu0
        %v823 = vadd.f32 %v551, %v822
        %824 = vmatmul.f32.gmra.mxu0 %v713
        %v825 = vpop.f32.mrf.mxu0
        %v826 = vadd.f32 %v556, %v825
        %827 = vmatmul.f32.gmra.mxu0 %v716
        %v828 = vpop.f32.mrf.mxu0
        %v829 = vadd.f32 %v561, %v828
        %830 = vmatmul.f32.gmra.mxu0 %v719
        %v831 = vpop.f32.mrf.mxu0
        %v832 = vadd.f32 %v566, %v831
        %833 = vmatmul.f32.gmra.mxu0 %v722
        %v834 = vpop.f32.mrf.mxu0
        %v835 = vadd.f32 %v571, %v834
        %836 = vmatmul.f32.gmra.mxu0 %v725
        %v837 = vpop.f32.mrf.mxu0
        %v838 = vadd.f32 %v576, %v837
        %839 = vmatmul.f32.gmra.mxu0 %v728
        %v840 = vpop.f32.mrf.mxu0
        %v841 = vadd.f32 %v581, %v840
        %842 = vmatmul.f32.gmra.mxu0 %v731
        %v843 = vpop.f32.mrf.mxu0
        %v844 = vadd.f32 %v586, %v843
        %845 = vmatmul.f32.gmra.mxu0 %v734
        %v846 = vpop.f32.mrf.mxu0
        %v847 = vadd.f32 %v591, %v846
        %848 = vmatmul.f32.gmra.mxu0 %v737
        %v849 = vpop.f32.mrf.mxu0
        %v850 = vadd.f32 %v596, %v849
        %851 = vmatmul.f32.gmra.mxu0 %v740
        %v852 = vpop.f32.mrf.mxu0
        %v853 = vadd.f32 %v601, %v852
        %854 = vmatmul.f32.gmra.mxu0 %v743
        %v855 = vpop.f32.mrf.mxu0
        %v856 = vadd.f32 %v606, %v855
        %857 = vmatmul.f32.gmra.mxu0 %v746
        %v858 = vpop.f32.mrf.mxu0
        %v859 = vadd.f32 %v611, %v858
        %860 = vmatmul.f32.gmra.mxu0 %v749
        %v861 = vpop.f32.mrf.mxu0
        %v862 = vadd.f32 %v616, %v861
        %863 = vmatmul.f32.gmra.mxu0 %v752
        %v864 = vpop.f32.mrf.mxu0
        %v865 = vadd.f32 %v621, %v864
        %866 = vmatmul.f32.gmra.mxu0 %v755
        %v867 = vpop.f32.mrf.mxu0
        %v868 = vadd.f32 %v626, %v867
        %869 = vmatmul.f32.gmra.mxu0 %v758
        %v870 = vpop.f32.mrf.mxu0
        %v871 = vadd.f32 %v631, %v870
        %872 = vmatmul.f32.gmra.mxu0 %v761
        %v873 = vpop.f32.mrf.mxu0
        %v874 = vadd.f32 %v636, %v873
        %875 = vmatmul.f32.gmra.mxu0 %v764
        %v876 = vpop.f32.mrf.mxu0
        %v877 = vadd.f32 %v641, %v876
        %878 = vmatmul.f32.gmra.mxu0 %v767
        %v879 = vpop.f32.mrf.mxu0
        %v880 = vadd.f32 %v646, %v879
        %881 = vmatmul.f32.gmra.mxu0 %v770
        %v882 = vpop.f32.mrf.mxu0
        %v883 = vadd.f32 %v651, %v882
        %884 = vmatmul.f32.gmra.mxu0 %v773
        %v885 = vpop.f32.mrf.mxu0
        %v886 = vadd.f32 %v656, %v885
        %887 = vmatmul.f32.gmra.mxu0 %v776
        %v888 = vpop.f32.mrf.mxu0
        %v889 = vadd.f32 %v661, %v888
        %890 = vmatmul.f32.gmra.mxu0 %v779
        %v891 = vpop.f32.mrf.mxu0
        %v892 = vadd.f32 %v666, %v891
        %893 = vmatmul.f32.gmra.mxu0 %v782
        %v894 = vpop.f32.mrf.mxu0
        %v895 = vadd.f32 %v671, %v894
        %896 = vmatmul.f32.gmra.mxu0 %v785
        %v897 = vpop.f32.mrf.mxu0
        %v898 = vadd.f32 %v676, %v897
        %899 = vmatmul.f32.gmra.mxu0 %v788
        %v900 = vpop.f32.mrf.mxu0
        %v901 = vadd.f32 %v681, %v900
        %902 = vmatmul.f32.gmra.mxu0 %v791
        %v903 = vpop.f32.mrf.mxu0
        %v904 = vadd.f32 %v686, %v903
        %905 = vmatmul.f32.gmra.mxu0 %v794
        %v906 = vpop.f32.mrf.mxu0
        %v907 = vadd.f32 %v691, %v906
        %908 = vmatmul.f32.gmra.mxu0 %v797
        %v909 = vpop.f32.mrf.mxu0
        %v910 = vadd.f32 %v696, %v909
        %911 = vmatmul.f32.gmra.mxu0 %v800
        %v912 = vpop.f32.mrf.mxu0
        %v913 = vadd.f32 %v701, %v912
        %914 = vmatmul.f32.gmra.mxu0 %v803
        %v915 = vpop.f32.mrf.mxu0
        %v916 = vadd.f32 %v706, %v915
        %917 = vdwg.mxu0
        %v918 = vmax.f32 %v823, 0.0
        %v919 = vmax.f32 %v826, 0.0
        %v920 = vmax.f32 %v829, 0.0
        %v921 = vmax.f32 %v832, 0.0
        %v922 = vmax.f32 %v835, 0.0
        %v923 = vmax.f32 %v838, 0.0
        %v924 = vmax.f32 %v841, 0.0
        %v925 = vmax.f32 %v844, 0.0
        %v926 = vmax.f32 %v847, 0.0
        %v927 = vmax.f32 %v850, 0.0
        %v928 = vmax.f32 %v853, 0.0
        %v929 = vmax.f32 %v856, 0.0
        %v930 = vmax.f32 %v859, 0.0
        %v931 = vmax.f32 %v862, 0.0
        %v932 = vmax.f32 %v865, 0.0
        %v933 = vmax.f32 %v868, 0.0
        %v934 = vmax.f32 %v871, 0.0
        %v935 = vmax.f32 %v874, 0.0
        %v936 = vmax.f32 %v877, 0.0
        %v937 = vmax.f32 %v880, 0.0
        %v938 = vmax.f32 %v883, 0.0
        %v939 = vmax.f32 %v886, 0.0
        %v940 = vmax.f32 %v889, 0.0
        %v941 = vmax.f32 %v892, 0.0
        %v942 = vmax.f32 %v895, 0.0
        %v943 = vmax.f32 %v898, 0.0
        %v944 = vmax.f32 %v901, 0.0
        %v945 = vmax.f32 %v904, 0.0
        %v946 = vmax.f32 %v907, 0.0
        %v947 = vmax.f32 %v910, 0.0
        %v948 = vmax.f32 %v913, 0.0
        %v949 = vmax.f32 %v916, 0.0
        %v950 = vld [vmem:[#allocation7] sm:$0xff]
        %v951 = vld [vmem:[#allocation7 + $0x8] sm:$0xff]
        %v952 = vld [vmem:[#allocation7 + $0x10] sm:$0xff]
        %v953 = vld [vmem:[#allocation7 + $0x18] sm:$0xff]
        %v954 = vld [vmem:[#allocation7 + $0x20] sm:$0xff]
        %v955 = vld [vmem:[#allocation7 + $0x28] sm:$0xff]
        %v956 = vld [vmem:[#allocation7 + $0x30] sm:$0xff]
        %v957 = vld [vmem:[#allocation7 + $0x38] sm:$0xff]
        %v958 = vld [vmem:[#allocation7 + $0x40] sm:$0xff]
        %v959 = vld [vmem:[#allocation7 + $0x48] sm:$0xff]
        %v960 = vld [vmem:[#allocation7 + $0x50] sm:$0xff]
        %v961 = vld [vmem:[#allocation7 + $0x58] sm:$0xff]
        %v962 = vld [vmem:[#allocation7 + $0x60] sm:$0xff]
        %v963 = vld [vmem:[#allocation7 + $0x68] sm:$0xff]
        %v964 = vld [vmem:[#allocation7 + $0x70] sm:$0xff]
        %v965 = vld [vmem:[#allocation7 + $0x78] sm:$0xff]
        %v966 = vld [vmem:[#allocation7 + $0x80] sm:$0xff]
        %v967 = vld [vmem:[#allocation7 + $0x88] sm:$0xff]
        %v968 = vld [vmem:[#allocation7 + $0x90] sm:$0xff]
        %v969 = vld [vmem:[#allocation7 + $0x98] sm:$0xff]
        %v970 = vld [vmem:[#allocation7 + $0xa0] sm:$0xff]
        %v971 = vld [vmem:[#allocation7 + $0xa8] sm:$0xff]
        %v972 = vld [vmem:[#allocation7 + $0xb0] sm:$0xff]
        %v973 = vld [vmem:[#allocation7 + $0xb8] sm:$0xff]
        %v974 = vld [vmem:[#allocation7 + $0xc0] sm:$0xff]
        %v975 = vld [vmem:[#allocation7 + $0xc8] sm:$0xff]
        %v976 = vld [vmem:[#allocation7 + $0xd0] sm:$0xff]
        %v977 = vld [vmem:[#allocation7 + $0xd8] sm:$0xff]
        %v978 = vld [vmem:[#allocation7 + $0xe0] sm:$0xff]
        %v979 = vld [vmem:[#allocation7 + $0xe8] sm:$0xff]
        %v980 = vld [vmem:[#allocation7 + $0xf0] sm:$0xff]
        %v981 = vld [vmem:[#allocation7 + $0xf8] sm:$0xff]
        %v982 = vld [vmem:[#allocation7 + $0x100] sm:$0xff]
        %v983 = vld [vmem:[#allocation7 + $0x108] sm:$0xff]
        %v984 = vld [vmem:[#allocation7 + $0x110] sm:$0xff]
        %v985 = vld [vmem:[#allocation7 + $0x118] sm:$0xff]
        %v986 = vld [vmem:[#allocation7 + $0x120] sm:$0xff]
        %v987 = vld [vmem:[#allocation7 + $0x128] sm:$0xff]
        %v988 = vld [vmem:[#allocation7 + $0x130] sm:$0xff]
        %v989 = vld [vmem:[#allocation7 + $0x138] sm:$0xff]
        %v990 = vld [vmem:[#allocation7 + $0x140] sm:$0xff]
        %v991 = vld [vmem:[#allocation7 + $0x148] sm:$0xff]
        %v992 = vld [vmem:[#allocation7 + $0x150] sm:$0xff]
        %v993 = vld [vmem:[#allocation7 + $0x158] sm:$0xff]
        %v994 = vld [vmem:[#allocation7 + $0x160] sm:$0xff]
        %v995 = vld [vmem:[#allocation7 + $0x168] sm:$0xff]
        %v996 = vld [vmem:[#allocation7 + $0x170] sm:$0xff]
        %v997 = vld [vmem:[#allocation7 + $0x178] sm:$0xff]
        %v998 = vld [vmem:[#allocation7 + $0x180] sm:$0xff]
        %v999 = vld [vmem:[#allocation7 + $0x188] sm:$0xff]
        %v1000 = vld [vmem:[#allocation7 + $0x190] sm:$0xff]
        %v1001 = vld [vmem:[#allocation7 + $0x198] sm:$0xff]
        %v1002 = vld [vmem:[#allocation7 + $0x1a0] sm:$0xff]
        %v1003 = vld [vmem:[#allocation7 + $0x1a8] sm:$0xff]
        %v1004 = vld [vmem:[#allocation7 + $0x1b0] sm:$0xff]
        %v1005 = vld [vmem:[#allocation7 + $0x1b8] sm:$0xff]
        %v1006 = vld [vmem:[#allocation7 + $0x1c0] sm:$0xff]
        %v1007 = vld [vmem:[#allocation7 + $0x1c8] sm:$0xff]
        %v1008 = vld [vmem:[#allocation7 + $0x1d0] sm:$0xff]
        %v1009 = vld [vmem:[#allocation7 + $0x1d8] sm:$0xff]
        %v1010 = vld [vmem:[#allocation7 + $0x1e0] sm:$0xff]
        %v1011 = vld [vmem:[#allocation7 + $0x1e8] sm:$0xff]
        %v1012 = vld [vmem:[#allocation7 + $0x1f0] sm:$0xff]
        %v1013 = vld [vmem:[#allocation7 + $0x1f8] sm:$0xff]
        %v1014 = vld [vmem:[#allocation7 + $0x200] sm:$0xff]
        %v1015 = vld [vmem:[#allocation7 + $0x208] sm:$0xff]
        %v1016 = vld [vmem:[#allocation7 + $0x210] sm:$0xff]
        %v1017 = vld [vmem:[#allocation7 + $0x218] sm:$0xff]
        %v1018 = vld [vmem:[#allocation7 + $0x220] sm:$0xff]
        %v1019 = vld [vmem:[#allocation7 + $0x228] sm:$0xff]
        %v1020 = vld [vmem:[#allocation7 + $0x230] sm:$0xff]
        %v1021 = vld [vmem:[#allocation7 + $0x238] sm:$0xff]
        %v1022 = vld [vmem:[#allocation7 + $0x240] sm:$0xff]
        %v1023 = vld [vmem:[#allocation7 + $0x248] sm:$0xff]
        %v1024 = vld [vmem:[#allocation7 + $0x250] sm:$0xff]
        %v1025 = vld [vmem:[#allocation7 + $0x258] sm:$0xff]
        %v1026 = vld [vmem:[#allocation7 + $0x260] sm:$0xff]
        %v1027 = vld [vmem:[#allocation7 + $0x268] sm:$0xff]
        %v1028 = vld [vmem:[#allocation7 + $0x270] sm:$0xff]
        %v1029 = vld [vmem:[#allocation7 + $0x278] sm:$0xff]
        %v1030 = vld [vmem:[#allocation7 + $0x280] sm:$0xff]
        %v1031 = vld [vmem:[#allocation7 + $0x288] sm:$0xff]
        %v1032 = vld [vmem:[#allocation7 + $0x290] sm:$0xff]
        %v1033 = vld [vmem:[#allocation7 + $0x298] sm:$0xff]
        %v1034 = vld [vmem:[#allocation7 + $0x2a0] sm:$0xff]
        %v1035 = vld [vmem:[#allocation7 + $0x2a8] sm:$0xff]
        %v1036 = vld [vmem:[#allocation7 + $0x2b0] sm:$0xff]
        %v1037 = vld [vmem:[#allocation7 + $0x2b8] sm:$0xff]
        %v1038 = vld [vmem:[#allocation7 + $0x2c0] sm:$0xff]
        %v1039 = vld [vmem:[#allocation7 + $0x2c8] sm:$0xff]
        %v1040 = vld [vmem:[#allocation7 + $0x2d0] sm:$0xff]
        %v1041 = vld [vmem:[#allocation7 + $0x2d8] sm:$0xff]
        %v1042 = vld [vmem:[#allocation7 + $0x2e0] sm:$0xff]
        %v1043 = vld [vmem:[#allocation7 + $0x2e8] sm:$0xff]
        %v1044 = vld [vmem:[#allocation7 + $0x2f0] sm:$0xff]
        %v1045 = vld [vmem:[#allocation7 + $0x2f8] sm:$0xff]
        %v1046 = vld [vmem:[#allocation7 + $0x300] sm:$0xff]
        %v1047 = vld [vmem:[#allocation7 + $0x308] sm:$0xff]
        %v1048 = vld [vmem:[#allocation7 + $0x310] sm:$0xff]
        %v1049 = vld [vmem:[#allocation7 + $0x318] sm:$0xff]
        %v1050 = vld [vmem:[#allocation7 + $0x320] sm:$0xff]
        %v1051 = vld [vmem:[#allocation7 + $0x328] sm:$0xff]
        %v1052 = vld [vmem:[#allocation7 + $0x330] sm:$0xff]
        %v1053 = vld [vmem:[#allocation7 + $0x338] sm:$0xff]
        %v1054 = vld [vmem:[#allocation7 + $0x340] sm:$0xff]
        %v1055 = vld [vmem:[#allocation7 + $0x348] sm:$0xff]
        %v1056 = vld [vmem:[#allocation7 + $0x350] sm:$0xff]
        %v1057 = vld [vmem:[#allocation7 + $0x358] sm:$0xff]
        %v1058 = vld [vmem:[#allocation7 + $0x360] sm:$0xff]
        %v1059 = vld [vmem:[#allocation7 + $0x368] sm:$0xff]
        %v1060 = vld [vmem:[#allocation7 + $0x370] sm:$0xff]
        %v1061 = vld [vmem:[#allocation7 + $0x378] sm:$0xff]
        %v1062 = vld [vmem:[#allocation7 + $0x380] sm:$0xff]
        %v1063 = vld [vmem:[#allocation7 + $0x388] sm:$0xff]
        %v1064 = vld [vmem:[#allocation7 + $0x390] sm:$0xff]
        %v1065 = vld [vmem:[#allocation7 + $0x398] sm:$0xff]
        %v1066 = vld [vmem:[#allocation7 + $0x3a0] sm:$0xff]
        %v1067 = vld [vmem:[#allocation7 + $0x3a8] sm:$0xff]
        %v1068 = vld [vmem:[#allocation7 + $0x3b0] sm:$0xff]
        %v1069 = vld [vmem:[#allocation7 + $0x3b8] sm:$0xff]
        %v1070 = vld [vmem:[#allocation7 + $0x3c0] sm:$0xff]
        %v1071 = vld [vmem:[#allocation7 + $0x3c8] sm:$0xff]
        %v1072 = vld [vmem:[#allocation7 + $0x3d0] sm:$0xff]
        %v1073 = vld [vmem:[#allocation7 + $0x3d8] sm:$0xff]
        %v1074 = vld [vmem:[#allocation7 + $0x3e0] sm:$0xff]
        %v1075 = vld [vmem:[#allocation7 + $0x3e8] sm:$0xff]
        %v1076 = vld [vmem:[#allocation7 + $0x3f0] sm:$0xff]
        %v1077 = vld [vmem:[#allocation7 + $0x3f8] sm:$0xff]
        %v1078 = vld [vmem:[#allocation7 + $0x400] sm:$0xff]
        %v1079 = vld [vmem:[#allocation7 + $0x408] sm:$0xff]
        %v1080 = vld [vmem:[#allocation7 + $0x410] sm:$0xff]
        %v1081 = vld [vmem:[#allocation7 + $0x418] sm:$0xff]
        %v1082 = vld [vmem:[#allocation7 + $0x420] sm:$0xff]
        %v1083 = vld [vmem:[#allocation7 + $0x428] sm:$0xff]
        %v1084 = vld [vmem:[#allocation7 + $0x430] sm:$0xff]
        %v1085 = vld [vmem:[#allocation7 + $0x438] sm:$0xff]
        %v1086 = vld [vmem:[#allocation7 + $0x440] sm:$0xff]
        %v1087 = vld [vmem:[#allocation7 + $0x448] sm:$0xff]
        %v1088 = vld [vmem:[#allocation7 + $0x450] sm:$0xff]
        %v1089 = vld [vmem:[#allocation7 + $0x458] sm:$0xff]
        %v1090 = vld [vmem:[#allocation7 + $0x460] sm:$0xff]
        %v1091 = vld [vmem:[#allocation7 + $0x468] sm:$0xff]
        %v1092 = vld [vmem:[#allocation7 + $0x470] sm:$0xff]
        %v1093 = vld [vmem:[#allocation7 + $0x478] sm:$0xff]
        %v1094 = vld [vmem:[#allocation7 + $0x480] sm:$0xff]
        %v1095 = vld [vmem:[#allocation7 + $0x488] sm:$0xff]
        %v1096 = vld [vmem:[#allocation7 + $0x490] sm:$0xff]
        %v1097 = vld [vmem:[#allocation7 + $0x498] sm:$0xff]
        %v1098 = vld [vmem:[#allocation7 + $0x4a0] sm:$0xff]
        %v1099 = vld [vmem:[#allocation7 + $0x4a8] sm:$0xff]
        %v1100 = vld [vmem:[#allocation7 + $0x4b0] sm:$0xff]
        %v1101 = vld [vmem:[#allocation7 + $0x4b8] sm:$0xff]
        %v1102 = vld [vmem:[#allocation7 + $0x4c0] sm:$0xff]
        %v1103 = vld [vmem:[#allocation7 + $0x4c8] sm:$0xff]
        %v1104 = vld [vmem:[#allocation7 + $0x4d0] sm:$0xff]
        %v1105 = vld [vmem:[#allocation7 + $0x4d8] sm:$0xff]
        %v1106 = vld [vmem:[#allocation7 + $0x4e0] sm:$0xff]
        %v1107 = vld [vmem:[#allocation7 + $0x4e8] sm:$0xff]
        %v1108 = vld [vmem:[#allocation7 + $0x4f0] sm:$0xff]
        %v1109 = vld [vmem:[#allocation7 + $0x4f8] sm:$0xff]
        %v1110 = vld [vmem:[#allocation7 + $0x500] sm:$0xff]
        %v1111 = vld [vmem:[#allocation7 + $0x508] sm:$0xff]
        %v1112 = vld [vmem:[#allocation7 + $0x510] sm:$0xff]
        %v1113 = vld [vmem:[#allocation7 + $0x518] sm:$0xff]
        %v1114 = vld [vmem:[#allocation7 + $0x520] sm:$0xff]
        %v1115 = vld [vmem:[#allocation7 + $0x528] sm:$0xff]
        %v1116 = vld [vmem:[#allocation7 + $0x530] sm:$0xff]
        %v1117 = vld [vmem:[#allocation7 + $0x538] sm:$0xff]
        %v1118 = vld [vmem:[#allocation7 + $0x540] sm:$0xff]
        %v1119 = vld [vmem:[#allocation7 + $0x548] sm:$0xff]
        %v1120 = vld [vmem:[#allocation7 + $0x550] sm:$0xff]
        %v1121 = vld [vmem:[#allocation7 + $0x558] sm:$0xff]
        %v1122 = vld [vmem:[#allocation7 + $0x560] sm:$0xff]
        %v1123 = vld [vmem:[#allocation7 + $0x568] sm:$0xff]
        %v1124 = vld [vmem:[#allocation7 + $0x570] sm:$0xff]
        %v1125 = vld [vmem:[#allocation7 + $0x578] sm:$0xff]
        %v1126 = vld [vmem:[#allocation7 + $0x580] sm:$0xff]
        %v1127 = vld [vmem:[#allocation7 + $0x588] sm:$0xff]
        %v1128 = vld [vmem:[#allocation7 + $0x590] sm:$0xff]
        %v1129 = vld [vmem:[#allocation7 + $0x598] sm:$0xff]
        %v1130 = vld [vmem:[#allocation7 + $0x5a0] sm:$0xff]
        %v1131 = vld [vmem:[#allocation7 + $0x5a8] sm:$0xff]
        %v1132 = vld [vmem:[#allocation7 + $0x5b0] sm:$0xff]
        %v1133 = vld [vmem:[#allocation7 + $0x5b8] sm:$0xff]
        %v1134 = vld [vmem:[#allocation7 + $0x5c0] sm:$0xff]
        %v1135 = vld [vmem:[#allocation7 + $0x5c8] sm:$0xff]
        %v1136 = vld [vmem:[#allocation7 + $0x5d0] sm:$0xff]
        %v1137 = vld [vmem:[#allocation7 + $0x5d8] sm:$0xff]
        %v1138 = vld [vmem:[#allocation7 + $0x5e0] sm:$0xff]
        %v1139 = vld [vmem:[#allocation7 + $0x5e8] sm:$0xff]
        %v1140 = vld [vmem:[#allocation7 + $0x5f0] sm:$0xff]
        %v1141 = vld [vmem:[#allocation7 + $0x5f8] sm:$0xff]
        %v1142 = vld [vmem:[#allocation7 + $0x600] sm:$0xff]
        %v1143 = vld [vmem:[#allocation7 + $0x608] sm:$0xff]
        %v1144 = vld [vmem:[#allocation7 + $0x610] sm:$0xff]
        %v1145 = vld [vmem:[#allocation7 + $0x618] sm:$0xff]
        %v1146 = vld [vmem:[#allocation7 + $0x620] sm:$0xff]
        %v1147 = vld [vmem:[#allocation7 + $0x628] sm:$0xff]
        %v1148 = vld [vmem:[#allocation7 + $0x630] sm:$0xff]
        %v1149 = vld [vmem:[#allocation7 + $0x638] sm:$0xff]
        %v1150 = vld [vmem:[#allocation7 + $0x640] sm:$0xff]
        %v1151 = vld [vmem:[#allocation7 + $0x648] sm:$0xff]
        %v1152 = vld [vmem:[#allocation7 + $0x650] sm:$0xff]
        %v1153 = vld [vmem:[#allocation7 + $0x658] sm:$0xff]
        %v1154 = vld [vmem:[#allocation7 + $0x660] sm:$0xff]
        %v1155 = vld [vmem:[#allocation7 + $0x668] sm:$0xff]
        %v1156 = vld [vmem:[#allocation7 + $0x670] sm:$0xff]
        %v1157 = vld [vmem:[#allocation7 + $0x678] sm:$0xff]
        %v1158 = vld [vmem:[#allocation7 + $0x680] sm:$0xff]
        %v1159 = vld [vmem:[#allocation7 + $0x688] sm:$0xff]
        %v1160 = vld [vmem:[#allocation7 + $0x690] sm:$0xff]
        %v1161 = vld [vmem:[#allocation7 + $0x698] sm:$0xff]
        %v1162 = vld [vmem:[#allocation7 + $0x6a0] sm:$0xff]
        %v1163 = vld [vmem:[#allocation7 + $0x6a8] sm:$0xff]
        %v1164 = vld [vmem:[#allocation7 + $0x6b0] sm:$0xff]
        %v1165 = vld [vmem:[#allocation7 + $0x6b8] sm:$0xff]
        %v1166 = vld [vmem:[#allocation7 + $0x6c0] sm:$0xff]
        %v1167 = vld [vmem:[#allocation7 + $0x6c8] sm:$0xff]
        %v1168 = vld [vmem:[#allocation7 + $0x6d0] sm:$0xff]
        %v1169 = vld [vmem:[#allocation7 + $0x6d8] sm:$0xff]
        %v1170 = vld [vmem:[#allocation7 + $0x6e0] sm:$0xff]
        %v1171 = vld [vmem:[#allocation7 + $0x6e8] sm:$0xff]
        %v1172 = vld [vmem:[#allocation7 + $0x6f0] sm:$0xff]
        %v1173 = vld [vmem:[#allocation7 + $0x6f8] sm:$0xff]
        %v1174 = vld [vmem:[#allocation7 + $0x700] sm:$0xff]
        %v1175 = vld [vmem:[#allocation7 + $0x708] sm:$0xff]
        %v1176 = vld [vmem:[#allocation7 + $0x710] sm:$0xff]
        %v1177 = vld [vmem:[#allocation7 + $0x718] sm:$0xff]
        %v1178 = vld [vmem:[#allocation7 + $0x720] sm:$0xff]
        %v1179 = vld [vmem:[#allocation7 + $0x728] sm:$0xff]
        %v1180 = vld [vmem:[#allocation7 + $0x730] sm:$0xff]
        %v1181 = vld [vmem:[#allocation7 + $0x738] sm:$0xff]
        %v1182 = vld [vmem:[#allocation7 + $0x740] sm:$0xff]
        %v1183 = vld [vmem:[#allocation7 + $0x748] sm:$0xff]
        %v1184 = vld [vmem:[#allocation7 + $0x750] sm:$0xff]
        %v1185 = vld [vmem:[#allocation7 + $0x758] sm:$0xff]
        %v1186 = vld [vmem:[#allocation7 + $0x760] sm:$0xff]
        %v1187 = vld [vmem:[#allocation7 + $0x768] sm:$0xff]
        %v1188 = vld [vmem:[#allocation7 + $0x770] sm:$0xff]
        %v1189 = vld [vmem:[#allocation7 + $0x778] sm:$0xff]
        %v1190 = vld [vmem:[#allocation7 + $0x780] sm:$0xff]
        %v1191 = vld [vmem:[#allocation7 + $0x788] sm:$0xff]
        %v1192 = vld [vmem:[#allocation7 + $0x790] sm:$0xff]
        %v1193 = vld [vmem:[#allocation7 + $0x798] sm:$0xff]
        %v1194 = vld [vmem:[#allocation7 + $0x7a0] sm:$0xff]
        %v1195 = vld [vmem:[#allocation7 + $0x7a8] sm:$0xff]
        %v1196 = vld [vmem:[#allocation7 + $0x7b0] sm:$0xff]
        %v1197 = vld [vmem:[#allocation7 + $0x7b8] sm:$0xff]
        %v1198 = vld [vmem:[#allocation7 + $0x7c0] sm:$0xff]
        %v1199 = vld [vmem:[#allocation7 + $0x7c8] sm:$0xff]
        %v1200 = vld [vmem:[#allocation7 + $0x7d0] sm:$0xff]
        %v1201 = vld [vmem:[#allocation7 + $0x7d8] sm:$0xff]
        %v1202 = vld [vmem:[#allocation7 + $0x7e0] sm:$0xff]
        %v1203 = vld [vmem:[#allocation7 + $0x7e8] sm:$0xff]
        %v1204 = vld [vmem:[#allocation7 + $0x7f0] sm:$0xff]
        %v1205 = vld [vmem:[#allocation7 + $0x7f8] sm:$0xff]
        %v1206 = vld [vmem:[#allocation9] sm:$0xff]
        %v1207 = vld [vmem:[#allocation9 + $0x8] sm:$0xff]
        %v1208 = vld [vmem:[#allocation9 + $0x10] sm:$0xff]
        %v1209 = vld [vmem:[#allocation9 + $0x18] sm:$0xff]
        %v1210 = vld [vmem:[#allocation9 + $0x20] sm:$0xff]
        %v1211 = vld [vmem:[#allocation9 + $0x28] sm:$0xff]
        %v1212 = vld [vmem:[#allocation9 + $0x30] sm:$0xff]
        %v1213 = vld [vmem:[#allocation9 + $0x38] sm:$0xff]
        %v1214 = vld [vmem:[#allocation9 + $0x40] sm:$0xff]
        %v1215 = vld [vmem:[#allocation9 + $0x48] sm:$0xff]
        %v1216 = vld [vmem:[#allocation9 + $0x50] sm:$0xff]
        %v1217 = vld [vmem:[#allocation9 + $0x58] sm:$0xff]
        %v1218 = vld [vmem:[#allocation9 + $0x60] sm:$0xff]
        %v1219 = vld [vmem:[#allocation9 + $0x68] sm:$0xff]
        %v1220 = vld [vmem:[#allocation9 + $0x70] sm:$0xff]
        %v1221 = vld [vmem:[#allocation9 + $0x78] sm:$0xff]
        %v1222 = vld [vmem:[#allocation9 + $0x80] sm:$0xff]
        %v1223 = vld [vmem:[#allocation9 + $0x88] sm:$0xff]
        %v1224 = vld [vmem:[#allocation9 + $0x90] sm:$0xff]
        %v1225 = vld [vmem:[#allocation9 + $0x98] sm:$0xff]
        %v1226 = vld [vmem:[#allocation9 + $0xa0] sm:$0xff]
        %v1227 = vld [vmem:[#allocation9 + $0xa8] sm:$0xff]
        %v1228 = vld [vmem:[#allocation9 + $0xb0] sm:$0xff]
        %v1229 = vld [vmem:[#allocation9 + $0xb8] sm:$0xff]
        %v1230 = vld [vmem:[#allocation9 + $0xc0] sm:$0xff]
        %v1231 = vld [vmem:[#allocation9 + $0xc8] sm:$0xff]
        %v1232 = vld [vmem:[#allocation9 + $0xd0] sm:$0xff]
        %v1233 = vld [vmem:[#allocation9 + $0xd8] sm:$0xff]
        %v1234 = vld [vmem:[#allocation9 + $0xe0] sm:$0xff]
        %v1235 = vld [vmem:[#allocation9 + $0xe8] sm:$0xff]
        %v1236 = vld [vmem:[#allocation9 + $0xf0] sm:$0xff]
        %v1237 = vld [vmem:[#allocation9 + $0xf8] sm:$0xff]
        %v1238 = vld [vmem:[#allocation9 + $0x100] sm:$0xff]
        %v1239 = vld [vmem:[#allocation9 + $0x108] sm:$0xff]
        %v1240 = vld [vmem:[#allocation9 + $0x110] sm:$0xff]
        %v1241 = vld [vmem:[#allocation9 + $0x118] sm:$0xff]
        %v1242 = vld [vmem:[#allocation9 + $0x120] sm:$0xff]
        %v1243 = vld [vmem:[#allocation9 + $0x128] sm:$0xff]
        %v1244 = vld [vmem:[#allocation9 + $0x130] sm:$0xff]
        %v1245 = vld [vmem:[#allocation9 + $0x138] sm:$0xff]
        %v1246 = vld [vmem:[#allocation9 + $0x140] sm:$0xff]
        %v1247 = vld [vmem:[#allocation9 + $0x148] sm:$0xff]
        %v1248 = vld [vmem:[#allocation9 + $0x150] sm:$0xff]
        %v1249 = vld [vmem:[#allocation9 + $0x158] sm:$0xff]
        %v1250 = vld [vmem:[#allocation9 + $0x160] sm:$0xff]
        %v1251 = vld [vmem:[#allocation9 + $0x168] sm:$0xff]
        %v1252 = vld [vmem:[#allocation9 + $0x170] sm:$0xff]
        %v1253 = vld [vmem:[#allocation9 + $0x178] sm:$0xff]
        %v1254 = vld [vmem:[#allocation9 + $0x180] sm:$0xff]
        %v1255 = vld [vmem:[#allocation9 + $0x188] sm:$0xff]
        %v1256 = vld [vmem:[#allocation9 + $0x190] sm:$0xff]
        %v1257 = vld [vmem:[#allocation9 + $0x198] sm:$0xff]
        %v1258 = vld [vmem:[#allocation9 + $0x1a0] sm:$0xff]
        %v1259 = vld [vmem:[#allocation9 + $0x1a8] sm:$0xff]
        %v1260 = vld [vmem:[#allocation9 + $0x1b0] sm:$0xff]
        %v1261 = vld [vmem:[#allocation9 + $0x1b8] sm:$0xff]
        %v1262 = vld [vmem:[#allocation9 + $0x1c0] sm:$0xff]
        %v1263 = vld [vmem:[#allocation9 + $0x1c8] sm:$0xff]
        %v1264 = vld [vmem:[#allocation9 + $0x1d0] sm:$0xff]
        %v1265 = vld [vmem:[#allocation9 + $0x1d8] sm:$0xff]
        %v1266 = vld [vmem:[#allocation9 + $0x1e0] sm:$0xff]
        %v1267 = vld [vmem:[#allocation9 + $0x1e8] sm:$0xff]
        %v1268 = vld [vmem:[#allocation9 + $0x1f0] sm:$0xff]
        %v1269 = vld [vmem:[#allocation9 + $0x1f8] sm:$0xff]
        %v1270 = vld [vmem:[#allocation9 + $0x200] sm:$0xff]
        %v1271 = vld [vmem:[#allocation9 + $0x208] sm:$0xff]
        %v1272 = vld [vmem:[#allocation9 + $0x210] sm:$0xff]
        %v1273 = vld [vmem:[#allocation9 + $0x218] sm:$0xff]
        %v1274 = vld [vmem:[#allocation9 + $0x220] sm:$0xff]
        %v1275 = vld [vmem:[#allocation9 + $0x228] sm:$0xff]
        %v1276 = vld [vmem:[#allocation9 + $0x230] sm:$0xff]
        %v1277 = vld [vmem:[#allocation9 + $0x238] sm:$0xff]
        %v1278 = vld [vmem:[#allocation9 + $0x240] sm:$0xff]
        %v1279 = vld [vmem:[#allocation9 + $0x248] sm:$0xff]
        %v1280 = vld [vmem:[#allocation9 + $0x250] sm:$0xff]
        %v1281 = vld [vmem:[#allocation9 + $0x258] sm:$0xff]
        %v1282 = vld [vmem:[#allocation9 + $0x260] sm:$0xff]
        %v1283 = vld [vmem:[#allocation9 + $0x268] sm:$0xff]
        %v1284 = vld [vmem:[#allocation9 + $0x270] sm:$0xff]
        %v1285 = vld [vmem:[#allocation9 + $0x278] sm:$0xff]
        %v1286 = vld [vmem:[#allocation9 + $0x280] sm:$0xff]
        %v1287 = vld [vmem:[#allocation9 + $0x288] sm:$0xff]
        %v1288 = vld [vmem:[#allocation9 + $0x290] sm:$0xff]
        %v1289 = vld [vmem:[#allocation9 + $0x298] sm:$0xff]
        %v1290 = vld [vmem:[#allocation9 + $0x2a0] sm:$0xff]
        %v1291 = vld [vmem:[#allocation9 + $0x2a8] sm:$0xff]
        %v1292 = vld [vmem:[#allocation9 + $0x2b0] sm:$0xff]
        %v1293 = vld [vmem:[#allocation9 + $0x2b8] sm:$0xff]
        %v1294 = vld [vmem:[#allocation9 + $0x2c0] sm:$0xff]
        %v1295 = vld [vmem:[#allocation9 + $0x2c8] sm:$0xff]
        %v1296 = vld [vmem:[#allocation9 + $0x2d0] sm:$0xff]
        %v1297 = vld [vmem:[#allocation9 + $0x2d8] sm:$0xff]
        %v1298 = vld [vmem:[#allocation9 + $0x2e0] sm:$0xff]
        %v1299 = vld [vmem:[#allocation9 + $0x2e8] sm:$0xff]
        %v1300 = vld [vmem:[#allocation9 + $0x2f0] sm:$0xff]
        %v1301 = vld [vmem:[#allocation9 + $0x2f8] sm:$0xff]
        %v1302 = vld [vmem:[#allocation9 + $0x300] sm:$0xff]
        %v1303 = vld [vmem:[#allocation9 + $0x308] sm:$0xff]
        %v1304 = vld [vmem:[#allocation9 + $0x310] sm:$0xff]
        %v1305 = vld [vmem:[#allocation9 + $0x318] sm:$0xff]
        %v1306 = vld [vmem:[#allocation9 + $0x320] sm:$0xff]
        %v1307 = vld [vmem:[#allocation9 + $0x328] sm:$0xff]
        %v1308 = vld [vmem:[#allocation9 + $0x330] sm:$0xff]
        %v1309 = vld [vmem:[#allocation9 + $0x338] sm:$0xff]
        %v1310 = vld [vmem:[#allocation9 + $0x340] sm:$0xff]
        %v1311 = vld [vmem:[#allocation9 + $0x348] sm:$0xff]
        %v1312 = vld [vmem:[#allocation9 + $0x350] sm:$0xff]
        %v1313 = vld [vmem:[#allocation9 + $0x358] sm:$0xff]
        %v1314 = vld [vmem:[#allocation9 + $0x360] sm:$0xff]
        %v1315 = vld [vmem:[#allocation9 + $0x368] sm:$0xff]
        %v1316 = vld [vmem:[#allocation9 + $0x370] sm:$0xff]
        %v1317 = vld [vmem:[#allocation9 + $0x378] sm:$0xff]
        %v1318 = vld [vmem:[#allocation9 + $0x380] sm:$0xff]
        %v1319 = vld [vmem:[#allocation9 + $0x388] sm:$0xff]
        %v1320 = vld [vmem:[#allocation9 + $0x390] sm:$0xff]
        %v1321 = vld [vmem:[#allocation9 + $0x398] sm:$0xff]
        %v1322 = vld [vmem:[#allocation9 + $0x3a0] sm:$0xff]
        %v1323 = vld [vmem:[#allocation9 + $0x3a8] sm:$0xff]
        %v1324 = vld [vmem:[#allocation9 + $0x3b0] sm:$0xff]
        %v1325 = vld [vmem:[#allocation9 + $0x3b8] sm:$0xff]
        %v1326 = vld [vmem:[#allocation9 + $0x3c0] sm:$0xff]
        %v1327 = vld [vmem:[#allocation9 + $0x3c8] sm:$0xff]
        %v1328 = vld [vmem:[#allocation9 + $0x3d0] sm:$0xff]
        %v1329 = vld [vmem:[#allocation9 + $0x3d8] sm:$0xff]
        %v1330 = vld [vmem:[#allocation9 + $0x3e0] sm:$0xff]
        %v1331 = vld [vmem:[#allocation9 + $0x3e8] sm:$0xff]
        %v1332 = vld [vmem:[#allocation9 + $0x3f0] sm:$0xff]
        %v1333 = vld [vmem:[#allocation9 + $0x3f8] sm:$0xff]
        %1335 = vset.pattern.permute.xlu0 0
        %1336 = vperm.xlu0 %1335, %v1206
        %v1337 = vpop.permute.xlu0 %1336
        %1340 = vset.pattern.permute.xlu0 0
        %1341 = vperm.xlu0 %1340, %v1207
        %v1342 = vpop.permute.xlu0 %1341
        %1345 = vset.pattern.permute.xlu0 0
        %1346 = vperm.xlu0 %1345, %v1208
        %v1347 = vpop.permute.xlu0 %1346
        %1350 = vset.pattern.permute.xlu0 0
        %1351 = vperm.xlu0 %1350, %v1209
        %v1352 = vpop.permute.xlu0 %1351
        %1355 = vset.pattern.permute.xlu0 0
        %1356 = vperm.xlu0 %1355, %v1210
        %v1357 = vpop.permute.xlu0 %1356
        %1360 = vset.pattern.permute.xlu0 0
        %1361 = vperm.xlu0 %1360, %v1211
        %v1362 = vpop.permute.xlu0 %1361
        %1365 = vset.pattern.permute.xlu0 0
        %1366 = vperm.xlu0 %1365, %v1212
        %v1367 = vpop.permute.xlu0 %1366
        %1370 = vset.pattern.permute.xlu0 0
        %1371 = vperm.xlu0 %1370, %v1213
        %v1372 = vpop.permute.xlu0 %1371
        %1375 = vset.pattern.permute.xlu0 0
        %1376 = vperm.xlu0 %1375, %v1214
        %v1377 = vpop.permute.xlu0 %1376
        %1380 = vset.pattern.permute.xlu0 0
        %1381 = vperm.xlu0 %1380, %v1215
        %v1382 = vpop.permute.xlu0 %1381
        %1385 = vset.pattern.permute.xlu0 0
        %1386 = vperm.xlu0 %1385, %v1216
        %v1387 = vpop.permute.xlu0 %1386
        %1390 = vset.pattern.permute.xlu0 0
        %1391 = vperm.xlu0 %1390, %v1217
        %v1392 = vpop.permute.xlu0 %1391
        %1395 = vset.pattern.permute.xlu0 0
        %1396 = vperm.xlu0 %1395, %v1218
        %v1397 = vpop.permute.xlu0 %1396
        %1400 = vset.pattern.permute.xlu0 0
        %1401 = vperm.xlu0 %1400, %v1219
        %v1402 = vpop.permute.xlu0 %1401
        %1405 = vset.pattern.permute.xlu0 0
        %1406 = vperm.xlu0 %1405, %v1220
        %v1407 = vpop.permute.xlu0 %1406
        %1410 = vset.pattern.permute.xlu0 0
        %1411 = vperm.xlu0 %1410, %v1221
        %v1412 = vpop.permute.xlu0 %1411
        %1415 = vset.pattern.permute.xlu0 0
        %1416 = vperm.xlu0 %1415, %v1222
        %v1417 = vpop.permute.xlu0 %1416
        %1420 = vset.pattern.permute.xlu0 0
        %1421 = vperm.xlu0 %1420, %v1223
        %v1422 = vpop.permute.xlu0 %1421
        %1425 = vset.pattern.permute.xlu0 0
        %1426 = vperm.xlu0 %1425, %v1224
        %v1427 = vpop.permute.xlu0 %1426
        %1430 = vset.pattern.permute.xlu0 0
        %1431 = vperm.xlu0 %1430, %v1225
        %v1432 = vpop.permute.xlu0 %1431
        %1435 = vset.pattern.permute.xlu0 0
        %1436 = vperm.xlu0 %1435, %v1226
        %v1437 = vpop.permute.xlu0 %1436
        %1440 = vset.pattern.permute.xlu0 0
        %1441 = vperm.xlu0 %1440, %v1227
        %v1442 = vpop.permute.xlu0 %1441
        %1445 = vset.pattern.permute.xlu0 0
        %1446 = vperm.xlu0 %1445, %v1228
        %v1447 = vpop.permute.xlu0 %1446
        %1450 = vset.pattern.permute.xlu0 0
        %1451 = vperm.xlu0 %1450, %v1229
        %v1452 = vpop.permute.xlu0 %1451
        %1455 = vset.pattern.permute.xlu0 0
        %1456 = vperm.xlu0 %1455, %v1230
        %v1457 = vpop.permute.xlu0 %1456
        %1460 = vset.pattern.permute.xlu0 0
        %1461 = vperm.xlu0 %1460, %v1231
        %v1462 = vpop.permute.xlu0 %1461
        %1465 = vset.pattern.permute.xlu0 0
        %1466 = vperm.xlu0 %1465, %v1232
        %v1467 = vpop.permute.xlu0 %1466
        %1470 = vset.pattern.permute.xlu0 0
        %1471 = vperm.xlu0 %1470, %v1233
        %v1472 = vpop.permute.xlu0 %1471
        %1475 = vset.pattern.permute.xlu0 0
        %1476 = vperm.xlu0 %1475, %v1234
        %v1477 = vpop.permute.xlu0 %1476
        %1480 = vset.pattern.permute.xlu0 0
        %1481 = vperm.xlu0 %1480, %v1235
        %v1482 = vpop.permute.xlu0 %1481
        %1485 = vset.pattern.permute.xlu0 0
        %1486 = vperm.xlu0 %1485, %v1236
        %v1487 = vpop.permute.xlu0 %1486
        %1490 = vset.pattern.permute.xlu0 0
        %1491 = vperm.xlu0 %1490, %v1237
        %v1492 = vpop.permute.xlu0 %1491
        %1495 = vset.pattern.permute.xlu0 0
        %1496 = vperm.xlu0 %1495, %v1238
        %v1497 = vpop.permute.xlu0 %1496
        %1500 = vset.pattern.permute.xlu0 0
        %1501 = vperm.xlu0 %1500, %v1239
        %v1502 = vpop.permute.xlu0 %1501
        %1505 = vset.pattern.permute.xlu0 0
        %1506 = vperm.xlu0 %1505, %v1240
        %v1507 = vpop.permute.xlu0 %1506
        %1510 = vset.pattern.permute.xlu0 0
        %1511 = vperm.xlu0 %1510, %v1241
        %v1512 = vpop.permute.xlu0 %1511
        %1515 = vset.pattern.permute.xlu0 0
        %1516 = vperm.xlu0 %1515, %v1242
        %v1517 = vpop.permute.xlu0 %1516
        %1520 = vset.pattern.permute.xlu0 0
        %1521 = vperm.xlu0 %1520, %v1243
        %v1522 = vpop.permute.xlu0 %1521
        %1525 = vset.pattern.permute.xlu0 0
        %1526 = vperm.xlu0 %1525, %v1244
        %v1527 = vpop.permute.xlu0 %1526
        %1530 = vset.pattern.permute.xlu0 0
        %1531 = vperm.xlu0 %1530, %v1245
        %v1532 = vpop.permute.xlu0 %1531
        %1535 = vset.pattern.permute.xlu0 0
        %1536 = vperm.xlu0 %1535, %v1246
        %v1537 = vpop.permute.xlu0 %1536
        %1540 = vset.pattern.permute.xlu0 0
        %1541 = vperm.xlu0 %1540, %v1247
        %v1542 = vpop.permute.xlu0 %1541
        %1545 = vset.pattern.permute.xlu0 0
        %1546 = vperm.xlu0 %1545, %v1248
        %v1547 = vpop.permute.xlu0 %1546
        %1550 = vset.pattern.permute.xlu0 0
        %1551 = vperm.xlu0 %1550, %v1249
        %v1552 = vpop.permute.xlu0 %1551
        %1555 = vset.pattern.permute.xlu0 0
        %1556 = vperm.xlu0 %1555, %v1250
        %v1557 = vpop.permute.xlu0 %1556
        %1560 = vset.pattern.permute.xlu0 0
        %1561 = vperm.xlu0 %1560, %v1251
        %v1562 = vpop.permute.xlu0 %1561
        %1565 = vset.pattern.permute.xlu0 0
        %1566 = vperm.xlu0 %1565, %v1252
        %v1567 = vpop.permute.xlu0 %1566
        %1570 = vset.pattern.permute.xlu0 0
        %1571 = vperm.xlu0 %1570, %v1253
        %v1572 = vpop.permute.xlu0 %1571
        %1575 = vset.pattern.permute.xlu0 0
        %1576 = vperm.xlu0 %1575, %v1254
        %v1577 = vpop.permute.xlu0 %1576
        %1580 = vset.pattern.permute.xlu0 0
        %1581 = vperm.xlu0 %1580, %v1255
        %v1582 = vpop.permute.xlu0 %1581
        %1585 = vset.pattern.permute.xlu0 0
        %1586 = vperm.xlu0 %1585, %v1256
        %v1587 = vpop.permute.xlu0 %1586
        %1590 = vset.pattern.permute.xlu0 0
        %1591 = vperm.xlu0 %1590, %v1257
        %v1592 = vpop.permute.xlu0 %1591
        %1595 = vset.pattern.permute.xlu0 0
        %1596 = vperm.xlu0 %1595, %v1258
        %v1597 = vpop.permute.xlu0 %1596
        %1600 = vset.pattern.permute.xlu0 0
        %1601 = vperm.xlu0 %1600, %v1259
        %v1602 = vpop.permute.xlu0 %1601
        %1605 = vset.pattern.permute.xlu0 0
        %1606 = vperm.xlu0 %1605, %v1260
        %v1607 = vpop.permute.xlu0 %1606
        %1610 = vset.pattern.permute.xlu0 0
        %1611 = vperm.xlu0 %1610, %v1261
        %v1612 = vpop.permute.xlu0 %1611
        %1615 = vset.pattern.permute.xlu0 0
        %1616 = vperm.xlu0 %1615, %v1262
        %v1617 = vpop.permute.xlu0 %1616
        %1620 = vset.pattern.permute.xlu0 0
        %1621 = vperm.xlu0 %1620, %v1263
        %v1622 = vpop.permute.xlu0 %1621
        %1625 = vset.pattern.permute.xlu0 0
        %1626 = vperm.xlu0 %1625, %v1264
        %v1627 = vpop.permute.xlu0 %1626
        %1630 = vset.pattern.permute.xlu0 0
        %1631 = vperm.xlu0 %1630, %v1265
        %v1632 = vpop.permute.xlu0 %1631
        %1635 = vset.pattern.permute.xlu0 0
        %1636 = vperm.xlu0 %1635, %v1266
        %v1637 = vpop.permute.xlu0 %1636
        %1640 = vset.pattern.permute.xlu0 0
        %1641 = vperm.xlu0 %1640, %v1267
        %v1642 = vpop.permute.xlu0 %1641
        %1645 = vset.pattern.permute.xlu0 0
        %1646 = vperm.xlu0 %1645, %v1268
        %v1647 = vpop.permute.xlu0 %1646
        %1650 = vset.pattern.permute.xlu0 0
        %1651 = vperm.xlu0 %1650, %v1269
        %v1652 = vpop.permute.xlu0 %1651
        %1655 = vset.pattern.permute.xlu0 0
        %1656 = vperm.xlu0 %1655, %v1270
        %v1657 = vpop.permute.xlu0 %1656
        %1660 = vset.pattern.permute.xlu0 0
        %1661 = vperm.xlu0 %1660, %v1271
        %v1662 = vpop.permute.xlu0 %1661
        %1665 = vset.pattern.permute.xlu0 0
        %1666 = vperm.xlu0 %1665, %v1272
        %v1667 = vpop.permute.xlu0 %1666
        %1670 = vset.pattern.permute.xlu0 0
        %1671 = vperm.xlu0 %1670, %v1273
        %v1672 = vpop.permute.xlu0 %1671
        %1675 = vset.pattern.permute.xlu0 0
        %1676 = vperm.xlu0 %1675, %v1274
        %v1677 = vpop.permute.xlu0 %1676
        %1680 = vset.pattern.permute.xlu0 0
        %1681 = vperm.xlu0 %1680, %v1275
        %v1682 = vpop.permute.xlu0 %1681
        %1685 = vset.pattern.permute.xlu0 0
        %1686 = vperm.xlu0 %1685, %v1276
        %v1687 = vpop.permute.xlu0 %1686
        %1690 = vset.pattern.permute.xlu0 0
        %1691 = vperm.xlu0 %1690, %v1277
        %v1692 = vpop.permute.xlu0 %1691
        %1695 = vset.pattern.permute.xlu0 0
        %1696 = vperm.xlu0 %1695, %v1278
        %v1697 = vpop.permute.xlu0 %1696
        %1700 = vset.pattern.permute.xlu0 0
        %1701 = vperm.xlu0 %1700, %v1279
        %v1702 = vpop.permute.xlu0 %1701
        %1705 = vset.pattern.permute.xlu0 0
        %1706 = vperm.xlu0 %1705, %v1280
        %v1707 = vpop.permute.xlu0 %1706
        %1710 = vset.pattern.permute.xlu0 0
        %1711 = vperm.xlu0 %1710, %v1281
        %v1712 = vpop.permute.xlu0 %1711
        %1715 = vset.pattern.permute.xlu0 0
        %1716 = vperm.xlu0 %1715, %v1282
        %v1717 = vpop.permute.xlu0 %1716
        %1720 = vset.pattern.permute.xlu0 0
        %1721 = vperm.xlu0 %1720, %v1283
        %v1722 = vpop.permute.xlu0 %1721
        %1725 = vset.pattern.permute.xlu0 0
        %1726 = vperm.xlu0 %1725, %v1284
        %v1727 = vpop.permute.xlu0 %1726
        %1730 = vset.pattern.permute.xlu0 0
        %1731 = vperm.xlu0 %1730, %v1285
        %v1732 = vpop.permute.xlu0 %1731
        %1735 = vset.pattern.permute.xlu0 0
        %1736 = vperm.xlu0 %1735, %v1286
        %v1737 = vpop.permute.xlu0 %1736
        %1740 = vset.pattern.permute.xlu0 0
        %1741 = vperm.xlu0 %1740, %v1287
        %v1742 = vpop.permute.xlu0 %1741
        %1745 = vset.pattern.permute.xlu0 0
        %1746 = vperm.xlu0 %1745, %v1288
        %v1747 = vpop.permute.xlu0 %1746
        %1750 = vset.pattern.permute.xlu0 0
        %1751 = vperm.xlu0 %1750, %v1289
        %v1752 = vpop.permute.xlu0 %1751
        %1755 = vset.pattern.permute.xlu0 0
        %1756 = vperm.xlu0 %1755, %v1290
        %v1757 = vpop.permute.xlu0 %1756
        %1760 = vset.pattern.permute.xlu0 0
        %1761 = vperm.xlu0 %1760, %v1291
        %v1762 = vpop.permute.xlu0 %1761
        %1765 = vset.pattern.permute.xlu0 0
        %1766 = vperm.xlu0 %1765, %v1292
        %v1767 = vpop.permute.xlu0 %1766
        %1770 = vset.pattern.permute.xlu0 0
        %1771 = vperm.xlu0 %1770, %v1293
        %v1772 = vpop.permute.xlu0 %1771
        %1775 = vset.pattern.permute.xlu0 0
        %1776 = vperm.xlu0 %1775, %v1294
        %v1777 = vpop.permute.xlu0 %1776
        %1780 = vset.pattern.permute.xlu0 0
        %1781 = vperm.xlu0 %1780, %v1295
        %v1782 = vpop.permute.xlu0 %1781
        %1785 = vset.pattern.permute.xlu0 0
        %1786 = vperm.xlu0 %1785, %v1296
        %v1787 = vpop.permute.xlu0 %1786
        %1790 = vset.pattern.permute.xlu0 0
        %1791 = vperm.xlu0 %1790, %v1297
        %v1792 = vpop.permute.xlu0 %1791
        %1795 = vset.pattern.permute.xlu0 0
        %1796 = vperm.xlu0 %1795, %v1298
        %v1797 = vpop.permute.xlu0 %1796
        %1800 = vset.pattern.permute.xlu0 0
        %1801 = vperm.xlu0 %1800, %v1299
        %v1802 = vpop.permute.xlu0 %1801
        %1805 = vset.pattern.permute.xlu0 0
        %1806 = vperm.xlu0 %1805, %v1300
        %v1807 = vpop.permute.xlu0 %1806
        %1810 = vset.pattern.permute.xlu0 0
        %1811 = vperm.xlu0 %1810, %v1301
        %v1812 = vpop.permute.xlu0 %1811
        %1815 = vset.pattern.permute.xlu0 0
        %1816 = vperm.xlu0 %1815, %v1302
        %v1817 = vpop.permute.xlu0 %1816
        %1820 = vset.pattern.permute.xlu0 0
        %1821 = vperm.xlu0 %1820, %v1303
        %v1822 = vpop.permute.xlu0 %1821
        %1825 = vset.pattern.permute.xlu0 0
        %1826 = vperm.xlu0 %1825, %v1304
        %v1827 = vpop.permute.xlu0 %1826
        %1830 = vset.pattern.permute.xlu0 0
        %1831 = vperm.xlu0 %1830, %v1305
        %v1832 = vpop.permute.xlu0 %1831
        %1835 = vset.pattern.permute.xlu0 0
        %1836 = vperm.xlu0 %1835, %v1306
        %v1837 = vpop.permute.xlu0 %1836
        %1840 = vset.pattern.permute.xlu0 0
        %1841 = vperm.xlu0 %1840, %v1307
        %v1842 = vpop.permute.xlu0 %1841
        %1845 = vset.pattern.permute.xlu0 0
        %1846 = vperm.xlu0 %1845, %v1308
        %v1847 = vpop.permute.xlu0 %1846
        %1850 = vset.pattern.permute.xlu0 0
        %1851 = vperm.xlu0 %1850, %v1309
        %v1852 = vpop.permute.xlu0 %1851
        %1855 = vset.pattern.permute.xlu0 0
        %1856 = vperm.xlu0 %1855, %v1310
        %v1857 = vpop.permute.xlu0 %1856
        %1860 = vset.pattern.permute.xlu0 0
        %1861 = vperm.xlu0 %1860, %v1311
        %v1862 = vpop.permute.xlu0 %1861
        %1865 = vset.pattern.permute.xlu0 0
        %1866 = vperm.xlu0 %1865, %v1312
        %v1867 = vpop.permute.xlu0 %1866
        %1870 = vset.pattern.permute.xlu0 0
        %1871 = vperm.xlu0 %1870, %v1313
        %v1872 = vpop.permute.xlu0 %1871
        %1875 = vset.pattern.permute.xlu0 0
        %1876 = vperm.xlu0 %1875, %v1314
        %v1877 = vpop.permute.xlu0 %1876
        %1880 = vset.pattern.permute.xlu0 0
        %1881 = vperm.xlu0 %1880, %v1315
        %v1882 = vpop.permute.xlu0 %1881
        %1885 = vset.pattern.permute.xlu0 0
        %1886 = vperm.xlu0 %1885, %v1316
        %v1887 = vpop.permute.xlu0 %1886
        %1890 = vset.pattern.permute.xlu0 0
        %1891 = vperm.xlu0 %1890, %v1317
        %v1892 = vpop.permute.xlu0 %1891
        %1895 = vset.pattern.permute.xlu0 0
        %1896 = vperm.xlu0 %1895, %v1318
        %v1897 = vpop.permute.xlu0 %1896
        %1900 = vset.pattern.permute.xlu0 0
        %1901 = vperm.xlu0 %1900, %v1319
        %v1902 = vpop.permute.xlu0 %1901
        %1905 = vset.pattern.permute.xlu0 0
        %1906 = vperm.xlu0 %1905, %v1320
        %v1907 = vpop.permute.xlu0 %1906
        %1910 = vset.pattern.permute.xlu0 0
        %1911 = vperm.xlu0 %1910, %v1321
        %v1912 = vpop.permute.xlu0 %1911
        %1915 = vset.pattern.permute.xlu0 0
        %1916 = vperm.xlu0 %1915, %v1322
        %v1917 = vpop.permute.xlu0 %1916
        %1920 = vset.pattern.permute.xlu0 0
        %1921 = vperm.xlu0 %1920, %v1323
        %v1922 = vpop.permute.xlu0 %1921
        %1925 = vset.pattern.permute.xlu0 0
        %1926 = vperm.xlu0 %1925, %v1324
        %v1927 = vpop.permute.xlu0 %1926
        %1930 = vset.pattern.permute.xlu0 0
        %1931 = vperm.xlu0 %1930, %v1325
        %v1932 = vpop.permute.xlu0 %1931
        %1935 = vset.pattern.permute.xlu0 0
        %1936 = vperm.xlu0 %1935, %v1326
        %v1937 = vpop.permute.xlu0 %1936
        %1940 = vset.pattern.permute.xlu0 0
        %1941 = vperm.xlu0 %1940, %v1327
        %v1942 = vpop.permute.xlu0 %1941
        %1945 = vset.pattern.permute.xlu0 0
        %1946 = vperm.xlu0 %1945, %v1328
        %v1947 = vpop.permute.xlu0 %1946
        %1950 = vset.pattern.permute.xlu0 0
        %1951 = vperm.xlu0 %1950, %v1329
        %v1952 = vpop.permute.xlu0 %1951
        %1955 = vset.pattern.permute.xlu0 0
        %1956 = vperm.xlu0 %1955, %v1330
        %v1957 = vpop.permute.xlu0 %1956
        %1960 = vset.pattern.permute.xlu0 0
        %1961 = vperm.xlu0 %1960, %v1331
        %v1962 = vpop.permute.xlu0 %1961
        %1965 = vset.pattern.permute.xlu0 0
        %1966 = vperm.xlu0 %1965, %v1332
        %v1967 = vpop.permute.xlu0 %1966
        %1970 = vset.pattern.permute.xlu0 0
        %1971 = vperm.xlu0 %1970, %v1333
        %v1972 = vpop.permute.xlu0 %1971
        %1974 = vmatpush.msra.mxu0 %v933
        %1975 = vmatpush.msra.mxu0 %v932
        %1976 = vmatpush.msra.mxu0 %v931
        %1977 = vmatpush.msra.mxu0 %v930
        %1978 = vmatpush.msra.mxu0 %v929
        %1979 = vmatpush.msra.mxu0 %v928
        %1980 = vmatpush.msra.mxu0 %v927
        %1981 = vmatpush.msra.mxu0 %v926
        %1982 = vmatpush.msra.mxu0 %v925
        %1983 = vmatpush.msra.mxu0 %v924
        %1984 = vmatpush.msra.mxu0 %v923
        %1985 = vmatpush.msra.mxu0 %v922
        %1986 = vmatpush.msra.mxu0 %v921
        %1987 = vmatpush.msra.mxu0 %v920
        %1988 = vmatpush.msra.mxu0 %v919
        %1989 = vmatpush.msra.mxu0 %v918
        %1990 = vmatmul.f32.gmra.mxu0 %v950
        %v1991 = vpop.f32.mrf.mxu0
        %v1992 = vadd.f32 %v1337, %v1991
        %1993 = vmatmul.f32.gmra.mxu0 %v952
        %v1994 = vpop.f32.mrf.mxu0
        %v1995 = vadd.f32 %v1342, %v1994
        %1996 = vmatmul.f32.gmra.mxu0 %v954
        %v1997 = vpop.f32.mrf.mxu0
        %v1998 = vadd.f32 %v1347, %v1997
        %1999 = vmatmul.f32.gmra.mxu0 %v956
        %v2000 = vpop.f32.mrf.mxu0
        %v2001 = vadd.f32 %v1352, %v2000
        %2002 = vmatmul.f32.gmra.mxu0 %v958
        %v2003 = vpop.f32.mrf.mxu0
        %v2004 = vadd.f32 %v1357, %v2003
        %2005 = vmatmul.f32.gmra.mxu0 %v960
        %v2006 = vpop.f32.mrf.mxu0
        %v2007 = vadd.f32 %v1362, %v2006
        %2008 = vmatmul.f32.gmra.mxu0 %v962
        %v2009 = vpop.f32.mrf.mxu0
        %v2010 = vadd.f32 %v1367, %v2009
        %2011 = vmatmul.f32.gmra.mxu0 %v964
        %v2012 = vpop.f32.mrf.mxu0
        %v2013 = vadd.f32 %v1372, %v2012
        %2014 = vmatmul.f32.gmra.mxu0 %v966
        %v2015 = vpop.f32.mrf.mxu0
        %v2016 = vadd.f32 %v1377, %v2015
        %2017 = vmatmul.f32.gmra.mxu0 %v968
        %v2018 = vpop.f32.mrf.mxu0
        %v2019 = vadd.f32 %v1382, %v2018
        %2020 = vmatmul.f32.gmra.mxu0 %v970
        %v2021 = vpop.f32.mrf.mxu0
        %v2022 = vadd.f32 %v1387, %v2021
        %2023 = vmatmul.f32.gmra.mxu0 %v972
        %v2024 = vpop.f32.mrf.mxu0
        %v2025 = vadd.f32 %v1392, %v2024
        %2026 = vmatmul.f32.gmra.mxu0 %v974
        %v2027 = vpop.f32.mrf.mxu0
        %v2028 = vadd.f32 %v1397, %v2027
        %2029 = vmatmul.f32.gmra.mxu0 %v976
        %v2030 = vpop.f32.mrf.mxu0
        %v2031 = vadd.f32 %v1402, %v2030
        %2032 = vmatmul.f32.gmra.mxu0 %v978
        %v2033 = vpop.f32.mrf.mxu0
        %v2034 = vadd.f32 %v1407, %v2033
        %2035 = vmatmul.f32.gmra.mxu0 %v980
        %v2036 = vpop.f32.mrf.mxu0
        %v2037 = vadd.f32 %v1412, %v2036
        %2038 = vmatmul.f32.gmra.mxu0 %v982
        %v2039 = vpop.f32.mrf.mxu0
        %v2040 = vadd.f32 %v1417, %v2039
        %2041 = vmatmul.f32.gmra.mxu0 %v984
        %v2042 = vpop.f32.mrf.mxu0
        %v2043 = vadd.f32 %v1422, %v2042
        %2044 = vmatmul.f32.gmra.mxu0 %v986
        %v2045 = vpop.f32.mrf.mxu0
        %v2046 = vadd.f32 %v1427, %v2045
        %2047 = vmatmul.f32.gmra.mxu0 %v988
        %v2048 = vpop.f32.mrf.mxu0
        %v2049 = vadd.f32 %v1432, %v2048
        %2050 = vmatmul.f32.gmra.mxu0 %v990
        %v2051 = vpop.f32.mrf.mxu0
        %v2052 = vadd.f32 %v1437, %v2051
        %2053 = vmatmul.f32.gmra.mxu0 %v992
        %v2054 = vpop.f32.mrf.mxu0
        %v2055 = vadd.f32 %v1442, %v2054
        %2056 = vmatmul.f32.gmra.mxu0 %v994
        %v2057 = vpop.f32.mrf.mxu0
        %v2058 = vadd.f32 %v1447, %v2057
        %2059 = vmatmul.f32.gmra.mxu0 %v996
        %v2060 = vpop.f32.mrf.mxu0
        %v2061 = vadd.f32 %v1452, %v2060
        %2062 = vmatmul.f32.gmra.mxu0 %v998
        %v2063 = vpop.f32.mrf.mxu0
        %v2064 = vadd.f32 %v1457, %v2063
        %2065 = vmatmul.f32.gmra.mxu0 %v1000
        %v2066 = vpop.f32.mrf.mxu0
        %v2067 = vadd.f32 %v1462, %v2066
        %2068 = vmatmul.f32.gmra.mxu0 %v1002
        %v2069 = vpop.f32.mrf.mxu0
        %v2070 = vadd.f32 %v1467, %v2069
        %2071 = vmatmul.f32.gmra.mxu0 %v1004
        %v2072 = vpop.f32.mrf.mxu0
        %v2073 = vadd.f32 %v1472, %v2072
        %2074 = vmatmul.f32.gmra.mxu0 %v1006
        %v2075 = vpop.f32.mrf.mxu0
        %v2076 = vadd.f32 %v1477, %v2075
        %2077 = vmatmul.f32.gmra.mxu0 %v1008
        %v2078 = vpop.f32.mrf.mxu0
        %v2079 = vadd.f32 %v1482, %v2078
        %2080 = vmatmul.f32.gmra.mxu0 %v1010
        %v2081 = vpop.f32.mrf.mxu0
        %v2082 = vadd.f32 %v1487, %v2081
        %2083 = vmatmul.f32.gmra.mxu0 %v1012
        %v2084 = vpop.f32.mrf.mxu0
        %v2085 = vadd.f32 %v1492, %v2084
        %2086 = vmatmul.f32.gmra.mxu0 %v1014
        %v2087 = vpop.f32.mrf.mxu0
        %v2088 = vadd.f32 %v1497, %v2087
        %2089 = vmatmul.f32.gmra.mxu0 %v1016
        %v2090 = vpop.f32.mrf.mxu0
        %v2091 = vadd.f32 %v1502, %v2090
        %2092 = vmatmul.f32.gmra.mxu0 %v1018
        %v2093 = vpop.f32.mrf.mxu0
        %v2094 = vadd.f32 %v1507, %v2093
        %2095 = vmatmul.f32.gmra.mxu0 %v1020
        %v2096 = vpop.f32.mrf.mxu0
        %v2097 = vadd.f32 %v1512, %v2096
        %2098 = vmatmul.f32.gmra.mxu0 %v1022
        %v2099 = vpop.f32.mrf.mxu0
        %v2100 = vadd.f32 %v1517, %v2099
        %2101 = vmatmul.f32.gmra.mxu0 %v1024
        %v2102 = vpop.f32.mrf.mxu0
        %v2103 = vadd.f32 %v1522, %v2102
        %2104 = vmatmul.f32.gmra.mxu0 %v1026
        %v2105 = vpop.f32.mrf.mxu0
        %v2106 = vadd.f32 %v1527, %v2105
        %2107 = vmatmul.f32.gmra.mxu0 %v1028
        %v2108 = vpop.f32.mrf.mxu0
        %v2109 = vadd.f32 %v1532, %v2108
        %2110 = vmatmul.f32.gmra.mxu0 %v1030
        %v2111 = vpop.f32.mrf.mxu0
        %v2112 = vadd.f32 %v1537, %v2111
        %2113 = vmatmul.f32.gmra.mxu0 %v1032
        %v2114 = vpop.f32.mrf.mxu0
        %v2115 = vadd.f32 %v1542, %v2114
        %2116 = vmatmul.f32.gmra.mxu0 %v1034
        %v2117 = vpop.f32.mrf.mxu0
        %v2118 = vadd.f32 %v1547, %v2117
        %2119 = vmatmul.f32.gmra.mxu0 %v1036
        %v2120 = vpop.f32.mrf.mxu0
        %v2121 = vadd.f32 %v1552, %v2120
        %2122 = vmatmul.f32.gmra.mxu0 %v1038
        %v2123 = vpop.f32.mrf.mxu0
        %v2124 = vadd.f32 %v1557, %v2123
        %2125 = vmatmul.f32.gmra.mxu0 %v1040
        %v2126 = vpop.f32.mrf.mxu0
        %v2127 = vadd.f32 %v1562, %v2126
        %2128 = vmatmul.f32.gmra.mxu0 %v1042
        %v2129 = vpop.f32.mrf.mxu0
        %v2130 = vadd.f32 %v1567, %v2129
        %2131 = vmatmul.f32.gmra.mxu0 %v1044
        %v2132 = vpop.f32.mrf.mxu0
        %v2133 = vadd.f32 %v1572, %v2132
        %2134 = vmatmul.f32.gmra.mxu0 %v1046
        %v2135 = vpop.f32.mrf.mxu0
        %v2136 = vadd.f32 %v1577, %v2135
        %2137 = vmatmul.f32.gmra.mxu0 %v1048
        %v2138 = vpop.f32.mrf.mxu0
        %v2139 = vadd.f32 %v1582, %v2138
        %2140 = vmatmul.f32.gmra.mxu0 %v1050
        %v2141 = vpop.f32.mrf.mxu0
        %v2142 = vadd.f32 %v1587, %v2141
        %2143 = vmatmul.f32.gmra.mxu0 %v1052
        %v2144 = vpop.f32.mrf.mxu0
        %v2145 = vadd.f32 %v1592, %v2144
        %2146 = vmatmul.f32.gmra.mxu0 %v1054
        %v2147 = vpop.f32.mrf.mxu0
        %v2148 = vadd.f32 %v1597, %v2147
        %2149 = vmatmul.f32.gmra.mxu0 %v1056
        %v2150 = vpop.f32.mrf.mxu0
        %v2151 = vadd.f32 %v1602, %v2150
        %2152 = vmatmul.f32.gmra.mxu0 %v1058
        %v2153 = vpop.f32.mrf.mxu0
        %v2154 = vadd.f32 %v1607, %v2153
        %2155 = vmatmul.f32.gmra.mxu0 %v1060
        %v2156 = vpop.f32.mrf.mxu0
        %v2157 = vadd.f32 %v1612, %v2156
        %2158 = vmatmul.f32.gmra.mxu0 %v1062
        %v2159 = vpop.f32.mrf.mxu0
        %v2160 = vadd.f32 %v1617, %v2159
        %2161 = vmatmul.f32.gmra.mxu0 %v1064
        %v2162 = vpop.f32.mrf.mxu0
        %v2163 = vadd.f32 %v1622, %v2162
        %2164 = vmatmul.f32.gmra.mxu0 %v1066
        %v2165 = vpop.f32.mrf.mxu0
        %v2166 = vadd.f32 %v1627, %v2165
        %2167 = vmatmul.f32.gmra.mxu0 %v1068
        %v2168 = vpop.f32.mrf.mxu0
        %v2169 = vadd.f32 %v1632, %v2168
        %2170 = vmatmul.f32.gmra.mxu0 %v1070
        %v2171 = vpop.f32.mrf.mxu0
        %v2172 = vadd.f32 %v1637, %v2171
        %2173 = vmatmul.f32.gmra.mxu0 %v1072
        %v2174 = vpop.f32.mrf.mxu0
        %v2175 = vadd.f32 %v1642, %v2174
        %2176 = vmatmul.f32.gmra.mxu0 %v1074
        %v2177 = vpop.f32.mrf.mxu0
        %v2178 = vadd.f32 %v1647, %v2177
        %2179 = vmatmul.f32.gmra.mxu0 %v1076
        %v2180 = vpop.f32.mrf.mxu0
        %v2181 = vadd.f32 %v1652, %v2180
        %2182 = vmatmul.f32.gmra.mxu0 %v1078
        %v2183 = vpop.f32.mrf.mxu0
        %v2184 = vadd.f32 %v1657, %v2183
        %2185 = vmatmul.f32.gmra.mxu0 %v1080
        %v2186 = vpop.f32.mrf.mxu0
        %v2187 = vadd.f32 %v1662, %v2186
        %2188 = vmatmul.f32.gmra.mxu0 %v1082
        %v2189 = vpop.f32.mrf.mxu0
        %v2190 = vadd.f32 %v1667, %v2189
        %2191 = vmatmul.f32.gmra.mxu0 %v1084
        %v2192 = vpop.f32.mrf.mxu0
        %v2193 = vadd.f32 %v1672, %v2192
        %2194 = vmatmul.f32.gmra.mxu0 %v1086
        %v2195 = vpop.f32.mrf.mxu0
        %v2196 = vadd.f32 %v1677, %v2195
        %2197 = vmatmul.f32.gmra.mxu0 %v1088
        %v2198 = vpop.f32.mrf.mxu0
        %v2199 = vadd.f32 %v1682, %v2198
        %2200 = vmatmul.f32.gmra.mxu0 %v1090
        %v2201 = vpop.f32.mrf.mxu0
        %v2202 = vadd.f32 %v1687, %v2201
        %2203 = vmatmul.f32.gmra.mxu0 %v1092
        %v2204 = vpop.f32.mrf.mxu0
        %v2205 = vadd.f32 %v1692, %v2204
        %2206 = vmatmul.f32.gmra.mxu0 %v1094
        %v2207 = vpop.f32.mrf.mxu0
        %v2208 = vadd.f32 %v1697, %v2207
        %2209 = vmatmul.f32.gmra.mxu0 %v1096
        %v2210 = vpop.f32.mrf.mxu0
        %v2211 = vadd.f32 %v1702, %v2210
        %2212 = vmatmul.f32.gmra.mxu0 %v1098
        %v2213 = vpop.f32.mrf.mxu0
        %v2214 = vadd.f32 %v1707, %v2213
        %2215 = vmatmul.f32.gmra.mxu0 %v1100
        %v2216 = vpop.f32.mrf.mxu0
        %v2217 = vadd.f32 %v1712, %v2216
        %2218 = vmatmul.f32.gmra.mxu0 %v1102
        %v2219 = vpop.f32.mrf.mxu0
        %v2220 = vadd.f32 %v1717, %v2219
        %2221 = vmatmul.f32.gmra.mxu0 %v1104
        %v2222 = vpop.f32.mrf.mxu0
        %v2223 = vadd.f32 %v1722, %v2222
        %2224 = vmatmul.f32.gmra.mxu0 %v1106
        %v2225 = vpop.f32.mrf.mxu0
        %v2226 = vadd.f32 %v1727, %v2225
        %2227 = vmatmul.f32.gmra.mxu0 %v1108
        %v2228 = vpop.f32.mrf.mxu0
        %v2229 = vadd.f32 %v1732, %v2228
        %2230 = vmatmul.f32.gmra.mxu0 %v1110
        %v2231 = vpop.f32.mrf.mxu0
        %v2232 = vadd.f32 %v1737, %v2231
        %2233 = vmatmul.f32.gmra.mxu0 %v1112
        %v2234 = vpop.f32.mrf.mxu0
        %v2235 = vadd.f32 %v1742, %v2234
        %2236 = vmatmul.f32.gmra.mxu0 %v1114
        %v2237 = vpop.f32.mrf.mxu0
        %v2238 = vadd.f32 %v1747, %v2237
        %2239 = vmatmul.f32.gmra.mxu0 %v1116
        %v2240 = vpop.f32.mrf.mxu0
        %v2241 = vadd.f32 %v1752, %v2240
        %2242 = vmatmul.f32.gmra.mxu0 %v1118
        %v2243 = vpop.f32.mrf.mxu0
        %v2244 = vadd.f32 %v1757, %v2243
        %2245 = vmatmul.f32.gmra.mxu0 %v1120
        %v2246 = vpop.f32.mrf.mxu0
        %v2247 = vadd.f32 %v1762, %v2246
        %2248 = vmatmul.f32.gmra.mxu0 %v1122
        %v2249 = vpop.f32.mrf.mxu0
        %v2250 = vadd.f32 %v1767, %v2249
        %2251 = vmatmul.f32.gmra.mxu0 %v1124
        %v2252 = vpop.f32.mrf.mxu0
        %v2253 = vadd.f32 %v1772, %v2252
        %2254 = vmatmul.f32.gmra.mxu0 %v1126
        %v2255 = vpop.f32.mrf.mxu0
        %v2256 = vadd.f32 %v1777, %v2255
        %2257 = vmatmul.f32.gmra.mxu0 %v1128
        %v2258 = vpop.f32.mrf.mxu0
        %v2259 = vadd.f32 %v1782, %v2258
        %2260 = vmatmul.f32.gmra.mxu0 %v1130
        %v2261 = vpop.f32.mrf.mxu0
        %v2262 = vadd.f32 %v1787, %v2261
        %2263 = vmatmul.f32.gmra.mxu0 %v1132
        %v2264 = vpop.f32.mrf.mxu0
        %v2265 = vadd.f32 %v1792, %v2264
        %2266 = vmatmul.f32.gmra.mxu0 %v1134
        %v2267 = vpop.f32.mrf.mxu0
        %v2268 = vadd.f32 %v1797, %v2267
        %2269 = vmatmul.f32.gmra.mxu0 %v1136
        %v2270 = vpop.f32.mrf.mxu0
        %v2271 = vadd.f32 %v1802, %v2270
        %2272 = vmatmul.f32.gmra.mxu0 %v1138
        %v2273 = vpop.f32.mrf.mxu0
        %v2274 = vadd.f32 %v1807, %v2273
        %2275 = vmatmul.f32.gmra.mxu0 %v1140
        %v2276 = vpop.f32.mrf.mxu0
        %v2277 = vadd.f32 %v1812, %v2276
        %2278 = vmatmul.f32.gmra.mxu0 %v1142
        %v2279 = vpop.f32.mrf.mxu0
        %v2280 = vadd.f32 %v1817, %v2279
        %2281 = vmatmul.f32.gmra.mxu0 %v1144
        %v2282 = vpop.f32.mrf.mxu0
        %v2283 = vadd.f32 %v1822, %v2282
        %2284 = vmatmul.f32.gmra.mxu0 %v1146
        %v2285 = vpop.f32.mrf.mxu0
        %v2286 = vadd.f32 %v1827, %v2285
        %2287 = vmatmul.f32.gmra.mxu0 %v1148
        %v2288 = vpop.f32.mrf.mxu0
        %v2289 = vadd.f32 %v1832, %v2288
        %2290 = vmatmul.f32.gmra.mxu0 %v1150
        %v2291 = vpop.f32.mrf.mxu0
        %v2292 = vadd.f32 %v1837, %v2291
        %2293 = vmatmul.f32.gmra.mxu0 %v1152
        %v2294 = vpop.f32.mrf.mxu0
        %v2295 = vadd.f32 %v1842, %v2294
        %2296 = vmatmul.f32.gmra.mxu0 %v1154
        %v2297 = vpop.f32.mrf.mxu0
        %v2298 = vadd.f32 %v1847, %v2297
        %2299 = vmatmul.f32.gmra.mxu0 %v1156
        %v2300 = vpop.f32.mrf.mxu0
        %v2301 = vadd.f32 %v1852, %v2300
        %2302 = vmatmul.f32.gmra.mxu0 %v1158
        %v2303 = vpop.f32.mrf.mxu0
        %v2304 = vadd.f32 %v1857, %v2303
        %2305 = vmatmul.f32.gmra.mxu0 %v1160
        %v2306 = vpop.f32.mrf.mxu0
        %v2307 = vadd.f32 %v1862, %v2306
        %2308 = vmatmul.f32.gmra.mxu0 %v1162
        %v2309 = vpop.f32.mrf.mxu0
        %v2310 = vadd.f32 %v1867, %v2309
        %2311 = vmatmul.f32.gmra.mxu0 %v1164
        %v2312 = vpop.f32.mrf.mxu0
        %v2313 = vadd.f32 %v1872, %v2312
        %2314 = vmatmul.f32.gmra.mxu0 %v1166
        %v2315 = vpop.f32.mrf.mxu0
        %v2316 = vadd.f32 %v1877, %v2315
        %2317 = vmatmul.f32.gmra.mxu0 %v1168
        %v2318 = vpop.f32.mrf.mxu0
        %v2319 = vadd.f32 %v1882, %v2318
        %2320 = vmatmul.f32.gmra.mxu0 %v1170
        %v2321 = vpop.f32.mrf.mxu0
        %v2322 = vadd.f32 %v1887, %v2321
        %2323 = vmatmul.f32.gmra.mxu0 %v1172
        %v2324 = vpop.f32.mrf.mxu0
        %v2325 = vadd.f32 %v1892, %v2324
        %2326 = vmatmul.f32.gmra.mxu0 %v1174
        %v2327 = vpop.f32.mrf.mxu0
        %v2328 = vadd.f32 %v1897, %v2327
        %2329 = vmatmul.f32.gmra.mxu0 %v1176
        %v2330 = vpop.f32.mrf.mxu0
        %v2331 = vadd.f32 %v1902, %v2330
        %2332 = vmatmul.f32.gmra.mxu0 %v1178
        %v2333 = vpop.f32.mrf.mxu0
        %v2334 = vadd.f32 %v1907, %v2333
        %2335 = vmatmul.f32.gmra.mxu0 %v1180
        %v2336 = vpop.f32.mrf.mxu0
        %v2337 = vadd.f32 %v1912, %v2336
        %2338 = vmatmul.f32.gmra.mxu0 %v1182
        %v2339 = vpop.f32.mrf.mxu0
        %v2340 = vadd.f32 %v1917, %v2339
        %2341 = vmatmul.f32.gmra.mxu0 %v1184
        %v2342 = vpop.f32.mrf.mxu0
        %v2343 = vadd.f32 %v1922, %v2342
        %2344 = vmatmul.f32.gmra.mxu0 %v1186
        %v2345 = vpop.f32.mrf.mxu0
        %v2346 = vadd.f32 %v1927, %v2345
        %2347 = vmatmul.f32.gmra.mxu0 %v1188
        %v2348 = vpop.f32.mrf.mxu0
        %v2349 = vadd.f32 %v1932, %v2348
        %2350 = vmatmul.f32.gmra.mxu0 %v1190
        %v2351 = vpop.f32.mrf.mxu0
        %v2352 = vadd.f32 %v1937, %v2351
        %2353 = vmatmul.f32.gmra.mxu0 %v1192
        %v2354 = vpop.f32.mrf.mxu0
        %v2355 = vadd.f32 %v1942, %v2354
        %2356 = vmatmul.f32.gmra.mxu0 %v1194
        %v2357 = vpop.f32.mrf.mxu0
        %v2358 = vadd.f32 %v1947, %v2357
        %2359 = vmatmul.f32.gmra.mxu0 %v1196
        %v2360 = vpop.f32.mrf.mxu0
        %v2361 = vadd.f32 %v1952, %v2360
        %2362 = vmatmul.f32.gmra.mxu0 %v1198
        %v2363 = vpop.f32.mrf.mxu0
        %v2364 = vadd.f32 %v1957, %v2363
        %2365 = vmatmul.f32.gmra.mxu0 %v1200
        %v2366 = vpop.f32.mrf.mxu0
        %v2367 = vadd.f32 %v1962, %v2366
        %2368 = vmatmul.f32.gmra.mxu0 %v1202
        %v2369 = vpop.f32.mrf.mxu0
        %v2370 = vadd.f32 %v1967, %v2369
        %2371 = vmatmul.f32.gmra.mxu0 %v1204
        %v2372 = vpop.f32.mrf.mxu0
        %v2373 = vadd.f32 %v1972, %v2372
        %2374 = vdwg.mxu0
        %2375 = vmatpush.msra.mxu0 %v949
        %2376 = vmatpush.msra.mxu0 %v948
        %2377 = vmatpush.msra.mxu0 %v947
        %2378 = vmatpush.msra.mxu0 %v946
        %2379 = vmatpush.msra.mxu0 %v945
        %2380 = vmatpush.msra.mxu0 %v944
        %2381 = vmatpush.msra.mxu0 %v943
        %2382 = vmatpush.msra.mxu0 %v942
        %2383 = vmatpush.msra.mxu0 %v941
        %2384 = vmatpush.msra.mxu0 %v940
        %2385 = vmatpush.msra.mxu0 %v939
        %2386 = vmatpush.msra.mxu0 %v938
        %2387 = vmatpush.msra.mxu0 %v937
        %2388 = vmatpush.msra.mxu0 %v936
        %2389 = vmatpush.msra.mxu0 %v935
        %2390 = vmatpush.msra.mxu0 %v934
        %2391 = vmatmul.f32.gmra.mxu0 %v951
        %v2392 = vpop.f32.mrf.mxu0
        %v2393 = vadd.f32 %v1992, %v2392
        %2394 = vmatmul.f32.gmra.mxu0 %v953
        %v2395 = vpop.f32.mrf.mxu0
        %v2396 = vadd.f32 %v1995, %v2395
        %2397 = vmatmul.f32.gmra.mxu0 %v955
        %v2398 = vpop.f32.mrf.mxu0
        %v2399 = vadd.f32 %v1998, %v2398
        %2400 = vmatmul.f32.gmra.mxu0 %v957
        %v2401 = vpop.f32.mrf.mxu0
        %v2402 = vadd.f32 %v2001, %v2401
        %2403 = vmatmul.f32.gmra.mxu0 %v959
        %v2404 = vpop.f32.mrf.mxu0
        %v2405 = vadd.f32 %v2004, %v2404
        %2406 = vmatmul.f32.gmra.mxu0 %v961
        %v2407 = vpop.f32.mrf.mxu0
        %v2408 = vadd.f32 %v2007, %v2407
        %2409 = vmatmul.f32.gmra.mxu0 %v963
        %v2410 = vpop.f32.mrf.mxu0
        %v2411 = vadd.f32 %v2010, %v2410
        %2412 = vmatmul.f32.gmra.mxu0 %v965
        %v2413 = vpop.f32.mrf.mxu0
        %v2414 = vadd.f32 %v2013, %v2413
        %2415 = vmatmul.f32.gmra.mxu0 %v967
        %v2416 = vpop.f32.mrf.mxu0
        %v2417 = vadd.f32 %v2016, %v2416
        %2418 = vmatmul.f32.gmra.mxu0 %v969
        %v2419 = vpop.f32.mrf.mxu0
        %v2420 = vadd.f32 %v2019, %v2419
        %2421 = vmatmul.f32.gmra.mxu0 %v971
        %v2422 = vpop.f32.mrf.mxu0
        %v2423 = vadd.f32 %v2022, %v2422
        %2424 = vmatmul.f32.gmra.mxu0 %v973
        %v2425 = vpop.f32.mrf.mxu0
        %v2426 = vadd.f32 %v2025, %v2425
        %2427 = vmatmul.f32.gmra.mxu0 %v975
        %v2428 = vpop.f32.mrf.mxu0
        %v2429 = vadd.f32 %v2028, %v2428
        %2430 = vmatmul.f32.gmra.mxu0 %v977
        %v2431 = vpop.f32.mrf.mxu0
        %v2432 = vadd.f32 %v2031, %v2431
        %2433 = vmatmul.f32.gmra.mxu0 %v979
        %v2434 = vpop.f32.mrf.mxu0
        %v2435 = vadd.f32 %v2034, %v2434
        %2436 = vmatmul.f32.gmra.mxu0 %v981
        %v2437 = vpop.f32.mrf.mxu0
        %v2438 = vadd.f32 %v2037, %v2437
        %2439 = vmatmul.f32.gmra.mxu0 %v983
        %v2440 = vpop.f32.mrf.mxu0
        %v2441 = vadd.f32 %v2040, %v2440
        %2442 = vmatmul.f32.gmra.mxu0 %v985
        %v2443 = vpop.f32.mrf.mxu0
        %v2444 = vadd.f32 %v2043, %v2443
        %2445 = vmatmul.f32.gmra.mxu0 %v987
        %v2446 = vpop.f32.mrf.mxu0
        %v2447 = vadd.f32 %v2046, %v2446
        %2448 = vmatmul.f32.gmra.mxu0 %v989
        %v2449 = vpop.f32.mrf.mxu0
        %v2450 = vadd.f32 %v2049, %v2449
        %2451 = vmatmul.f32.gmra.mxu0 %v991
        %v2452 = vpop.f32.mrf.mxu0
        %v2453 = vadd.f32 %v2052, %v2452
        %2454 = vmatmul.f32.gmra.mxu0 %v993
        %v2455 = vpop.f32.mrf.mxu0
        %v2456 = vadd.f32 %v2055, %v2455
        %2457 = vmatmul.f32.gmra.mxu0 %v995
        %v2458 = vpop.f32.mrf.mxu0
        %v2459 = vadd.f32 %v2058, %v2458
        %2460 = vmatmul.f32.gmra.mxu0 %v997
        %v2461 = vpop.f32.mrf.mxu0
        %v2462 = vadd.f32 %v2061, %v2461
        %2463 = vmatmul.f32.gmra.mxu0 %v999
        %v2464 = vpop.f32.mrf.mxu0
        %v2465 = vadd.f32 %v2064, %v2464
        %2466 = vmatmul.f32.gmra.mxu0 %v1001
        %v2467 = vpop.f32.mrf.mxu0
        %v2468 = vadd.f32 %v2067, %v2467
        %2469 = vmatmul.f32.gmra.mxu0 %v1003
        %v2470 = vpop.f32.mrf.mxu0
        %v2471 = vadd.f32 %v2070, %v2470
        %2472 = vmatmul.f32.gmra.mxu0 %v1005
        %v2473 = vpop.f32.mrf.mxu0
        %v2474 = vadd.f32 %v2073, %v2473
        %2475 = vmatmul.f32.gmra.mxu0 %v1007
        %v2476 = vpop.f32.mrf.mxu0
        %v2477 = vadd.f32 %v2076, %v2476
        %2478 = vmatmul.f32.gmra.mxu0 %v1009
        %v2479 = vpop.f32.mrf.mxu0
        %v2480 = vadd.f32 %v2079, %v2479
        %2481 = vmatmul.f32.gmra.mxu0 %v1011
        %v2482 = vpop.f32.mrf.mxu0
        %v2483 = vadd.f32 %v2082, %v2482
        %2484 = vmatmul.f32.gmra.mxu0 %v1013
        %v2485 = vpop.f32.mrf.mxu0
        %v2486 = vadd.f32 %v2085, %v2485
        %2487 = vmatmul.f32.gmra.mxu0 %v1015
        %v2488 = vpop.f32.mrf.mxu0
        %v2489 = vadd.f32 %v2088, %v2488
        %2490 = vmatmul.f32.gmra.mxu0 %v1017
        %v2491 = vpop.f32.mrf.mxu0
        %v2492 = vadd.f32 %v2091, %v2491
        %2493 = vmatmul.f32.gmra.mxu0 %v1019
        %v2494 = vpop.f32.mrf.mxu0
        %v2495 = vadd.f32 %v2094, %v2494
        %2496 = vmatmul.f32.gmra.mxu0 %v1021
        %v2497 = vpop.f32.mrf.mxu0
        %v2498 = vadd.f32 %v2097, %v2497
        %2499 = vmatmul.f32.gmra.mxu0 %v1023
        %v2500 = vpop.f32.mrf.mxu0
        %v2501 = vadd.f32 %v2100, %v2500
        %2502 = vmatmul.f32.gmra.mxu0 %v1025
        %v2503 = vpop.f32.mrf.mxu0
        %v2504 = vadd.f32 %v2103, %v2503
        %2505 = vmatmul.f32.gmra.mxu0 %v1027
        %v2506 = vpop.f32.mrf.mxu0
        %v2507 = vadd.f32 %v2106, %v2506
        %2508 = vmatmul.f32.gmra.mxu0 %v1029
        %v2509 = vpop.f32.mrf.mxu0
        %v2510 = vadd.f32 %v2109, %v2509
        %2511 = vmatmul.f32.gmra.mxu0 %v1031
        %v2512 = vpop.f32.mrf.mxu0
        %v2513 = vadd.f32 %v2112, %v2512
        %2514 = vmatmul.f32.gmra.mxu0 %v1033
        %v2515 = vpop.f32.mrf.mxu0
        %v2516 = vadd.f32 %v2115, %v2515
        %2517 = vmatmul.f32.gmra.mxu0 %v1035
        %v2518 = vpop.f32.mrf.mxu0
        %v2519 = vadd.f32 %v2118, %v2518
        %2520 = vmatmul.f32.gmra.mxu0 %v1037
        %v2521 = vpop.f32.mrf.mxu0
        %v2522 = vadd.f32 %v2121, %v2521
        %2523 = vmatmul.f32.gmra.mxu0 %v1039
        %v2524 = vpop.f32.mrf.mxu0
        %v2525 = vadd.f32 %v2124, %v2524
        %2526 = vmatmul.f32.gmra.mxu0 %v1041
        %v2527 = vpop.f32.mrf.mxu0
        %v2528 = vadd.f32 %v2127, %v2527
        %2529 = vmatmul.f32.gmra.mxu0 %v1043
        %v2530 = vpop.f32.mrf.mxu0
        %v2531 = vadd.f32 %v2130, %v2530
        %2532 = vmatmul.f32.gmra.mxu0 %v1045
        %v2533 = vpop.f32.mrf.mxu0
        %v2534 = vadd.f32 %v2133, %v2533
        %2535 = vmatmul.f32.gmra.mxu0 %v1047
        %v2536 = vpop.f32.mrf.mxu0
        %v2537 = vadd.f32 %v2136, %v2536
        %2538 = vmatmul.f32.gmra.mxu0 %v1049
        %v2539 = vpop.f32.mrf.mxu0
        %v2540 = vadd.f32 %v2139, %v2539
        %2541 = vmatmul.f32.gmra.mxu0 %v1051
        %v2542 = vpop.f32.mrf.mxu0
        %v2543 = vadd.f32 %v2142, %v2542
        %2544 = vmatmul.f32.gmra.mxu0 %v1053
        %v2545 = vpop.f32.mrf.mxu0
        %v2546 = vadd.f32 %v2145, %v2545
        %2547 = vmatmul.f32.gmra.mxu0 %v1055
        %v2548 = vpop.f32.mrf.mxu0
        %v2549 = vadd.f32 %v2148, %v2548
        %2550 = vmatmul.f32.gmra.mxu0 %v1057
        %v2551 = vpop.f32.mrf.mxu0
        %v2552 = vadd.f32 %v2151, %v2551
        %2553 = vmatmul.f32.gmra.mxu0 %v1059
        %v2554 = vpop.f32.mrf.mxu0
        %v2555 = vadd.f32 %v2154, %v2554
        %2556 = vmatmul.f32.gmra.mxu0 %v1061
        %v2557 = vpop.f32.mrf.mxu0
        %v2558 = vadd.f32 %v2157, %v2557
        %2559 = vmatmul.f32.gmra.mxu0 %v1063
        %v2560 = vpop.f32.mrf.mxu0
        %v2561 = vadd.f32 %v2160, %v2560
        %2562 = vmatmul.f32.gmra.mxu0 %v1065
        %v2563 = vpop.f32.mrf.mxu0
        %v2564 = vadd.f32 %v2163, %v2563
        %2565 = vmatmul.f32.gmra.mxu0 %v1067
        %v2566 = vpop.f32.mrf.mxu0
        %v2567 = vadd.f32 %v2166, %v2566
        %2568 = vmatmul.f32.gmra.mxu0 %v1069
        %v2569 = vpop.f32.mrf.mxu0
        %v2570 = vadd.f32 %v2169, %v2569
        %2571 = vmatmul.f32.gmra.mxu0 %v1071
        %v2572 = vpop.f32.mrf.mxu0
        %v2573 = vadd.f32 %v2172, %v2572
        %2574 = vmatmul.f32.gmra.mxu0 %v1073
        %v2575 = vpop.f32.mrf.mxu0
        %v2576 = vadd.f32 %v2175, %v2575
        %2577 = vmatmul.f32.gmra.mxu0 %v1075
        %v2578 = vpop.f32.mrf.mxu0
        %v2579 = vadd.f32 %v2178, %v2578
        %2580 = vmatmul.f32.gmra.mxu0 %v1077
        %v2581 = vpop.f32.mrf.mxu0
        %v2582 = vadd.f32 %v2181, %v2581
        %2583 = vmatmul.f32.gmra.mxu0 %v1079
        %v2584 = vpop.f32.mrf.mxu0
        %v2585 = vadd.f32 %v2184, %v2584
        %2586 = vmatmul.f32.gmra.mxu0 %v1081
        %v2587 = vpop.f32.mrf.mxu0
        %v2588 = vadd.f32 %v2187, %v2587
        %2589 = vmatmul.f32.gmra.mxu0 %v1083
        %v2590 = vpop.f32.mrf.mxu0
        %v2591 = vadd.f32 %v2190, %v2590
        %2592 = vmatmul.f32.gmra.mxu0 %v1085
        %v2593 = vpop.f32.mrf.mxu0
        %v2594 = vadd.f32 %v2193, %v2593
        %2595 = vmatmul.f32.gmra.mxu0 %v1087
        %v2596 = vpop.f32.mrf.mxu0
        %v2597 = vadd.f32 %v2196, %v2596
        %2598 = vmatmul.f32.gmra.mxu0 %v1089
        %v2599 = vpop.f32.mrf.mxu0
        %v2600 = vadd.f32 %v2199, %v2599
        %2601 = vmatmul.f32.gmra.mxu0 %v1091
        %v2602 = vpop.f32.mrf.mxu0
        %v2603 = vadd.f32 %v2202, %v2602
        %2604 = vmatmul.f32.gmra.mxu0 %v1093
        %v2605 = vpop.f32.mrf.mxu0
        %v2606 = vadd.f32 %v2205, %v2605
        %2607 = vmatmul.f32.gmra.mxu0 %v1095
        %v2608 = vpop.f32.mrf.mxu0
        %v2609 = vadd.f32 %v2208, %v2608
        %2610 = vmatmul.f32.gmra.mxu0 %v1097
        %v2611 = vpop.f32.mrf.mxu0
        %v2612 = vadd.f32 %v2211, %v2611
        %2613 = vmatmul.f32.gmra.mxu0 %v1099
        %v2614 = vpop.f32.mrf.mxu0
        %v2615 = vadd.f32 %v2214, %v2614
        %2616 = vmatmul.f32.gmra.mxu0 %v1101
        %v2617 = vpop.f32.mrf.mxu0
        %v2618 = vadd.f32 %v2217, %v2617
        %2619 = vmatmul.f32.gmra.mxu0 %v1103
        %v2620 = vpop.f32.mrf.mxu0
        %v2621 = vadd.f32 %v2220, %v2620
        %2622 = vmatmul.f32.gmra.mxu0 %v1105
        %v2623 = vpop.f32.mrf.mxu0
        %v2624 = vadd.f32 %v2223, %v2623
        %2625 = vmatmul.f32.gmra.mxu0 %v1107
        %v2626 = vpop.f32.mrf.mxu0
        %v2627 = vadd.f32 %v2226, %v2626
        %2628 = vmatmul.f32.gmra.mxu0 %v1109
        %v2629 = vpop.f32.mrf.mxu0
        %v2630 = vadd.f32 %v2229, %v2629
        %2631 = vmatmul.f32.gmra.mxu0 %v1111
        %v2632 = vpop.f32.mrf.mxu0
        %v2633 = vadd.f32 %v2232, %v2632
        %2634 = vmatmul.f32.gmra.mxu0 %v1113
        %v2635 = vpop.f32.mrf.mxu0
        %v2636 = vadd.f32 %v2235, %v2635
        %2637 = vmatmul.f32.gmra.mxu0 %v1115
        %v2638 = vpop.f32.mrf.mxu0
        %v2639 = vadd.f32 %v2238, %v2638
        %2640 = vmatmul.f32.gmra.mxu0 %v1117
        %v2641 = vpop.f32.mrf.mxu0
        %v2642 = vadd.f32 %v2241, %v2641
        %2643 = vmatmul.f32.gmra.mxu0 %v1119
        %v2644 = vpop.f32.mrf.mxu0
        %v2645 = vadd.f32 %v2244, %v2644
        %2646 = vmatmul.f32.gmra.mxu0 %v1121
        %v2647 = vpop.f32.mrf.mxu0
        %v2648 = vadd.f32 %v2247, %v2647
        %2649 = vmatmul.f32.gmra.mxu0 %v1123
        %v2650 = vpop.f32.mrf.mxu0
        %v2651 = vadd.f32 %v2250, %v2650
        %2652 = vmatmul.f32.gmra.mxu0 %v1125
        %v2653 = vpop.f32.mrf.mxu0
        %v2654 = vadd.f32 %v2253, %v2653
        %2655 = vmatmul.f32.gmra.mxu0 %v1127
        %v2656 = vpop.f32.mrf.mxu0
        %v2657 = vadd.f32 %v2256, %v2656
        %2658 = vmatmul.f32.gmra.mxu0 %v1129
        %v2659 = vpop.f32.mrf.mxu0
        %v2660 = vadd.f32 %v2259, %v2659
        %2661 = vmatmul.f32.gmra.mxu0 %v1131
        %v2662 = vpop.f32.mrf.mxu0
        %v2663 = vadd.f32 %v2262, %v2662
        %2664 = vmatmul.f32.gmra.mxu0 %v1133
        %v2665 = vpop.f32.mrf.mxu0
        %v2666 = vadd.f32 %v2265, %v2665
        %2667 = vmatmul.f32.gmra.mxu0 %v1135
        %v2668 = vpop.f32.mrf.mxu0
        %v2669 = vadd.f32 %v2268, %v2668
        %2670 = vmatmul.f32.gmra.mxu0 %v1137
        %v2671 = vpop.f32.mrf.mxu0
        %v2672 = vadd.f32 %v2271, %v2671
        %2673 = vmatmul.f32.gmra.mxu0 %v1139
        %v2674 = vpop.f32.mrf.mxu0
        %v2675 = vadd.f32 %v2274, %v2674
        %2676 = vmatmul.f32.gmra.mxu0 %v1141
        %v2677 = vpop.f32.mrf.mxu0
        %v2678 = vadd.f32 %v2277, %v2677
        %2679 = vmatmul.f32.gmra.mxu0 %v1143
        %v2680 = vpop.f32.mrf.mxu0
        %v2681 = vadd.f32 %v2280, %v2680
        %2682 = vmatmul.f32.gmra.mxu0 %v1145
        %v2683 = vpop.f32.mrf.mxu0
        %v2684 = vadd.f32 %v2283, %v2683
        %2685 = vmatmul.f32.gmra.mxu0 %v1147
        %v2686 = vpop.f32.mrf.mxu0
        %v2687 = vadd.f32 %v2286, %v2686
        %2688 = vmatmul.f32.gmra.mxu0 %v1149
        %v2689 = vpop.f32.mrf.mxu0
        %v2690 = vadd.f32 %v2289, %v2689
        %2691 = vmatmul.f32.gmra.mxu0 %v1151
        %v2692 = vpop.f32.mrf.mxu0
        %v2693 = vadd.f32 %v2292, %v2692
        %2694 = vmatmul.f32.gmra.mxu0 %v1153
        %v2695 = vpop.f32.mrf.mxu0
        %v2696 = vadd.f32 %v2295, %v2695
        %2697 = vmatmul.f32.gmra.mxu0 %v1155
        %v2698 = vpop.f32.mrf.mxu0
        %v2699 = vadd.f32 %v2298, %v2698
        %2700 = vmatmul.f32.gmra.mxu0 %v1157
        %v2701 = vpop.f32.mrf.mxu0
        %v2702 = vadd.f32 %v2301, %v2701
        %2703 = vmatmul.f32.gmra.mxu0 %v1159
        %v2704 = vpop.f32.mrf.mxu0
        %v2705 = vadd.f32 %v2304, %v2704
        %2706 = vmatmul.f32.gmra.mxu0 %v1161
        %v2707 = vpop.f32.mrf.mxu0
        %v2708 = vadd.f32 %v2307, %v2707
        %2709 = vmatmul.f32.gmra.mxu0 %v1163
        %v2710 = vpop.f32.mrf.mxu0
        %v2711 = vadd.f32 %v2310, %v2710
        %2712 = vmatmul.f32.gmra.mxu0 %v1165
        %v2713 = vpop.f32.mrf.mxu0
        %v2714 = vadd.f32 %v2313, %v2713
        %2715 = vmatmul.f32.gmra.mxu0 %v1167
        %v2716 = vpop.f32.mrf.mxu0
        %v2717 = vadd.f32 %v2316, %v2716
        %2718 = vmatmul.f32.gmra.mxu0 %v1169
        %v2719 = vpop.f32.mrf.mxu0
        %v2720 = vadd.f32 %v2319, %v2719
        %2721 = vmatmul.f32.gmra.mxu0 %v1171
        %v2722 = vpop.f32.mrf.mxu0
        %v2723 = vadd.f32 %v2322, %v2722
        %2724 = vmatmul.f32.gmra.mxu0 %v1173
        %v2725 = vpop.f32.mrf.mxu0
        %v2726 = vadd.f32 %v2325, %v2725
        %2727 = vmatmul.f32.gmra.mxu0 %v1175
        %v2728 = vpop.f32.mrf.mxu0
        %v2729 = vadd.f32 %v2328, %v2728
        %2730 = vmatmul.f32.gmra.mxu0 %v1177
        %v2731 = vpop.f32.mrf.mxu0
        %v2732 = vadd.f32 %v2331, %v2731
        %2733 = vmatmul.f32.gmra.mxu0 %v1179
        %v2734 = vpop.f32.mrf.mxu0
        %v2735 = vadd.f32 %v2334, %v2734
        %2736 = vmatmul.f32.gmra.mxu0 %v1181
        %v2737 = vpop.f32.mrf.mxu0
        %v2738 = vadd.f32 %v2337, %v2737
        %2739 = vmatmul.f32.gmra.mxu0 %v1183
        %v2740 = vpop.f32.mrf.mxu0
        %v2741 = vadd.f32 %v2340, %v2740
        %2742 = vmatmul.f32.gmra.mxu0 %v1185
        %v2743 = vpop.f32.mrf.mxu0
        %v2744 = vadd.f32 %v2343, %v2743
        %2745 = vmatmul.f32.gmra.mxu0 %v1187
        %v2746 = vpop.f32.mrf.mxu0
        %v2747 = vadd.f32 %v2346, %v2746
        %2748 = vmatmul.f32.gmra.mxu0 %v1189
        %v2749 = vpop.f32.mrf.mxu0
        %v2750 = vadd.f32 %v2349, %v2749
        %2751 = vmatmul.f32.gmra.mxu0 %v1191
        %v2752 = vpop.f32.mrf.mxu0
        %v2753 = vadd.f32 %v2352, %v2752
        %2754 = vmatmul.f32.gmra.mxu0 %v1193
        %v2755 = vpop.f32.mrf.mxu0
        %v2756 = vadd.f32 %v2355, %v2755
        %2757 = vmatmul.f32.gmra.mxu0 %v1195
        %v2758 = vpop.f32.mrf.mxu0
        %v2759 = vadd.f32 %v2358, %v2758
        %2760 = vmatmul.f32.gmra.mxu0 %v1197
        %v2761 = vpop.f32.mrf.mxu0
        %v2762 = vadd.f32 %v2361, %v2761
        %2763 = vmatmul.f32.gmra.mxu0 %v1199
        %v2764 = vpop.f32.mrf.mxu0
        %v2765 = vadd.f32 %v2364, %v2764
        %2766 = vmatmul.f32.gmra.mxu0 %v1201
        %v2767 = vpop.f32.mrf.mxu0
        %v2768 = vadd.f32 %v2367, %v2767
        %2769 = vmatmul.f32.gmra.mxu0 %v1203
        %v2770 = vpop.f32.mrf.mxu0
        %v2771 = vadd.f32 %v2370, %v2770
        %2772 = vmatmul.f32.gmra.mxu0 %v1205
        %v2773 = vpop.f32.mrf.mxu0
        %v2774 = vadd.f32 %v2373, %v2773
        %2775 = vdwg.mxu0
        %v2776 = vmax.f32 %v2393, 0.0
        %v2777 = vmax.f32 %v2396, 0.0
        %v2778 = vmax.f32 %v2399, 0.0
        %v2779 = vmax.f32 %v2402, 0.0
        %v2780 = vmax.f32 %v2405, 0.0
        %v2781 = vmax.f32 %v2408, 0.0
        %v2782 = vmax.f32 %v2411, 0.0
        %v2783 = vmax.f32 %v2414, 0.0
        %v2784 = vmax.f32 %v2417, 0.0
        %v2785 = vmax.f32 %v2420, 0.0
        %v2786 = vmax.f32 %v2423, 0.0
        %v2787 = vmax.f32 %v2426, 0.0
        %v2788 = vmax.f32 %v2429, 0.0
        %v2789 = vmax.f32 %v2432, 0.0
        %v2790 = vmax.f32 %v2435, 0.0
        %v2791 = vmax.f32 %v2438, 0.0
        %v2792 = vmax.f32 %v2441, 0.0
        %v2793 = vmax.f32 %v2444, 0.0
        %v2794 = vmax.f32 %v2447, 0.0
        %v2795 = vmax.f32 %v2450, 0.0
        %v2796 = vmax.f32 %v2453, 0.0
        %v2797 = vmax.f32 %v2456, 0.0
        %v2798 = vmax.f32 %v2459, 0.0
        %v2799 = vmax.f32 %v2462, 0.0
        %v2800 = vmax.f32 %v2465, 0.0
        %v2801 = vmax.f32 %v2468, 0.0
        %v2802 = vmax.f32 %v2471, 0.0
        %v2803 = vmax.f32 %v2474, 0.0
        %v2804 = vmax.f32 %v2477, 0.0
        %v2805 = vmax.f32 %v2480, 0.0
        %v2806 = vmax.f32 %v2483, 0.0
        %v2807 = vmax.f32 %v2486, 0.0
        %v2808 = vmax.f32 %v2489, 0.0
        %v2809 = vmax.f32 %v2492, 0.0
        %v2810 = vmax.f32 %v2495, 0.0
        %v2811 = vmax.f32 %v2498, 0.0
        %v2812 = vmax.f32 %v2501, 0.0
        %v2813 = vmax.f32 %v2504, 0.0
        %v2814 = vmax.f32 %v2507, 0.0
        %v2815 = vmax.f32 %v2510, 0.0
        %v2816 = vmax.f32 %v2513, 0.0
        %v2817 = vmax.f32 %v2516, 0.0
        %v2818 = vmax.f32 %v2519, 0.0
        %v2819 = vmax.f32 %v2522, 0.0
        %v2820 = vmax.f32 %v2525, 0.0
        %v2821 = vmax.f32 %v2528, 0.0
        %v2822 = vmax.f32 %v2531, 0.0
        %v2823 = vmax.f32 %v2534, 0.0
        %v2824 = vmax.f32 %v2537, 0.0
        %v2825 = vmax.f32 %v2540, 0.0
        %v2826 = vmax.f32 %v2543, 0.0
        %v2827 = vmax.f32 %v2546, 0.0
        %v2828 = vmax.f32 %v2549, 0.0
        %v2829 = vmax.f32 %v2552, 0.0
        %v2830 = vmax.f32 %v2555, 0.0
        %v2831 = vmax.f32 %v2558, 0.0
        %v2832 = vmax.f32 %v2561, 0.0
        %v2833 = vmax.f32 %v2564, 0.0
        %v2834 = vmax.f32 %v2567, 0.0
        %v2835 = vmax.f32 %v2570, 0.0
        %v2836 = vmax.f32 %v2573, 0.0
        %v2837 = vmax.f32 %v2576, 0.0
        %v2838 = vmax.f32 %v2579, 0.0
        %v2839 = vmax.f32 %v2582, 0.0
        %v2840 = vmax.f32 %v2585, 0.0
        %v2841 = vmax.f32 %v2588, 0.0
        %v2842 = vmax.f32 %v2591, 0.0
        %v2843 = vmax.f32 %v2594, 0.0
        %v2844 = vmax.f32 %v2597, 0.0
        %v2845 = vmax.f32 %v2600, 0.0
        %v2846 = vmax.f32 %v2603, 0.0
        %v2847 = vmax.f32 %v2606, 0.0
        %v2848 = vmax.f32 %v2609, 0.0
        %v2849 = vmax.f32 %v2612, 0.0
        %v2850 = vmax.f32 %v2615, 0.0
        %v2851 = vmax.f32 %v2618, 0.0
        %v2852 = vmax.f32 %v2621, 0.0
        %v2853 = vmax.f32 %v2624, 0.0
        %v2854 = vmax.f32 %v2627, 0.0
        %v2855 = vmax.f32 %v2630, 0.0
        %v2856 = vmax.f32 %v2633, 0.0
        %v2857 = vmax.f32 %v2636, 0.0
        %v2858 = vmax.f32 %v2639, 0.0
        %v2859 = vmax.f32 %v2642, 0.0
        %v2860 = vmax.f32 %v2645, 0.0
        %v2861 = vmax.f32 %v2648, 0.0
        %v2862 = vmax.f32 %v2651, 0.0
        %v2863 = vmax.f32 %v2654, 0.0
        %v2864 = vmax.f32 %v2657, 0.0
        %v2865 = vmax.f32 %v2660, 0.0
        %v2866 = vmax.f32 %v2663, 0.0
        %v2867 = vmax.f32 %v2666, 0.0
        %v2868 = vmax.f32 %v2669, 0.0
        %v2869 = vmax.f32 %v2672, 0.0
        %v2870 = vmax.f32 %v2675, 0.0
        %v2871 = vmax.f32 %v2678, 0.0
        %v2872 = vmax.f32 %v2681, 0.0
        %v2873 = vmax.f32 %v2684, 0.0
        %v2874 = vmax.f32 %v2687, 0.0
        %v2875 = vmax.f32 %v2690, 0.0
        %v2876 = vmax.f32 %v2693, 0.0
        %v2877 = vmax.f32 %v2696, 0.0
        %v2878 = vmax.f32 %v2699, 0.0
        %v2879 = vmax.f32 %v2702, 0.0
        %v2880 = vmax.f32 %v2705, 0.0
        %v2881 = vmax.f32 %v2708, 0.0
        %v2882 = vmax.f32 %v2711, 0.0
        %v2883 = vmax.f32 %v2714, 0.0
        %v2884 = vmax.f32 %v2717, 0.0
        %v2885 = vmax.f32 %v2720, 0.0
        %v2886 = vmax.f32 %v2723, 0.0
        %v2887 = vmax.f32 %v2726, 0.0
        %v2888 = vmax.f32 %v2729, 0.0
        %v2889 = vmax.f32 %v2732, 0.0
        %v2890 = vmax.f32 %v2735, 0.0
        %v2891 = vmax.f32 %v2738, 0.0
        %v2892 = vmax.f32 %v2741, 0.0
        %v2893 = vmax.f32 %v2744, 0.0
        %v2894 = vmax.f32 %v2747, 0.0
        %v2895 = vmax.f32 %v2750, 0.0
        %v2896 = vmax.f32 %v2753, 0.0
        %v2897 = vmax.f32 %v2756, 0.0
        %v2898 = vmax.f32 %v2759, 0.0
        %v2899 = vmax.f32 %v2762, 0.0
        %v2900 = vmax.f32 %v2765, 0.0
        %v2901 = vmax.f32 %v2768, 0.0
        %v2902 = vmax.f32 %v2771, 0.0
        %v2903 = vmax.f32 %v2774, 0.0
        %v2904 = vld [vmem:[#allocation10] sm:$0xff]
        %v2905 = vld [vmem:[#allocation10 + $0x8] sm:$0xff]
        %v2906 = vld [vmem:[#allocation10 + $0x10] sm:$0xff]
        %v2907 = vld [vmem:[#allocation10 + $0x18] sm:$0xff]
        %v2908 = vld [vmem:[#allocation10 + $0x20] sm:$0xff]
        %v2909 = vld [vmem:[#allocation10 + $0x28] sm:$0xff]
        %v2910 = vld [vmem:[#allocation10 + $0x30] sm:$0xff]
        %v2911 = vld [vmem:[#allocation10 + $0x38] sm:$0xff]
        %v2912 = vld [vmem:[#allocation10 + $0x40] sm:$0xff]
        %v2913 = vld [vmem:[#allocation10 + $0x48] sm:$0xff]
        %v2914 = vld [vmem:[#allocation10 + $0x50] sm:$0xff]
        %v2915 = vld [vmem:[#allocation10 + $0x58] sm:$0xff]
        %v2916 = vld [vmem:[#allocation10 + $0x60] sm:$0xff]
        %v2917 = vld [vmem:[#allocation10 + $0x68] sm:$0xff]
        %v2918 = vld [vmem:[#allocation10 + $0x70] sm:$0xff]
        %v2919 = vld [vmem:[#allocation10 + $0x78] sm:$0xff]
        %v2920 = vld [vmem:[#allocation10 + $0x80] sm:$0xff]
        %v2921 = vld [vmem:[#allocation10 + $0x88] sm:$0xff]
        %v2922 = vld [vmem:[#allocation10 + $0x90] sm:$0xff]
        %v2923 = vld [vmem:[#allocation10 + $0x98] sm:$0xff]
        %v2924 = vld [vmem:[#allocation10 + $0xa0] sm:$0xff]
        %v2925 = vld [vmem:[#allocation10 + $0xa8] sm:$0xff]
        %v2926 = vld [vmem:[#allocation10 + $0xb0] sm:$0xff]
        %v2927 = vld [vmem:[#allocation10 + $0xb8] sm:$0xff]
        %v2928 = vld [vmem:[#allocation10 + $0xc0] sm:$0xff]
        %v2929 = vld [vmem:[#allocation10 + $0xc8] sm:$0xff]
        %v2930 = vld [vmem:[#allocation10 + $0xd0] sm:$0xff]
        %v2931 = vld [vmem:[#allocation10 + $0xd8] sm:$0xff]
        %v2932 = vld [vmem:[#allocation10 + $0xe0] sm:$0xff]
        %v2933 = vld [vmem:[#allocation10 + $0xe8] sm:$0xff]
        %v2934 = vld [vmem:[#allocation10 + $0xf0] sm:$0xff]
        %v2935 = vld [vmem:[#allocation10 + $0xf8] sm:$0xff]
        %v2936 = vld [vmem:[#allocation10 + $0x100] sm:$0xff]
        %v2937 = vld [vmem:[#allocation10 + $0x108] sm:$0xff]
        %v2938 = vld [vmem:[#allocation10 + $0x110] sm:$0xff]
        %v2939 = vld [vmem:[#allocation10 + $0x118] sm:$0xff]
        %v2940 = vld [vmem:[#allocation10 + $0x120] sm:$0xff]
        %v2941 = vld [vmem:[#allocation10 + $0x128] sm:$0xff]
        %v2942 = vld [vmem:[#allocation10 + $0x130] sm:$0xff]
        %v2943 = vld [vmem:[#allocation10 + $0x138] sm:$0xff]
        %v2944 = vld [vmem:[#allocation10 + $0x140] sm:$0xff]
        %v2945 = vld [vmem:[#allocation10 + $0x148] sm:$0xff]
        %v2946 = vld [vmem:[#allocation10 + $0x150] sm:$0xff]
        %v2947 = vld [vmem:[#allocation10 + $0x158] sm:$0xff]
        %v2948 = vld [vmem:[#allocation10 + $0x160] sm:$0xff]
        %v2949 = vld [vmem:[#allocation10 + $0x168] sm:$0xff]
        %v2950 = vld [vmem:[#allocation10 + $0x170] sm:$0xff]
        %v2951 = vld [vmem:[#allocation10 + $0x178] sm:$0xff]
        %v2952 = vld [vmem:[#allocation10 + $0x180] sm:$0xff]
        %v2953 = vld [vmem:[#allocation10 + $0x188] sm:$0xff]
        %v2954 = vld [vmem:[#allocation10 + $0x190] sm:$0xff]
        %v2955 = vld [vmem:[#allocation10 + $0x198] sm:$0xff]
        %v2956 = vld [vmem:[#allocation10 + $0x1a0] sm:$0xff]
        %v2957 = vld [vmem:[#allocation10 + $0x1a8] sm:$0xff]
        %v2958 = vld [vmem:[#allocation10 + $0x1b0] sm:$0xff]
        %v2959 = vld [vmem:[#allocation10 + $0x1b8] sm:$0xff]
        %v2960 = vld [vmem:[#allocation10 + $0x1c0] sm:$0xff]
        %v2961 = vld [vmem:[#allocation10 + $0x1c8] sm:$0xff]
        %v2962 = vld [vmem:[#allocation10 + $0x1d0] sm:$0xff]
        %v2963 = vld [vmem:[#allocation10 + $0x1d8] sm:$0xff]
        %v2964 = vld [vmem:[#allocation10 + $0x1e0] sm:$0xff]
        %v2965 = vld [vmem:[#allocation10 + $0x1e8] sm:$0xff]
        %v2966 = vld [vmem:[#allocation10 + $0x1f0] sm:$0xff]
        %v2967 = vld [vmem:[#allocation10 + $0x1f8] sm:$0xff]
        %v2968 = vld [vmem:[#allocation10 + $0x200] sm:$0xff]
        %v2969 = vld [vmem:[#allocation10 + $0x208] sm:$0xff]
        %v2970 = vld [vmem:[#allocation10 + $0x210] sm:$0xff]
        %v2971 = vld [vmem:[#allocation10 + $0x218] sm:$0xff]
        %v2972 = vld [vmem:[#allocation10 + $0x220] sm:$0xff]
        %v2973 = vld [vmem:[#allocation10 + $0x228] sm:$0xff]
        %v2974 = vld [vmem:[#allocation10 + $0x230] sm:$0xff]
        %v2975 = vld [vmem:[#allocation10 + $0x238] sm:$0xff]
        %v2976 = vld [vmem:[#allocation10 + $0x240] sm:$0xff]
        %v2977 = vld [vmem:[#allocation10 + $0x248] sm:$0xff]
        %v2978 = vld [vmem:[#allocation10 + $0x250] sm:$0xff]
        %v2979 = vld [vmem:[#allocation10 + $0x258] sm:$0xff]
        %v2980 = vld [vmem:[#allocation10 + $0x260] sm:$0xff]
        %v2981 = vld [vmem:[#allocation10 + $0x268] sm:$0xff]
        %v2982 = vld [vmem:[#allocation10 + $0x270] sm:$0xff]
        %v2983 = vld [vmem:[#allocation10 + $0x278] sm:$0xff]
        %v2984 = vld [vmem:[#allocation10 + $0x280] sm:$0xff]
        %v2985 = vld [vmem:[#allocation10 + $0x288] sm:$0xff]
        %v2986 = vld [vmem:[#allocation10 + $0x290] sm:$0xff]
        %v2987 = vld [vmem:[#allocation10 + $0x298] sm:$0xff]
        %v2988 = vld [vmem:[#allocation10 + $0x2a0] sm:$0xff]
        %v2989 = vld [vmem:[#allocation10 + $0x2a8] sm:$0xff]
        %v2990 = vld [vmem:[#allocation10 + $0x2b0] sm:$0xff]
        %v2991 = vld [vmem:[#allocation10 + $0x2b8] sm:$0xff]
        %v2992 = vld [vmem:[#allocation10 + $0x2c0] sm:$0xff]
        %v2993 = vld [vmem:[#allocation10 + $0x2c8] sm:$0xff]
        %v2994 = vld [vmem:[#allocation10 + $0x2d0] sm:$0xff]
        %v2995 = vld [vmem:[#allocation10 + $0x2d8] sm:$0xff]
        %v2996 = vld [vmem:[#allocation10 + $0x2e0] sm:$0xff]
        %v2997 = vld [vmem:[#allocation10 + $0x2e8] sm:$0xff]
        %v2998 = vld [vmem:[#allocation10 + $0x2f0] sm:$0xff]
        %v2999 = vld [vmem:[#allocation10 + $0x2f8] sm:$0xff]
        %v3000 = vld [vmem:[#allocation10 + $0x300] sm:$0xff]
        %v3001 = vld [vmem:[#allocation10 + $0x308] sm:$0xff]
        %v3002 = vld [vmem:[#allocation10 + $0x310] sm:$0xff]
        %v3003 = vld [vmem:[#allocation10 + $0x318] sm:$0xff]
        %v3004 = vld [vmem:[#allocation10 + $0x320] sm:$0xff]
        %v3005 = vld [vmem:[#allocation10 + $0x328] sm:$0xff]
        %v3006 = vld [vmem:[#allocation10 + $0x330] sm:$0xff]
        %v3007 = vld [vmem:[#allocation10 + $0x338] sm:$0xff]
        %v3008 = vld [vmem:[#allocation10 + $0x340] sm:$0xff]
        %v3009 = vld [vmem:[#allocation10 + $0x348] sm:$0xff]
        %v3010 = vld [vmem:[#allocation10 + $0x350] sm:$0xff]
        %v3011 = vld [vmem:[#allocation10 + $0x358] sm:$0xff]
        %v3012 = vld [vmem:[#allocation10 + $0x360] sm:$0xff]
        %v3013 = vld [vmem:[#allocation10 + $0x368] sm:$0xff]
        %v3014 = vld [vmem:[#allocation10 + $0x370] sm:$0xff]
        %v3015 = vld [vmem:[#allocation10 + $0x378] sm:$0xff]
        %v3016 = vld [vmem:[#allocation10 + $0x380] sm:$0xff]
        %v3017 = vld [vmem:[#allocation10 + $0x388] sm:$0xff]
        %v3018 = vld [vmem:[#allocation10 + $0x390] sm:$0xff]
        %v3019 = vld [vmem:[#allocation10 + $0x398] sm:$0xff]
        %v3020 = vld [vmem:[#allocation10 + $0x3a0] sm:$0xff]
        %v3021 = vld [vmem:[#allocation10 + $0x3a8] sm:$0xff]
        %v3022 = vld [vmem:[#allocation10 + $0x3b0] sm:$0xff]
        %v3023 = vld [vmem:[#allocation10 + $0x3b8] sm:$0xff]
        %v3024 = vld [vmem:[#allocation10 + $0x3c0] sm:$0xff]
        %v3025 = vld [vmem:[#allocation10 + $0x3c8] sm:$0xff]
        %v3026 = vld [vmem:[#allocation10 + $0x3d0] sm:$0xff]
        %v3027 = vld [vmem:[#allocation10 + $0x3d8] sm:$0xff]
        %v3028 = vld [vmem:[#allocation10 + $0x3e0] sm:$0xff]
        %v3029 = vld [vmem:[#allocation10 + $0x3e8] sm:$0xff]
        %v3030 = vld [vmem:[#allocation10 + $0x3f0] sm:$0xff]
        %v3031 = vld [vmem:[#allocation10 + $0x3f8] sm:$0xff]
        %v3032 = vld [vmem:[#allocation10 + $0x400] sm:$0xff]
        %v3033 = vld [vmem:[#allocation10 + $0x408] sm:$0xff]
        %v3034 = vld [vmem:[#allocation10 + $0x410] sm:$0xff]
        %v3035 = vld [vmem:[#allocation10 + $0x418] sm:$0xff]
        %v3036 = vld [vmem:[#allocation10 + $0x420] sm:$0xff]
        %v3037 = vld [vmem:[#allocation10 + $0x428] sm:$0xff]
        %v3038 = vld [vmem:[#allocation10 + $0x430] sm:$0xff]
        %v3039 = vld [vmem:[#allocation10 + $0x438] sm:$0xff]
        %v3040 = vld [vmem:[#allocation10 + $0x440] sm:$0xff]
        %v3041 = vld [vmem:[#allocation10 + $0x448] sm:$0xff]
        %v3042 = vld [vmem:[#allocation10 + $0x450] sm:$0xff]
        %v3043 = vld [vmem:[#allocation10 + $0x458] sm:$0xff]
        %v3044 = vld [vmem:[#allocation10 + $0x460] sm:$0xff]
        %v3045 = vld [vmem:[#allocation10 + $0x468] sm:$0xff]
        %v3046 = vld [vmem:[#allocation10 + $0x470] sm:$0xff]
        %v3047 = vld [vmem:[#allocation10 + $0x478] sm:$0xff]
        %v3048 = vld [vmem:[#allocation10 + $0x480] sm:$0xff]
        %v3049 = vld [vmem:[#allocation10 + $0x488] sm:$0xff]
        %v3050 = vld [vmem:[#allocation10 + $0x490] sm:$0xff]
        %v3051 = vld [vmem:[#allocation10 + $0x498] sm:$0xff]
        %v3052 = vld [vmem:[#allocation10 + $0x4a0] sm:$0xff]
        %v3053 = vld [vmem:[#allocation10 + $0x4a8] sm:$0xff]
        %v3054 = vld [vmem:[#allocation10 + $0x4b0] sm:$0xff]
        %v3055 = vld [vmem:[#allocation10 + $0x4b8] sm:$0xff]
        %v3056 = vld [vmem:[#allocation10 + $0x4c0] sm:$0xff]
        %v3057 = vld [vmem:[#allocation10 + $0x4c8] sm:$0xff]
        %v3058 = vld [vmem:[#allocation10 + $0x4d0] sm:$0xff]
        %v3059 = vld [vmem:[#allocation10 + $0x4d8] sm:$0xff]
        %v3060 = vld [vmem:[#allocation10 + $0x4e0] sm:$0xff]
        %v3061 = vld [vmem:[#allocation10 + $0x4e8] sm:$0xff]
        %v3062 = vld [vmem:[#allocation10 + $0x4f0] sm:$0xff]
        %v3063 = vld [vmem:[#allocation10 + $0x4f8] sm:$0xff]
        %v3064 = vld [vmem:[#allocation10 + $0x500] sm:$0xff]
        %v3065 = vld [vmem:[#allocation10 + $0x508] sm:$0xff]
        %v3066 = vld [vmem:[#allocation10 + $0x510] sm:$0xff]
        %v3067 = vld [vmem:[#allocation10 + $0x518] sm:$0xff]
        %v3068 = vld [vmem:[#allocation10 + $0x520] sm:$0xff]
        %v3069 = vld [vmem:[#allocation10 + $0x528] sm:$0xff]
        %v3070 = vld [vmem:[#allocation10 + $0x530] sm:$0xff]
        %v3071 = vld [vmem:[#allocation10 + $0x538] sm:$0xff]
        %v3072 = vld [vmem:[#allocation10 + $0x540] sm:$0xff]
        %v3073 = vld [vmem:[#allocation10 + $0x548] sm:$0xff]
        %v3074 = vld [vmem:[#allocation10 + $0x550] sm:$0xff]
        %v3075 = vld [vmem:[#allocation10 + $0x558] sm:$0xff]
        %v3076 = vld [vmem:[#allocation10 + $0x560] sm:$0xff]
        %v3077 = vld [vmem:[#allocation10 + $0x568] sm:$0xff]
        %v3078 = vld [vmem:[#allocation10 + $0x570] sm:$0xff]
        %v3079 = vld [vmem:[#allocation10 + $0x578] sm:$0xff]
        %v3080 = vld [vmem:[#allocation10 + $0x580] sm:$0xff]
        %v3081 = vld [vmem:[#allocation10 + $0x588] sm:$0xff]
        %v3082 = vld [vmem:[#allocation10 + $0x590] sm:$0xff]
        %v3083 = vld [vmem:[#allocation10 + $0x598] sm:$0xff]
        %v3084 = vld [vmem:[#allocation10 + $0x5a0] sm:$0xff]
        %v3085 = vld [vmem:[#allocation10 + $0x5a8] sm:$0xff]
        %v3086 = vld [vmem:[#allocation10 + $0x5b0] sm:$0xff]
        %v3087 = vld [vmem:[#allocation10 + $0x5b8] sm:$0xff]
        %v3088 = vld [vmem:[#allocation10 + $0x5c0] sm:$0xff]
        %v3089 = vld [vmem:[#allocation10 + $0x5c8] sm:$0xff]
        %v3090 = vld [vmem:[#allocation10 + $0x5d0] sm:$0xff]
        %v3091 = vld [vmem:[#allocation10 + $0x5d8] sm:$0xff]
        %v3092 = vld [vmem:[#allocation10 + $0x5e0] sm:$0xff]
        %v3093 = vld [vmem:[#allocation10 + $0x5e8] sm:$0xff]
        %v3094 = vld [vmem:[#allocation10 + $0x5f0] sm:$0xff]
        %v3095 = vld [vmem:[#allocation10 + $0x5f8] sm:$0xff]
        %v3096 = vld [vmem:[#allocation10 + $0x600] sm:$0xff]
        %v3097 = vld [vmem:[#allocation10 + $0x608] sm:$0xff]
        %v3098 = vld [vmem:[#allocation10 + $0x610] sm:$0xff]
        %v3099 = vld [vmem:[#allocation10 + $0x618] sm:$0xff]
        %v3100 = vld [vmem:[#allocation10 + $0x620] sm:$0xff]
        %v3101 = vld [vmem:[#allocation10 + $0x628] sm:$0xff]
        %v3102 = vld [vmem:[#allocation10 + $0x630] sm:$0xff]
        %v3103 = vld [vmem:[#allocation10 + $0x638] sm:$0xff]
        %v3104 = vld [vmem:[#allocation10 + $0x640] sm:$0xff]
        %v3105 = vld [vmem:[#allocation10 + $0x648] sm:$0xff]
        %v3106 = vld [vmem:[#allocation10 + $0x650] sm:$0xff]
        %v3107 = vld [vmem:[#allocation10 + $0x658] sm:$0xff]
        %v3108 = vld [vmem:[#allocation10 + $0x660] sm:$0xff]
        %v3109 = vld [vmem:[#allocation10 + $0x668] sm:$0xff]
        %v3110 = vld [vmem:[#allocation10 + $0x670] sm:$0xff]
        %v3111 = vld [vmem:[#allocation10 + $0x678] sm:$0xff]
        %v3112 = vld [vmem:[#allocation10 + $0x680] sm:$0xff]
        %v3113 = vld [vmem:[#allocation10 + $0x688] sm:$0xff]
        %v3114 = vld [vmem:[#allocation10 + $0x690] sm:$0xff]
        %v3115 = vld [vmem:[#allocation10 + $0x698] sm:$0xff]
        %v3116 = vld [vmem:[#allocation10 + $0x6a0] sm:$0xff]
        %v3117 = vld [vmem:[#allocation10 + $0x6a8] sm:$0xff]
        %v3118 = vld [vmem:[#allocation10 + $0x6b0] sm:$0xff]
        %v3119 = vld [vmem:[#allocation10 + $0x6b8] sm:$0xff]
        %v3120 = vld [vmem:[#allocation10 + $0x6c0] sm:$0xff]
        %v3121 = vld [vmem:[#allocation10 + $0x6c8] sm:$0xff]
        %v3122 = vld [vmem:[#allocation10 + $0x6d0] sm:$0xff]
        %v3123 = vld [vmem:[#allocation10 + $0x6d8] sm:$0xff]
        %v3124 = vld [vmem:[#allocation10 + $0x6e0] sm:$0xff]
        %v3125 = vld [vmem:[#allocation10 + $0x6e8] sm:$0xff]
        %v3126 = vld [vmem:[#allocation10 + $0x6f0] sm:$0xff]
        %v3127 = vld [vmem:[#allocation10 + $0x6f8] sm:$0xff]
        %v3128 = vld [vmem:[#allocation10 + $0x700] sm:$0xff]
        %v3129 = vld [vmem:[#allocation10 + $0x708] sm:$0xff]
        %v3130 = vld [vmem:[#allocation10 + $0x710] sm:$0xff]
        %v3131 = vld [vmem:[#allocation10 + $0x718] sm:$0xff]
        %v3132 = vld [vmem:[#allocation10 + $0x720] sm:$0xff]
        %v3133 = vld [vmem:[#allocation10 + $0x728] sm:$0xff]
        %v3134 = vld [vmem:[#allocation10 + $0x730] sm:$0xff]
        %v3135 = vld [vmem:[#allocation10 + $0x738] sm:$0xff]
        %v3136 = vld [vmem:[#allocation10 + $0x740] sm:$0xff]
        %v3137 = vld [vmem:[#allocation10 + $0x748] sm:$0xff]
        %v3138 = vld [vmem:[#allocation10 + $0x750] sm:$0xff]
        %v3139 = vld [vmem:[#allocation10 + $0x758] sm:$0xff]
        %v3140 = vld [vmem:[#allocation10 + $0x760] sm:$0xff]
        %v3141 = vld [vmem:[#allocation10 + $0x768] sm:$0xff]
        %v3142 = vld [vmem:[#allocation10 + $0x770] sm:$0xff]
        %v3143 = vld [vmem:[#allocation10 + $0x778] sm:$0xff]
        %v3144 = vld [vmem:[#allocation10 + $0x780] sm:$0xff]
        %v3145 = vld [vmem:[#allocation10 + $0x788] sm:$0xff]
        %v3146 = vld [vmem:[#allocation10 + $0x790] sm:$0xff]
        %v3147 = vld [vmem:[#allocation10 + $0x798] sm:$0xff]
        %v3148 = vld [vmem:[#allocation10 + $0x7a0] sm:$0xff]
        %v3149 = vld [vmem:[#allocation10 + $0x7a8] sm:$0xff]
        %v3150 = vld [vmem:[#allocation10 + $0x7b0] sm:$0xff]
        %v3151 = vld [vmem:[#allocation10 + $0x7b8] sm:$0xff]
        %v3152 = vld [vmem:[#allocation10 + $0x7c0] sm:$0xff]
        %v3153 = vld [vmem:[#allocation10 + $0x7c8] sm:$0xff]
        %v3154 = vld [vmem:[#allocation10 + $0x7d0] sm:$0xff]
        %v3155 = vld [vmem:[#allocation10 + $0x7d8] sm:$0xff]
        %v3156 = vld [vmem:[#allocation10 + $0x7e0] sm:$0xff]
        %v3157 = vld [vmem:[#allocation10 + $0x7e8] sm:$0xff]
        %v3158 = vld [vmem:[#allocation10 + $0x7f0] sm:$0xff]
        %v3159 = vld [vmem:[#allocation10 + $0x7f8] sm:$0xff]
        %v3160 = vld [vmem:[#allocation10 + $0x800] sm:$0xff]
        %v3161 = vld [vmem:[#allocation10 + $0x808] sm:$0xff]
        %v3162 = vld [vmem:[#allocation10 + $0x810] sm:$0xff]
        %v3163 = vld [vmem:[#allocation10 + $0x818] sm:$0xff]
        %v3164 = vld [vmem:[#allocation10 + $0x820] sm:$0xff]
        %v3165 = vld [vmem:[#allocation10 + $0x828] sm:$0xff]
        %v3166 = vld [vmem:[#allocation10 + $0x830] sm:$0xff]
        %v3167 = vld [vmem:[#allocation10 + $0x838] sm:$0xff]
        %v3168 = vld [vmem:[#allocation10 + $0x840] sm:$0xff]
        %v3169 = vld [vmem:[#allocation10 + $0x848] sm:$0xff]
        %v3170 = vld [vmem:[#allocation10 + $0x850] sm:$0xff]
        %v3171 = vld [vmem:[#allocation10 + $0x858] sm:$0xff]
        %v3172 = vld [vmem:[#allocation10 + $0x860] sm:$0xff]
        %v3173 = vld [vmem:[#allocation10 + $0x868] sm:$0xff]
        %v3174 = vld [vmem:[#allocation10 + $0x870] sm:$0xff]
        %v3175 = vld [vmem:[#allocation10 + $0x878] sm:$0xff]
        %v3176 = vld [vmem:[#allocation10 + $0x880] sm:$0xff]
        %v3177 = vld [vmem:[#allocation10 + $0x888] sm:$0xff]
        %v3178 = vld [vmem:[#allocation10 + $0x890] sm:$0xff]
        %v3179 = vld [vmem:[#allocation10 + $0x898] sm:$0xff]
        %v3180 = vld [vmem:[#allocation10 + $0x8a0] sm:$0xff]
        %v3181 = vld [vmem:[#allocation10 + $0x8a8] sm:$0xff]
        %v3182 = vld [vmem:[#allocation10 + $0x8b0] sm:$0xff]
        %v3183 = vld [vmem:[#allocation10 + $0x8b8] sm:$0xff]
        %v3184 = vld [vmem:[#allocation10 + $0x8c0] sm:$0xff]
        %v3185 = vld [vmem:[#allocation10 + $0x8c8] sm:$0xff]
        %v3186 = vld [vmem:[#allocation10 + $0x8d0] sm:$0xff]
        %v3187 = vld [vmem:[#allocation10 + $0x8d8] sm:$0xff]
        %v3188 = vld [vmem:[#allocation10 + $0x8e0] sm:$0xff]
        %v3189 = vld [vmem:[#allocation10 + $0x8e8] sm:$0xff]
        %v3190 = vld [vmem:[#allocation10 + $0x8f0] sm:$0xff]
        %v3191 = vld [vmem:[#allocation10 + $0x8f8] sm:$0xff]
        %v3192 = vld [vmem:[#allocation10 + $0x900] sm:$0xff]
        %v3193 = vld [vmem:[#allocation10 + $0x908] sm:$0xff]
        %v3194 = vld [vmem:[#allocation10 + $0x910] sm:$0xff]
        %v3195 = vld [vmem:[#allocation10 + $0x918] sm:$0xff]
        %v3196 = vld [vmem:[#allocation10 + $0x920] sm:$0xff]
        %v3197 = vld [vmem:[#allocation10 + $0x928] sm:$0xff]
        %v3198 = vld [vmem:[#allocation10 + $0x930] sm:$0xff]
        %v3199 = vld [vmem:[#allocation10 + $0x938] sm:$0xff]
        %v3200 = vld [vmem:[#allocation10 + $0x940] sm:$0xff]
        %v3201 = vld [vmem:[#allocation10 + $0x948] sm:$0xff]
        %v3202 = vld [vmem:[#allocation10 + $0x950] sm:$0xff]
        %v3203 = vld [vmem:[#allocation10 + $0x958] sm:$0xff]
        %v3204 = vld [vmem:[#allocation10 + $0x960] sm:$0xff]
        %v3205 = vld [vmem:[#allocation10 + $0x968] sm:$0xff]
        %v3206 = vld [vmem:[#allocation10 + $0x970] sm:$0xff]
        %v3207 = vld [vmem:[#allocation10 + $0x978] sm:$0xff]
        %v3208 = vld [vmem:[#allocation10 + $0x980] sm:$0xff]
        %v3209 = vld [vmem:[#allocation10 + $0x988] sm:$0xff]
        %v3210 = vld [vmem:[#allocation10 + $0x990] sm:$0xff]
        %v3211 = vld [vmem:[#allocation10 + $0x998] sm:$0xff]
        %v3212 = vld [vmem:[#allocation10 + $0x9a0] sm:$0xff]
        %v3213 = vld [vmem:[#allocation10 + $0x9a8] sm:$0xff]
        %v3214 = vld [vmem:[#allocation10 + $0x9b0] sm:$0xff]
        %v3215 = vld [vmem:[#allocation10 + $0x9b8] sm:$0xff]
        %v3216 = vld [vmem:[#allocation10 + $0x9c0] sm:$0xff]
        %v3217 = vld [vmem:[#allocation10 + $0x9c8] sm:$0xff]
        %v3218 = vld [vmem:[#allocation10 + $0x9d0] sm:$0xff]
        %v3219 = vld [vmem:[#allocation10 + $0x9d8] sm:$0xff]
        %v3220 = vld [vmem:[#allocation10 + $0x9e0] sm:$0xff]
        %v3221 = vld [vmem:[#allocation10 + $0x9e8] sm:$0xff]
        %v3222 = vld [vmem:[#allocation10 + $0x9f0] sm:$0xff]
        %v3223 = vld [vmem:[#allocation10 + $0x9f8] sm:$0xff]
        %v3224 = vld [vmem:[#allocation10 + $0xa00] sm:$0xff]
        %v3225 = vld [vmem:[#allocation10 + $0xa08] sm:$0xff]
        %v3226 = vld [vmem:[#allocation10 + $0xa10] sm:$0xff]
        %v3227 = vld [vmem:[#allocation10 + $0xa18] sm:$0xff]
        %v3228 = vld [vmem:[#allocation10 + $0xa20] sm:$0xff]
        %v3229 = vld [vmem:[#allocation10 + $0xa28] sm:$0xff]
        %v3230 = vld [vmem:[#allocation10 + $0xa30] sm:$0xff]
        %v3231 = vld [vmem:[#allocation10 + $0xa38] sm:$0xff]
        %v3232 = vld [vmem:[#allocation10 + $0xa40] sm:$0xff]
        %v3233 = vld [vmem:[#allocation10 + $0xa48] sm:$0xff]
        %v3234 = vld [vmem:[#allocation10 + $0xa50] sm:$0xff]
        %v3235 = vld [vmem:[#allocation10 + $0xa58] sm:$0xff]
        %v3236 = vld [vmem:[#allocation10 + $0xa60] sm:$0xff]
        %v3237 = vld [vmem:[#allocation10 + $0xa68] sm:$0xff]
        %v3238 = vld [vmem:[#allocation10 + $0xa70] sm:$0xff]
        %v3239 = vld [vmem:[#allocation10 + $0xa78] sm:$0xff]
        %v3240 = vld [vmem:[#allocation10 + $0xa80] sm:$0xff]
        %v3241 = vld [vmem:[#allocation10 + $0xa88] sm:$0xff]
        %v3242 = vld [vmem:[#allocation10 + $0xa90] sm:$0xff]
        %v3243 = vld [vmem:[#allocation10 + $0xa98] sm:$0xff]
        %v3244 = vld [vmem:[#allocation10 + $0xaa0] sm:$0xff]
        %v3245 = vld [vmem:[#allocation10 + $0xaa8] sm:$0xff]
        %v3246 = vld [vmem:[#allocation10 + $0xab0] sm:$0xff]
        %v3247 = vld [vmem:[#allocation10 + $0xab8] sm:$0xff]
        %v3248 = vld [vmem:[#allocation10 + $0xac0] sm:$0xff]
        %v3249 = vld [vmem:[#allocation10 + $0xac8] sm:$0xff]
        %v3250 = vld [vmem:[#allocation10 + $0xad0] sm:$0xff]
        %v3251 = vld [vmem:[#allocation10 + $0xad8] sm:$0xff]
        %v3252 = vld [vmem:[#allocation10 + $0xae0] sm:$0xff]
        %v3253 = vld [vmem:[#allocation10 + $0xae8] sm:$0xff]
        %v3254 = vld [vmem:[#allocation10 + $0xaf0] sm:$0xff]
        %v3255 = vld [vmem:[#allocation10 + $0xaf8] sm:$0xff]
        %v3256 = vld [vmem:[#allocation10 + $0xb00] sm:$0xff]
        %v3257 = vld [vmem:[#allocation10 + $0xb08] sm:$0xff]
        %v3258 = vld [vmem:[#allocation10 + $0xb10] sm:$0xff]
        %v3259 = vld [vmem:[#allocation10 + $0xb18] sm:$0xff]
        %v3260 = vld [vmem:[#allocation10 + $0xb20] sm:$0xff]
        %v3261 = vld [vmem:[#allocation10 + $0xb28] sm:$0xff]
        %v3262 = vld [vmem:[#allocation10 + $0xb30] sm:$0xff]
        %v3263 = vld [vmem:[#allocation10 + $0xb38] sm:$0xff]
        %v3264 = vld [vmem:[#allocation10 + $0xb40] sm:$0xff]
        %v3265 = vld [vmem:[#allocation10 + $0xb48] sm:$0xff]
        %v3266 = vld [vmem:[#allocation10 + $0xb50] sm:$0xff]
        %v3267 = vld [vmem:[#allocation10 + $0xb58] sm:$0xff]
        %v3268 = vld [vmem:[#allocation10 + $0xb60] sm:$0xff]
        %v3269 = vld [vmem:[#allocation10 + $0xb68] sm:$0xff]
        %v3270 = vld [vmem:[#allocation10 + $0xb70] sm:$0xff]
        %v3271 = vld [vmem:[#allocation10 + $0xb78] sm:$0xff]
        %v3272 = vld [vmem:[#allocation10 + $0xb80] sm:$0xff]
        %v3273 = vld [vmem:[#allocation10 + $0xb88] sm:$0xff]
        %v3274 = vld [vmem:[#allocation10 + $0xb90] sm:$0xff]
        %v3275 = vld [vmem:[#allocation10 + $0xb98] sm:$0xff]
        %v3276 = vld [vmem:[#allocation10 + $0xba0] sm:$0xff]
        %v3277 = vld [vmem:[#allocation10 + $0xba8] sm:$0xff]
        %v3278 = vld [vmem:[#allocation10 + $0xbb0] sm:$0xff]
        %v3279 = vld [vmem:[#allocation10 + $0xbb8] sm:$0xff]
        %v3280 = vld [vmem:[#allocation10 + $0xbc0] sm:$0xff]
        %v3281 = vld [vmem:[#allocation10 + $0xbc8] sm:$0xff]
        %v3282 = vld [vmem:[#allocation10 + $0xbd0] sm:$0xff]
        %v3283 = vld [vmem:[#allocation10 + $0xbd8] sm:$0xff]
        %v3284 = vld [vmem:[#allocation10 + $0xbe0] sm:$0xff]
        %v3285 = vld [vmem:[#allocation10 + $0xbe8] sm:$0xff]
        %v3286 = vld [vmem:[#allocation10 + $0xbf0] sm:$0xff]
        %v3287 = vld [vmem:[#allocation10 + $0xbf8] sm:$0xff]
        %v3288 = vld [vmem:[#allocation10 + $0xc00] sm:$0xff]
        %v3289 = vld [vmem:[#allocation10 + $0xc08] sm:$0xff]
        %v3290 = vld [vmem:[#allocation10 + $0xc10] sm:$0xff]
        %v3291 = vld [vmem:[#allocation10 + $0xc18] sm:$0xff]
        %v3292 = vld [vmem:[#allocation10 + $0xc20] sm:$0xff]
        %v3293 = vld [vmem:[#allocation10 + $0xc28] sm:$0xff]
        %v3294 = vld [vmem:[#allocation10 + $0xc30] sm:$0xff]
        %v3295 = vld [vmem:[#allocation10 + $0xc38] sm:$0xff]
        %v3296 = vld [vmem:[#allocation10 + $0xc40] sm:$0xff]
        %v3297 = vld [vmem:[#allocation10 + $0xc48] sm:$0xff]
        %v3298 = vld [vmem:[#allocation10 + $0xc50] sm:$0xff]
        %v3299 = vld [vmem:[#allocation10 + $0xc58] sm:$0xff]
        %v3300 = vld [vmem:[#allocation10 + $0xc60] sm:$0xff]
        %v3301 = vld [vmem:[#allocation10 + $0xc68] sm:$0xff]
        %v3302 = vld [vmem:[#allocation10 + $0xc70] sm:$0xff]
        %v3303 = vld [vmem:[#allocation10 + $0xc78] sm:$0xff]
        %v3304 = vld [vmem:[#allocation10 + $0xc80] sm:$0xff]
        %v3305 = vld [vmem:[#allocation10 + $0xc88] sm:$0xff]
        %v3306 = vld [vmem:[#allocation10 + $0xc90] sm:$0xff]
        %v3307 = vld [vmem:[#allocation10 + $0xc98] sm:$0xff]
        %v3308 = vld [vmem:[#allocation10 + $0xca0] sm:$0xff]
        %v3309 = vld [vmem:[#allocation10 + $0xca8] sm:$0xff]
        %v3310 = vld [vmem:[#allocation10 + $0xcb0] sm:$0xff]
        %v3311 = vld [vmem:[#allocation10 + $0xcb8] sm:$0xff]
        %v3312 = vld [vmem:[#allocation10 + $0xcc0] sm:$0xff]
        %v3313 = vld [vmem:[#allocation10 + $0xcc8] sm:$0xff]
        %v3314 = vld [vmem:[#allocation10 + $0xcd0] sm:$0xff]
        %v3315 = vld [vmem:[#allocation10 + $0xcd8] sm:$0xff]
        %v3316 = vld [vmem:[#allocation10 + $0xce0] sm:$0xff]
        %v3317 = vld [vmem:[#allocation10 + $0xce8] sm:$0xff]
        %v3318 = vld [vmem:[#allocation10 + $0xcf0] sm:$0xff]
        %v3319 = vld [vmem:[#allocation10 + $0xcf8] sm:$0xff]
        %v3320 = vld [vmem:[#allocation10 + $0xd00] sm:$0xff]
        %v3321 = vld [vmem:[#allocation10 + $0xd08] sm:$0xff]
        %v3322 = vld [vmem:[#allocation10 + $0xd10] sm:$0xff]
        %v3323 = vld [vmem:[#allocation10 + $0xd18] sm:$0xff]
        %v3324 = vld [vmem:[#allocation10 + $0xd20] sm:$0xff]
        %v3325 = vld [vmem:[#allocation10 + $0xd28] sm:$0xff]
        %v3326 = vld [vmem:[#allocation10 + $0xd30] sm:$0xff]
        %v3327 = vld [vmem:[#allocation10 + $0xd38] sm:$0xff]
        %v3328 = vld [vmem:[#allocation10 + $0xd40] sm:$0xff]
        %v3329 = vld [vmem:[#allocation10 + $0xd48] sm:$0xff]
        %v3330 = vld [vmem:[#allocation10 + $0xd50] sm:$0xff]
        %v3331 = vld [vmem:[#allocation10 + $0xd58] sm:$0xff]
        %v3332 = vld [vmem:[#allocation10 + $0xd60] sm:$0xff]
        %v3333 = vld [vmem:[#allocation10 + $0xd68] sm:$0xff]
        %v3334 = vld [vmem:[#allocation10 + $0xd70] sm:$0xff]
        %v3335 = vld [vmem:[#allocation10 + $0xd78] sm:$0xff]
        %v3336 = vld [vmem:[#allocation10 + $0xd80] sm:$0xff]
        %v3337 = vld [vmem:[#allocation10 + $0xd88] sm:$0xff]
        %v3338 = vld [vmem:[#allocation10 + $0xd90] sm:$0xff]
        %v3339 = vld [vmem:[#allocation10 + $0xd98] sm:$0xff]
        %v3340 = vld [vmem:[#allocation10 + $0xda0] sm:$0xff]
        %v3341 = vld [vmem:[#allocation10 + $0xda8] sm:$0xff]
        %v3342 = vld [vmem:[#allocation10 + $0xdb0] sm:$0xff]
        %v3343 = vld [vmem:[#allocation10 + $0xdb8] sm:$0xff]
        %v3344 = vld [vmem:[#allocation10 + $0xdc0] sm:$0xff]
        %v3345 = vld [vmem:[#allocation10 + $0xdc8] sm:$0xff]
        %v3346 = vld [vmem:[#allocation10 + $0xdd0] sm:$0xff]
        %v3347 = vld [vmem:[#allocation10 + $0xdd8] sm:$0xff]
        %v3348 = vld [vmem:[#allocation10 + $0xde0] sm:$0xff]
        %v3349 = vld [vmem:[#allocation10 + $0xde8] sm:$0xff]
        %v3350 = vld [vmem:[#allocation10 + $0xdf0] sm:$0xff]
        %v3351 = vld [vmem:[#allocation10 + $0xdf8] sm:$0xff]
        %v3352 = vld [vmem:[#allocation10 + $0xe00] sm:$0xff]
        %v3353 = vld [vmem:[#allocation10 + $0xe08] sm:$0xff]
        %v3354 = vld [vmem:[#allocation10 + $0xe10] sm:$0xff]
        %v3355 = vld [vmem:[#allocation10 + $0xe18] sm:$0xff]
        %v3356 = vld [vmem:[#allocation10 + $0xe20] sm:$0xff]
        %v3357 = vld [vmem:[#allocation10 + $0xe28] sm:$0xff]
        %v3358 = vld [vmem:[#allocation10 + $0xe30] sm:$0xff]
        %v3359 = vld [vmem:[#allocation10 + $0xe38] sm:$0xff]
        %v3360 = vld [vmem:[#allocation10 + $0xe40] sm:$0xff]
        %v3361 = vld [vmem:[#allocation10 + $0xe48] sm:$0xff]
        %v3362 = vld [vmem:[#allocation10 + $0xe50] sm:$0xff]
        %v3363 = vld [vmem:[#allocation10 + $0xe58] sm:$0xff]
        %v3364 = vld [vmem:[#allocation10 + $0xe60] sm:$0xff]
        %v3365 = vld [vmem:[#allocation10 + $0xe68] sm:$0xff]
        %v3366 = vld [vmem:[#allocation10 + $0xe70] sm:$0xff]
        %v3367 = vld [vmem:[#allocation10 + $0xe78] sm:$0xff]
        %v3368 = vld [vmem:[#allocation10 + $0xe80] sm:$0xff]
        %v3369 = vld [vmem:[#allocation10 + $0xe88] sm:$0xff]
        %v3370 = vld [vmem:[#allocation10 + $0xe90] sm:$0xff]
        %v3371 = vld [vmem:[#allocation10 + $0xe98] sm:$0xff]
        %v3372 = vld [vmem:[#allocation10 + $0xea0] sm:$0xff]
        %v3373 = vld [vmem:[#allocation10 + $0xea8] sm:$0xff]
        %v3374 = vld [vmem:[#allocation10 + $0xeb0] sm:$0xff]
        %v3375 = vld [vmem:[#allocation10 + $0xeb8] sm:$0xff]
        %v3376 = vld [vmem:[#allocation10 + $0xec0] sm:$0xff]
        %v3377 = vld [vmem:[#allocation10 + $0xec8] sm:$0xff]
        %v3378 = vld [vmem:[#allocation10 + $0xed0] sm:$0xff]
        %v3379 = vld [vmem:[#allocation10 + $0xed8] sm:$0xff]
        %v3380 = vld [vmem:[#allocation10 + $0xee0] sm:$0xff]
        %v3381 = vld [vmem:[#allocation10 + $0xee8] sm:$0xff]
        %v3382 = vld [vmem:[#allocation10 + $0xef0] sm:$0xff]
        %v3383 = vld [vmem:[#allocation10 + $0xef8] sm:$0xff]
        %v3384 = vld [vmem:[#allocation10 + $0xf00] sm:$0xff]
        %v3385 = vld [vmem:[#allocation10 + $0xf08] sm:$0xff]
        %v3386 = vld [vmem:[#allocation10 + $0xf10] sm:$0xff]
        %v3387 = vld [vmem:[#allocation10 + $0xf18] sm:$0xff]
        %v3388 = vld [vmem:[#allocation10 + $0xf20] sm:$0xff]
        %v3389 = vld [vmem:[#allocation10 + $0xf28] sm:$0xff]
        %v3390 = vld [vmem:[#allocation10 + $0xf30] sm:$0xff]
        %v3391 = vld [vmem:[#allocation10 + $0xf38] sm:$0xff]
        %v3392 = vld [vmem:[#allocation10 + $0xf40] sm:$0xff]
        %v3393 = vld [vmem:[#allocation10 + $0xf48] sm:$0xff]
        %v3394 = vld [vmem:[#allocation10 + $0xf50] sm:$0xff]
        %v3395 = vld [vmem:[#allocation10 + $0xf58] sm:$0xff]
        %v3396 = vld [vmem:[#allocation10 + $0xf60] sm:$0xff]
        %v3397 = vld [vmem:[#allocation10 + $0xf68] sm:$0xff]
        %v3398 = vld [vmem:[#allocation10 + $0xf70] sm:$0xff]
        %v3399 = vld [vmem:[#allocation10 + $0xf78] sm:$0xff]
        %v3400 = vld [vmem:[#allocation10 + $0xf80] sm:$0xff]
        %v3401 = vld [vmem:[#allocation10 + $0xf88] sm:$0xff]
        %v3402 = vld [vmem:[#allocation10 + $0xf90] sm:$0xff]
        %v3403 = vld [vmem:[#allocation10 + $0xf98] sm:$0xff]
        %v3404 = vld [vmem:[#allocation10 + $0xfa0] sm:$0xff]
        %v3405 = vld [vmem:[#allocation10 + $0xfa8] sm:$0xff]
        %v3406 = vld [vmem:[#allocation10 + $0xfb0] sm:$0xff]
        %v3407 = vld [vmem:[#allocation10 + $0xfb8] sm:$0xff]
        %v3408 = vld [vmem:[#allocation10 + $0xfc0] sm:$0xff]
        %v3409 = vld [vmem:[#allocation10 + $0xfc8] sm:$0xff]
        %v3410 = vld [vmem:[#allocation10 + $0xfd0] sm:$0xff]
        %v3411 = vld [vmem:[#allocation10 + $0xfd8] sm:$0xff]
        %v3412 = vld [vmem:[#allocation10 + $0xfe0] sm:$0xff]
        %v3413 = vld [vmem:[#allocation10 + $0xfe8] sm:$0xff]
        %v3414 = vld [vmem:[#allocation10 + $0xff0] sm:$0xff]
        %v3415 = vld [vmem:[#allocation10 + $0xff8] sm:$0xff]
        %v3416 = vld [vmem:[#allocation12] sm:$0xff]
        %v3417 = vld [vmem:[#allocation12 + $0x8] sm:$0xff]
        %v3418 = vld [vmem:[#allocation12 + $0x10] sm:$0xff]
        %v3419 = vld [vmem:[#allocation12 + $0x18] sm:$0xff]
        %v3420 = vld [vmem:[#allocation12 + $0x20] sm:$0xff]
        %v3421 = vld [vmem:[#allocation12 + $0x28] sm:$0xff]
        %v3422 = vld [vmem:[#allocation12 + $0x30] sm:$0xff]
        %v3423 = vld [vmem:[#allocation12 + $0x38] sm:$0xff]
        %v3424 = vld [vmem:[#allocation12 + $0x40] sm:$0xff]
        %v3425 = vld [vmem:[#allocation12 + $0x48] sm:$0xff]
        %v3426 = vld [vmem:[#allocation12 + $0x50] sm:$0xff]
        %v3427 = vld [vmem:[#allocation12 + $0x58] sm:$0xff]
        %v3428 = vld [vmem:[#allocation12 + $0x60] sm:$0xff]
        %v3429 = vld [vmem:[#allocation12 + $0x68] sm:$0xff]
        %v3430 = vld [vmem:[#allocation12 + $0x70] sm:$0xff]
        %v3431 = vld [vmem:[#allocation12 + $0x78] sm:$0xff]
        %v3432 = vld [vmem:[#allocation12 + $0x80] sm:$0xff]
        %v3433 = vld [vmem:[#allocation12 + $0x88] sm:$0xff]
        %v3434 = vld [vmem:[#allocation12 + $0x90] sm:$0xff]
        %v3435 = vld [vmem:[#allocation12 + $0x98] sm:$0xff]
        %v3436 = vld [vmem:[#allocation12 + $0xa0] sm:$0xff]
        %v3437 = vld [vmem:[#allocation12 + $0xa8] sm:$0xff]
        %v3438 = vld [vmem:[#allocation12 + $0xb0] sm:$0xff]
        %v3439 = vld [vmem:[#allocation12 + $0xb8] sm:$0xff]
        %v3440 = vld [vmem:[#allocation12 + $0xc0] sm:$0xff]
        %v3441 = vld [vmem:[#allocation12 + $0xc8] sm:$0xff]
        %v3442 = vld [vmem:[#allocation12 + $0xd0] sm:$0xff]
        %v3443 = vld [vmem:[#allocation12 + $0xd8] sm:$0xff]
        %v3444 = vld [vmem:[#allocation12 + $0xe0] sm:$0xff]
        %v3445 = vld [vmem:[#allocation12 + $0xe8] sm:$0xff]
        %v3446 = vld [vmem:[#allocation12 + $0xf0] sm:$0xff]
        %v3447 = vld [vmem:[#allocation12 + $0xf8] sm:$0xff]
        %v3448 = vld [vmem:[#allocation12 + $0x100] sm:$0xff]
        %v3449 = vld [vmem:[#allocation12 + $0x108] sm:$0xff]
        %v3450 = vld [vmem:[#allocation12 + $0x110] sm:$0xff]
        %v3451 = vld [vmem:[#allocation12 + $0x118] sm:$0xff]
        %v3452 = vld [vmem:[#allocation12 + $0x120] sm:$0xff]
        %v3453 = vld [vmem:[#allocation12 + $0x128] sm:$0xff]
        %v3454 = vld [vmem:[#allocation12 + $0x130] sm:$0xff]
        %v3455 = vld [vmem:[#allocation12 + $0x138] sm:$0xff]
        %v3456 = vld [vmem:[#allocation12 + $0x140] sm:$0xff]
        %v3457 = vld [vmem:[#allocation12 + $0x148] sm:$0xff]
        %v3458 = vld [vmem:[#allocation12 + $0x150] sm:$0xff]
        %v3459 = vld [vmem:[#allocation12 + $0x158] sm:$0xff]
        %v3460 = vld [vmem:[#allocation12 + $0x160] sm:$0xff]
        %v3461 = vld [vmem:[#allocation12 + $0x168] sm:$0xff]
        %v3462 = vld [vmem:[#allocation12 + $0x170] sm:$0xff]
        %v3463 = vld [vmem:[#allocation12 + $0x178] sm:$0xff]
        %v3464 = vld [vmem:[#allocation12 + $0x180] sm:$0xff]
        %v3465 = vld [vmem:[#allocation12 + $0x188] sm:$0xff]
        %v3466 = vld [vmem:[#allocation12 + $0x190] sm:$0xff]
        %v3467 = vld [vmem:[#allocation12 + $0x198] sm:$0xff]
        %v3468 = vld [vmem:[#allocation12 + $0x1a0] sm:$0xff]
        %v3469 = vld [vmem:[#allocation12 + $0x1a8] sm:$0xff]
        %v3470 = vld [vmem:[#allocation12 + $0x1b0] sm:$0xff]
        %v3471 = vld [vmem:[#allocation12 + $0x1b8] sm:$0xff]
        %v3472 = vld [vmem:[#allocation12 + $0x1c0] sm:$0xff]
        %v3473 = vld [vmem:[#allocation12 + $0x1c8] sm:$0xff]
        %v3474 = vld [vmem:[#allocation12 + $0x1d0] sm:$0xff]
        %v3475 = vld [vmem:[#allocation12 + $0x1d8] sm:$0xff]
        %v3476 = vld [vmem:[#allocation12 + $0x1e0] sm:$0xff]
        %v3477 = vld [vmem:[#allocation12 + $0x1e8] sm:$0xff]
        %v3478 = vld [vmem:[#allocation12 + $0x1f0] sm:$0xff]
        %v3479 = vld [vmem:[#allocation12 + $0x1f8] sm:$0xff]
        %3481 = vset.pattern.permute.xlu0 0
        %3482 = vperm.xlu0 %3481, %v3416
        %v3483 = vpop.permute.xlu0 %3482
        %3486 = vset.pattern.permute.xlu0 0
        %3487 = vperm.xlu0 %3486, %v3417
        %v3488 = vpop.permute.xlu0 %3487
        %3491 = vset.pattern.permute.xlu0 0
        %3492 = vperm.xlu0 %3491, %v3418
        %v3493 = vpop.permute.xlu0 %3492
        %3496 = vset.pattern.permute.xlu0 0
        %3497 = vperm.xlu0 %3496, %v3419
        %v3498 = vpop.permute.xlu0 %3497
        %3501 = vset.pattern.permute.xlu0 0
        %3502 = vperm.xlu0 %3501, %v3420
        %v3503 = vpop.permute.xlu0 %3502
        %3506 = vset.pattern.permute.xlu0 0
        %3507 = vperm.xlu0 %3506, %v3421
        %v3508 = vpop.permute.xlu0 %3507
        %3511 = vset.pattern.permute.xlu0 0
        %3512 = vperm.xlu0 %3511, %v3422
        %v3513 = vpop.permute.xlu0 %3512
        %3516 = vset.pattern.permute.xlu0 0
        %3517 = vperm.xlu0 %3516, %v3423
        %v3518 = vpop.permute.xlu0 %3517
        %3521 = vset.pattern.permute.xlu0 0
        %3522 = vperm.xlu0 %3521, %v3424
        %v3523 = vpop.permute.xlu0 %3522
        %3526 = vset.pattern.permute.xlu0 0
        %3527 = vperm.xlu0 %3526, %v3425
        %v3528 = vpop.permute.xlu0 %3527
        %3531 = vset.pattern.permute.xlu0 0
        %3532 = vperm.xlu0 %3531, %v3426
        %v3533 = vpop.permute.xlu0 %3532
        %3536 = vset.pattern.permute.xlu0 0
        %3537 = vperm.xlu0 %3536, %v3427
        %v3538 = vpop.permute.xlu0 %3537
        %3541 = vset.pattern.permute.xlu0 0
        %3542 = vperm.xlu0 %3541, %v3428
        %v3543 = vpop.permute.xlu0 %3542
        %3546 = vset.pattern.permute.xlu0 0
        %3547 = vperm.xlu0 %3546, %v3429
        %v3548 = vpop.permute.xlu0 %3547
        %3551 = vset.pattern.permute.xlu0 0
        %3552 = vperm.xlu0 %3551, %v3430
        %v3553 = vpop.permute.xlu0 %3552
        %3556 = vset.pattern.permute.xlu0 0
        %3557 = vperm.xlu0 %3556, %v3431
        %v3558 = vpop.permute.xlu0 %3557
        %3561 = vset.pattern.permute.xlu0 0
        %3562 = vperm.xlu0 %3561, %v3432
        %v3563 = vpop.permute.xlu0 %3562
        %3566 = vset.pattern.permute.xlu0 0
        %3567 = vperm.xlu0 %3566, %v3433
        %v3568 = vpop.permute.xlu0 %3567
        %3571 = vset.pattern.permute.xlu0 0
        %3572 = vperm.xlu0 %3571, %v3434
        %v3573 = vpop.permute.xlu0 %3572
        %3576 = vset.pattern.permute.xlu0 0
        %3577 = vperm.xlu0 %3576, %v3435
        %v3578 = vpop.permute.xlu0 %3577
        %3581 = vset.pattern.permute.xlu0 0
        %3582 = vperm.xlu0 %3581, %v3436
        %v3583 = vpop.permute.xlu0 %3582
        %3586 = vset.pattern.permute.xlu0 0
        %3587 = vperm.xlu0 %3586, %v3437
        %v3588 = vpop.permute.xlu0 %3587
        %3591 = vset.pattern.permute.xlu0 0
        %3592 = vperm.xlu0 %3591, %v3438
        %v3593 = vpop.permute.xlu0 %3592
        %3596 = vset.pattern.permute.xlu0 0
        %3597 = vperm.xlu0 %3596, %v3439
        %v3598 = vpop.permute.xlu0 %3597
        %3601 = vset.pattern.permute.xlu0 0
        %3602 = vperm.xlu0 %3601, %v3440
        %v3603 = vpop.permute.xlu0 %3602
        %3606 = vset.pattern.permute.xlu0 0
        %3607 = vperm.xlu0 %3606, %v3441
        %v3608 = vpop.permute.xlu0 %3607
        %3611 = vset.pattern.permute.xlu0 0
        %3612 = vperm.xlu0 %3611, %v3442
        %v3613 = vpop.permute.xlu0 %3612
        %3616 = vset.pattern.permute.xlu0 0
        %3617 = vperm.xlu0 %3616, %v3443
        %v3618 = vpop.permute.xlu0 %3617
        %3621 = vset.pattern.permute.xlu0 0
        %3622 = vperm.xlu0 %3621, %v3444
        %v3623 = vpop.permute.xlu0 %3622
        %3626 = vset.pattern.permute.xlu0 0
        %3627 = vperm.xlu0 %3626, %v3445
        %v3628 = vpop.permute.xlu0 %3627
        %3631 = vset.pattern.permute.xlu0 0
        %3632 = vperm.xlu0 %3631, %v3446
        %v3633 = vpop.permute.xlu0 %3632
        %3636 = vset.pattern.permute.xlu0 0
        %3637 = vperm.xlu0 %3636, %v3447
        %v3638 = vpop.permute.xlu0 %3637
        %3641 = vset.pattern.permute.xlu0 0
        %3642 = vperm.xlu0 %3641, %v3448
        %v3643 = vpop.permute.xlu0 %3642
        %3646 = vset.pattern.permute.xlu0 0
        %3647 = vperm.xlu0 %3646, %v3449
        %v3648 = vpop.permute.xlu0 %3647
        %3651 = vset.pattern.permute.xlu0 0
        %3652 = vperm.xlu0 %3651, %v3450
        %v3653 = vpop.permute.xlu0 %3652
        %3656 = vset.pattern.permute.xlu0 0
        %3657 = vperm.xlu0 %3656, %v3451
        %v3658 = vpop.permute.xlu0 %3657
        %3661 = vset.pattern.permute.xlu0 0
        %3662 = vperm.xlu0 %3661, %v3452
        %v3663 = vpop.permute.xlu0 %3662
        %3666 = vset.pattern.permute.xlu0 0
        %3667 = vperm.xlu0 %3666, %v3453
        %v3668 = vpop.permute.xlu0 %3667
        %3671 = vset.pattern.permute.xlu0 0
        %3672 = vperm.xlu0 %3671, %v3454
        %v3673 = vpop.permute.xlu0 %3672
        %3676 = vset.pattern.permute.xlu0 0
        %3677 = vperm.xlu0 %3676, %v3455
        %v3678 = vpop.permute.xlu0 %3677
        %3681 = vset.pattern.permute.xlu0 0
        %3682 = vperm.xlu0 %3681, %v3456
        %v3683 = vpop.permute.xlu0 %3682
        %3686 = vset.pattern.permute.xlu0 0
        %3687 = vperm.xlu0 %3686, %v3457
        %v3688 = vpop.permute.xlu0 %3687
        %3691 = vset.pattern.permute.xlu0 0
        %3692 = vperm.xlu0 %3691, %v3458
        %v3693 = vpop.permute.xlu0 %3692
        %3696 = vset.pattern.permute.xlu0 0
        %3697 = vperm.xlu0 %3696, %v3459
        %v3698 = vpop.permute.xlu0 %3697
        %3701 = vset.pattern.permute.xlu0 0
        %3702 = vperm.xlu0 %3701, %v3460
        %v3703 = vpop.permute.xlu0 %3702
        %3706 = vset.pattern.permute.xlu0 0
        %3707 = vperm.xlu0 %3706, %v3461
        %v3708 = vpop.permute.xlu0 %3707
        %3711 = vset.pattern.permute.xlu0 0
        %3712 = vperm.xlu0 %3711, %v3462
        %v3713 = vpop.permute.xlu0 %3712
        %3716 = vset.pattern.permute.xlu0 0
        %3717 = vperm.xlu0 %3716, %v3463
        %v3718 = vpop.permute.xlu0 %3717
        %3721 = vset.pattern.permute.xlu0 0
        %3722 = vperm.xlu0 %3721, %v3464
        %v3723 = vpop.permute.xlu0 %3722
        %3726 = vset.pattern.permute.xlu0 0
        %3727 = vperm.xlu0 %3726, %v3465
        %v3728 = vpop.permute.xlu0 %3727
        %3731 = vset.pattern.permute.xlu0 0
        %3732 = vperm.xlu0 %3731, %v3466
        %v3733 = vpop.permute.xlu0 %3732
        %3736 = vset.pattern.permute.xlu0 0
        %3737 = vperm.xlu0 %3736, %v3467
        %v3738 = vpop.permute.xlu0 %3737
        %3741 = vset.pattern.permute.xlu0 0
        %3742 = vperm.xlu0 %3741, %v3468
        %v3743 = vpop.permute.xlu0 %3742
        %3746 = vset.pattern.permute.xlu0 0
        %3747 = vperm.xlu0 %3746, %v3469
        %v3748 = vpop.permute.xlu0 %3747
        %3751 = vset.pattern.permute.xlu0 0
        %3752 = vperm.xlu0 %3751, %v3470
        %v3753 = vpop.permute.xlu0 %3752
        %3756 = vset.pattern.permute.xlu0 0
        %3757 = vperm.xlu0 %3756, %v3471
        %v3758 = vpop.permute.xlu0 %3757
        %3761 = vset.pattern.permute.xlu0 0
        %3762 = vperm.xlu0 %3761, %v3472
        %v3763 = vpop.permute.xlu0 %3762
        %3766 = vset.pattern.permute.xlu0 0
        %3767 = vperm.xlu0 %3766, %v3473
        %v3768 = vpop.permute.xlu0 %3767
        %3771 = vset.pattern.permute.xlu0 0
        %3772 = vperm.xlu0 %3771, %v3474
        %v3773 = vpop.permute.xlu0 %3772
        %3776 = vset.pattern.permute.xlu0 0
        %3777 = vperm.xlu0 %3776, %v3475
        %v3778 = vpop.permute.xlu0 %3777
        %3781 = vset.pattern.permute.xlu0 0
        %3782 = vperm.xlu0 %3781, %v3476
        %v3783 = vpop.permute.xlu0 %3782
        %3786 = vset.pattern.permute.xlu0 0
        %3787 = vperm.xlu0 %3786, %v3477
        %v3788 = vpop.permute.xlu0 %3787
        %3791 = vset.pattern.permute.xlu0 0
        %3792 = vperm.xlu0 %3791, %v3478
        %v3793 = vpop.permute.xlu0 %3792
        %3796 = vset.pattern.permute.xlu0 0
        %3797 = vperm.xlu0 %3796, %v3479
        %v3798 = vpop.permute.xlu0 %3797
        %3800 = vmatpush.msra.mxu0 %v2791
        %3801 = vmatpush.msra.mxu0 %v2790
        %3802 = vmatpush.msra.mxu0 %v2789
        %3803 = vmatpush.msra.mxu0 %v2788
        %3804 = vmatpush.msra.mxu0 %v2787
        %3805 = vmatpush.msra.mxu0 %v2786
        %3806 = vmatpush.msra.mxu0 %v2785
        %3807 = vmatpush.msra.mxu0 %v2784
        %3808 = vmatpush.msra.mxu0 %v2783
        %3809 = vmatpush.msra.mxu0 %v2782
        %3810 = vmatpush.msra.mxu0 %v2781
        %3811 = vmatpush.msra.mxu0 %v2780
        %3812 = vmatpush.msra.mxu0 %v2779
        %3813 = vmatpush.msra.mxu0 %v2778
        %3814 = vmatpush.msra.mxu0 %v2777
        %3815 = vmatpush.msra.mxu0 %v2776
        %3816 = vmatmul.f32.gmra.mxu0 %v2904
        %v3817 = vpop.f32.mrf.mxu0
        %v3818 = vadd.f32 %v3483, %v3817
        %3819 = vmatmul.f32.gmra.mxu0 %v2912
        %v3820 = vpop.f32.mrf.mxu0
        %v3821 = vadd.f32 %v3488, %v3820
        %3822 = vmatmul.f32.gmra.mxu0 %v2920
        %v3823 = vpop.f32.mrf.mxu0
        %v3824 = vadd.f32 %v3493, %v3823
        %3825 = vmatmul.f32.gmra.mxu0 %v2928
        %v3826 = vpop.f32.mrf.mxu0
        %v3827 = vadd.f32 %v3498, %v3826
        %3828 = vmatmul.f32.gmra.mxu0 %v2936
        %v3829 = vpop.f32.mrf.mxu0
        %v3830 = vadd.f32 %v3503, %v3829
        %3831 = vmatmul.f32.gmra.mxu0 %v2944
        %v3832 = vpop.f32.mrf.mxu0
        %v3833 = vadd.f32 %v3508, %v3832
        %3834 = vmatmul.f32.gmra.mxu0 %v2952
        %v3835 = vpop.f32.mrf.mxu0
        %v3836 = vadd.f32 %v3513, %v3835
        %3837 = vmatmul.f32.gmra.mxu0 %v2960
        %v3838 = vpop.f32.mrf.mxu0
        %v3839 = vadd.f32 %v3518, %v3838
        %3840 = vmatmul.f32.gmra.mxu0 %v2968
        %v3841 = vpop.f32.mrf.mxu0
        %v3842 = vadd.f32 %v3523, %v3841
        %3843 = vmatmul.f32.gmra.mxu0 %v2976
        %v3844 = vpop.f32.mrf.mxu0
        %v3845 = vadd.f32 %v3528, %v3844
        %3846 = vmatmul.f32.gmra.mxu0 %v2984
        %v3847 = vpop.f32.mrf.mxu0
        %v3848 = vadd.f32 %v3533, %v3847
        %3849 = vmatmul.f32.gmra.mxu0 %v2992
        %v3850 = vpop.f32.mrf.mxu0
        %v3851 = vadd.f32 %v3538, %v3850
        %3852 = vmatmul.f32.gmra.mxu0 %v3000
        %v3853 = vpop.f32.mrf.mxu0
        %v3854 = vadd.f32 %v3543, %v3853
        %3855 = vmatmul.f32.gmra.mxu0 %v3008
        %v3856 = vpop.f32.mrf.mxu0
        %v3857 = vadd.f32 %v3548, %v3856
        %3858 = vmatmul.f32.gmra.mxu0 %v3016
        %v3859 = vpop.f32.mrf.mxu0
        %v3860 = vadd.f32 %v3553, %v3859
        %3861 = vmatmul.f32.gmra.mxu0 %v3024
        %v3862 = vpop.f32.mrf.mxu0
        %v3863 = vadd.f32 %v3558, %v3862
        %3864 = vmatmul.f32.gmra.mxu0 %v3032
        %v3865 = vpop.f32.mrf.mxu0
        %v3866 = vadd.f32 %v3563, %v3865
        %3867 = vmatmul.f32.gmra.mxu0 %v3040
        %v3868 = vpop.f32.mrf.mxu0
        %v3869 = vadd.f32 %v3568, %v3868
        %3870 = vmatmul.f32.gmra.mxu0 %v3048
        %v3871 = vpop.f32.mrf.mxu0
        %v3872 = vadd.f32 %v3573, %v3871
        %3873 = vmatmul.f32.gmra.mxu0 %v3056
        %v3874 = vpop.f32.mrf.mxu0
        %v3875 = vadd.f32 %v3578, %v3874
        %3876 = vmatmul.f32.gmra.mxu0 %v3064
        %v3877 = vpop.f32.mrf.mxu0
        %v3878 = vadd.f32 %v3583, %v3877
        %3879 = vmatmul.f32.gmra.mxu0 %v3072
        %v3880 = vpop.f32.mrf.mxu0
        %v3881 = vadd.f32 %v3588, %v3880
        %3882 = vmatmul.f32.gmra.mxu0 %v3080
        %v3883 = vpop.f32.mrf.mxu0
        %v3884 = vadd.f32 %v3593, %v3883
        %3885 = vmatmul.f32.gmra.mxu0 %v3088
        %v3886 = vpop.f32.mrf.mxu0
        %v3887 = vadd.f32 %v3598, %v3886
        %3888 = vmatmul.f32.gmra.mxu0 %v3096
        %v3889 = vpop.f32.mrf.mxu0
        %v3890 = vadd.f32 %v3603, %v3889
        %3891 = vmatmul.f32.gmra.mxu0 %v3104
        %v3892 = vpop.f32.mrf.mxu0
        %v3893 = vadd.f32 %v3608, %v3892
        %3894 = vmatmul.f32.gmra.mxu0 %v3112
        %v3895 = vpop.f32.mrf.mxu0
        %v3896 = vadd.f32 %v3613, %v3895
        %3897 = vmatmul.f32.gmra.mxu0 %v3120
        %v3898 = vpop.f32.mrf.mxu0
        %v3899 = vadd.f32 %v3618, %v3898
        %3900 = vmatmul.f32.gmra.mxu0 %v3128
        %v3901 = vpop.f32.mrf.mxu0
        %v3902 = vadd.f32 %v3623, %v3901
        %3903 = vmatmul.f32.gmra.mxu0 %v3136
        %v3904 = vpop.f32.mrf.mxu0
        %v3905 = vadd.f32 %v3628, %v3904
        %3906 = vmatmul.f32.gmra.mxu0 %v3144
        %v3907 = vpop.f32.mrf.mxu0
        %v3908 = vadd.f32 %v3633, %v3907
        %3909 = vmatmul.f32.gmra.mxu0 %v3152
        %v3910 = vpop.f32.mrf.mxu0
        %v3911 = vadd.f32 %v3638, %v3910
        %3912 = vmatmul.f32.gmra.mxu0 %v3160
        %v3913 = vpop.f32.mrf.mxu0
        %v3914 = vadd.f32 %v3643, %v3913
        %3915 = vmatmul.f32.gmra.mxu0 %v3168
        %v3916 = vpop.f32.mrf.mxu0
        %v3917 = vadd.f32 %v3648, %v3916
        %3918 = vmatmul.f32.gmra.mxu0 %v3176
        %v3919 = vpop.f32.mrf.mxu0
        %v3920 = vadd.f32 %v3653, %v3919
        %3921 = vmatmul.f32.gmra.mxu0 %v3184
        %v3922 = vpop.f32.mrf.mxu0
        %v3923 = vadd.f32 %v3658, %v3922
        %3924 = vmatmul.f32.gmra.mxu0 %v3192
        %v3925 = vpop.f32.mrf.mxu0
        %v3926 = vadd.f32 %v3663, %v3925
        %3927 = vmatmul.f32.gmra.mxu0 %v3200
        %v3928 = vpop.f32.mrf.mxu0
        %v3929 = vadd.f32 %v3668, %v3928
        %3930 = vmatmul.f32.gmra.mxu0 %v3208
        %v3931 = vpop.f32.mrf.mxu0
        %v3932 = vadd.f32 %v3673, %v3931
        %3933 = vmatmul.f32.gmra.mxu0 %v3216
        %v3934 = vpop.f32.mrf.mxu0
        %v3935 = vadd.f32 %v3678, %v3934
        %3936 = vmatmul.f32.gmra.mxu0 %v3224
        %v3937 = vpop.f32.mrf.mxu0
        %v3938 = vadd.f32 %v3683, %v3937
        %3939 = vmatmul.f32.gmra.mxu0 %v3232
        %v3940 = vpop.f32.mrf.mxu0
        %v3941 = vadd.f32 %v3688, %v3940
        %3942 = vmatmul.f32.gmra.mxu0 %v3240
        %v3943 = vpop.f32.mrf.mxu0
        %v3944 = vadd.f32 %v3693, %v3943
        %3945 = vmatmul.f32.gmra.mxu0 %v3248
        %v3946 = vpop.f32.mrf.mxu0
        %v3947 = vadd.f32 %v3698, %v3946
        %3948 = vmatmul.f32.gmra.mxu0 %v3256
        %v3949 = vpop.f32.mrf.mxu0
        %v3950 = vadd.f32 %v3703, %v3949
        %3951 = vmatmul.f32.gmra.mxu0 %v3264
        %v3952 = vpop.f32.mrf.mxu0
        %v3953 = vadd.f32 %v3708, %v3952
        %3954 = vmatmul.f32.gmra.mxu0 %v3272
        %v3955 = vpop.f32.mrf.mxu0
        %v3956 = vadd.f32 %v3713, %v3955
        %3957 = vmatmul.f32.gmra.mxu0 %v3280
        %v3958 = vpop.f32.mrf.mxu0
        %v3959 = vadd.f32 %v3718, %v3958
        %3960 = vmatmul.f32.gmra.mxu0 %v3288
        %v3961 = vpop.f32.mrf.mxu0
        %v3962 = vadd.f32 %v3723, %v3961
        %3963 = vmatmul.f32.gmra.mxu0 %v3296
        %v3964 = vpop.f32.mrf.mxu0
        %v3965 = vadd.f32 %v3728, %v3964
        %3966 = vmatmul.f32.gmra.mxu0 %v3304
        %v3967 = vpop.f32.mrf.mxu0
        %v3968 = vadd.f32 %v3733, %v3967
        %3969 = vmatmul.f32.gmra.mxu0 %v3312
        %v3970 = vpop.f32.mrf.mxu0
        %v3971 = vadd.f32 %v3738, %v3970
        %3972 = vmatmul.f32.gmra.mxu0 %v3320
        %v3973 = vpop.f32.mrf.mxu0
        %v3974 = vadd.f32 %v3743, %v3973
        %3975 = vmatmul.f32.gmra.mxu0 %v3328
        %v3976 = vpop.f32.mrf.mxu0
        %v3977 = vadd.f32 %v3748, %v3976
        %3978 = vmatmul.f32.gmra.mxu0 %v3336
        %v3979 = vpop.f32.mrf.mxu0
        %v3980 = vadd.f32 %v3753, %v3979
        %3981 = vmatmul.f32.gmra.mxu0 %v3344
        %v3982 = vpop.f32.mrf.mxu0
        %v3983 = vadd.f32 %v3758, %v3982
        %3984 = vmatmul.f32.gmra.mxu0 %v3352
        %v3985 = vpop.f32.mrf.mxu0
        %v3986 = vadd.f32 %v3763, %v3985
        %3987 = vmatmul.f32.gmra.mxu0 %v3360
        %v3988 = vpop.f32.mrf.mxu0
        %v3989 = vadd.f32 %v3768, %v3988
        %3990 = vmatmul.f32.gmra.mxu0 %v3368
        %v3991 = vpop.f32.mrf.mxu0
        %v3992 = vadd.f32 %v3773, %v3991
        %3993 = vmatmul.f32.gmra.mxu0 %v3376
        %v3994 = vpop.f32.mrf.mxu0
        %v3995 = vadd.f32 %v3778, %v3994
        %3996 = vmatmul.f32.gmra.mxu0 %v3384
        %v3997 = vpop.f32.mrf.mxu0
        %v3998 = vadd.f32 %v3783, %v3997
        %3999 = vmatmul.f32.gmra.mxu0 %v3392
        %v4000 = vpop.f32.mrf.mxu0
        %v4001 = vadd.f32 %v3788, %v4000
        %4002 = vmatmul.f32.gmra.mxu0 %v3400
        %v4003 = vpop.f32.mrf.mxu0
        %v4004 = vadd.f32 %v3793, %v4003
        %4005 = vmatmul.f32.gmra.mxu0 %v3408
        %v4006 = vpop.f32.mrf.mxu0
        %v4007 = vadd.f32 %v3798, %v4006
        %4008 = vdwg.mxu0
        %4009 = vmatpush.msra.mxu0 %v2807
        %4010 = vmatpush.msra.mxu0 %v2806
        %4011 = vmatpush.msra.mxu0 %v2805
        %4012 = vmatpush.msra.mxu0 %v2804
        %4013 = vmatpush.msra.mxu0 %v2803
        %4014 = vmatpush.msra.mxu0 %v2802
        %4015 = vmatpush.msra.mxu0 %v2801
        %4016 = vmatpush.msra.mxu0 %v2800
        %4017 = vmatpush.msra.mxu0 %v2799
        %4018 = vmatpush.msra.mxu0 %v2798
        %4019 = vmatpush.msra.mxu0 %v2797
        %4020 = vmatpush.msra.mxu0 %v2796
        %4021 = vmatpush.msra.mxu0 %v2795
        %4022 = vmatpush.msra.mxu0 %v2794
        %4023 = vmatpush.msra.mxu0 %v2793
        %4024 = vmatpush.msra.mxu0 %v2792
        %4025 = vmatmul.f32.gmra.mxu0 %v2905
        %v4026 = vpop.f32.mrf.mxu0
        %v4027 = vadd.f32 %v3818, %v4026
        %4028 = vmatmul.f32.gmra.mxu0 %v2913
        %v4029 = vpop.f32.mrf.mxu0
        %v4030 = vadd.f32 %v3821, %v4029
        %4031 = vmatmul.f32.gmra.mxu0 %v2921
        %v4032 = vpop.f32.mrf.mxu0
        %v4033 = vadd.f32 %v3824, %v4032
        %4034 = vmatmul.f32.gmra.mxu0 %v2929
        %v4035 = vpop.f32.mrf.mxu0
        %v4036 = vadd.f32 %v3827, %v4035
        %4037 = vmatmul.f32.gmra.mxu0 %v2937
        %v4038 = vpop.f32.mrf.mxu0
        %v4039 = vadd.f32 %v3830, %v4038
        %4040 = vmatmul.f32.gmra.mxu0 %v2945
        %v4041 = vpop.f32.mrf.mxu0
        %v4042 = vadd.f32 %v3833, %v4041
        %4043 = vmatmul.f32.gmra.mxu0 %v2953
        %v4044 = vpop.f32.mrf.mxu0
        %v4045 = vadd.f32 %v3836, %v4044
        %4046 = vmatmul.f32.gmra.mxu0 %v2961
        %v4047 = vpop.f32.mrf.mxu0
        %v4048 = vadd.f32 %v3839, %v4047
        %4049 = vmatmul.f32.gmra.mxu0 %v2969
        %v4050 = vpop.f32.mrf.mxu0
        %v4051 = vadd.f32 %v3842, %v4050
        %4052 = vmatmul.f32.gmra.mxu0 %v2977
        %v4053 = vpop.f32.mrf.mxu0
        %v4054 = vadd.f32 %v3845, %v4053
        %4055 = vmatmul.f32.gmra.mxu0 %v2985
        %v4056 = vpop.f32.mrf.mxu0
        %v4057 = vadd.f32 %v3848, %v4056
        %4058 = vmatmul.f32.gmra.mxu0 %v2993
        %v4059 = vpop.f32.mrf.mxu0
        %v4060 = vadd.f32 %v3851, %v4059
        %4061 = vmatmul.f32.gmra.mxu0 %v3001
        %v4062 = vpop.f32.mrf.mxu0
        %v4063 = vadd.f32 %v3854, %v4062
        %4064 = vmatmul.f32.gmra.mxu0 %v3009
        %v4065 = vpop.f32.mrf.mxu0
        %v4066 = vadd.f32 %v3857, %v4065
        %4067 = vmatmul.f32.gmra.mxu0 %v3017
        %v4068 = vpop.f32.mrf.mxu0
        %v4069 = vadd.f32 %v3860, %v4068
        %4070 = vmatmul.f32.gmra.mxu0 %v3025
        %v4071 = vpop.f32.mrf.mxu0
        %v4072 = vadd.f32 %v3863, %v4071
        %4073 = vmatmul.f32.gmra.mxu0 %v3033
        %v4074 = vpop.f32.mrf.mxu0
        %v4075 = vadd.f32 %v3866, %v4074
        %4076 = vmatmul.f32.gmra.mxu0 %v3041
        %v4077 = vpop.f32.mrf.mxu0
        %v4078 = vadd.f32 %v3869, %v4077
        %4079 = vmatmul.f32.gmra.mxu0 %v3049
        %v4080 = vpop.f32.mrf.mxu0
        %v4081 = vadd.f32 %v3872, %v4080
        %4082 = vmatmul.f32.gmra.mxu0 %v3057
        %v4083 = vpop.f32.mrf.mxu0
        %v4084 = vadd.f32 %v3875, %v4083
        %4085 = vmatmul.f32.gmra.mxu0 %v3065
        %v4086 = vpop.f32.mrf.mxu0
        %v4087 = vadd.f32 %v3878, %v4086
        %4088 = vmatmul.f32.gmra.mxu0 %v3073
        %v4089 = vpop.f32.mrf.mxu0
        %v4090 = vadd.f32 %v3881, %v4089
        %4091 = vmatmul.f32.gmra.mxu0 %v3081
        %v4092 = vpop.f32.mrf.mxu0
        %v4093 = vadd.f32 %v3884, %v4092
        %4094 = vmatmul.f32.gmra.mxu0 %v3089
        %v4095 = vpop.f32.mrf.mxu0
        %v4096 = vadd.f32 %v3887, %v4095
        %4097 = vmatmul.f32.gmra.mxu0 %v3097
        %v4098 = vpop.f32.mrf.mxu0
        %v4099 = vadd.f32 %v3890, %v4098
        %4100 = vmatmul.f32.gmra.mxu0 %v3105
        %v4101 = vpop.f32.mrf.mxu0
        %v4102 = vadd.f32 %v3893, %v4101
        %4103 = vmatmul.f32.gmra.mxu0 %v3113
        %v4104 = vpop.f32.mrf.mxu0
        %v4105 = vadd.f32 %v3896, %v4104
        %4106 = vmatmul.f32.gmra.mxu0 %v3121
        %v4107 = vpop.f32.mrf.mxu0
        %v4108 = vadd.f32 %v3899, %v4107
        %4109 = vmatmul.f32.gmra.mxu0 %v3129
        %v4110 = vpop.f32.mrf.mxu0
        %v4111 = vadd.f32 %v3902, %v4110
        %4112 = vmatmul.f32.gmra.mxu0 %v3137
        %v4113 = vpop.f32.mrf.mxu0
        %v4114 = vadd.f32 %v3905, %v4113
        %4115 = vmatmul.f32.gmra.mxu0 %v3145
        %v4116 = vpop.f32.mrf.mxu0
        %v4117 = vadd.f32 %v3908, %v4116
        %4118 = vmatmul.f32.gmra.mxu0 %v3153
        %v4119 = vpop.f32.mrf.mxu0
        %v4120 = vadd.f32 %v3911, %v4119
        %4121 = vmatmul.f32.gmra.mxu0 %v3161
        %v4122 = vpop.f32.mrf.mxu0
        %v4123 = vadd.f32 %v3914, %v4122
        %4124 = vmatmul.f32.gmra.mxu0 %v3169
        %v4125 = vpop.f32.mrf.mxu0
        %v4126 = vadd.f32 %v3917, %v4125
        %4127 = vmatmul.f32.gmra.mxu0 %v3177
        %v4128 = vpop.f32.mrf.mxu0
        %v4129 = vadd.f32 %v3920, %v4128
        %4130 = vmatmul.f32.gmra.mxu0 %v3185
        %v4131 = vpop.f32.mrf.mxu0
        %v4132 = vadd.f32 %v3923, %v4131
        %4133 = vmatmul.f32.gmra.mxu0 %v3193
        %v4134 = vpop.f32.mrf.mxu0
        %v4135 = vadd.f32 %v3926, %v4134
        %4136 = vmatmul.f32.gmra.mxu0 %v3201
        %v4137 = vpop.f32.mrf.mxu0
        %v4138 = vadd.f32 %v3929, %v4137
        %4139 = vmatmul.f32.gmra.mxu0 %v3209
        %v4140 = vpop.f32.mrf.mxu0
        %v4141 = vadd.f32 %v3932, %v4140
        %4142 = vmatmul.f32.gmra.mxu0 %v3217
        %v4143 = vpop.f32.mrf.mxu0
        %v4144 = vadd.f32 %v3935, %v4143
        %4145 = vmatmul.f32.gmra.mxu0 %v3225
        %v4146 = vpop.f32.mrf.mxu0
        %v4147 = vadd.f32 %v3938, %v4146
        %4148 = vmatmul.f32.gmra.mxu0 %v3233
        %v4149 = vpop.f32.mrf.mxu0
        %v4150 = vadd.f32 %v3941, %v4149
        %4151 = vmatmul.f32.gmra.mxu0 %v3241
        %v4152 = vpop.f32.mrf.mxu0
        %v4153 = vadd.f32 %v3944, %v4152
        %4154 = vmatmul.f32.gmra.mxu0 %v3249
        %v4155 = vpop.f32.mrf.mxu0
        %v4156 = vadd.f32 %v3947, %v4155
        %4157 = vmatmul.f32.gmra.mxu0 %v3257
        %v4158 = vpop.f32.mrf.mxu0
        %v4159 = vadd.f32 %v3950, %v4158
        %4160 = vmatmul.f32.gmra.mxu0 %v3265
        %v4161 = vpop.f32.mrf.mxu0
        %v4162 = vadd.f32 %v3953, %v4161
        %4163 = vmatmul.f32.gmra.mxu0 %v3273
        %v4164 = vpop.f32.mrf.mxu0
        %v4165 = vadd.f32 %v3956, %v4164
        %4166 = vmatmul.f32.gmra.mxu0 %v3281
        %v4167 = vpop.f32.mrf.mxu0
        %v4168 = vadd.f32 %v3959, %v4167
        %4169 = vmatmul.f32.gmra.mxu0 %v3289
        %v4170 = vpop.f32.mrf.mxu0
        %v4171 = vadd.f32 %v3962, %v4170
        %4172 = vmatmul.f32.gmra.mxu0 %v3297
        %v4173 = vpop.f32.mrf.mxu0
        %v4174 = vadd.f32 %v3965, %v4173
        %4175 = vmatmul.f32.gmra.mxu0 %v3305
        %v4176 = vpop.f32.mrf.mxu0
        %v4177 = vadd.f32 %v3968, %v4176
        %4178 = vmatmul.f32.gmra.mxu0 %v3313
        %v4179 = vpop.f32.mrf.mxu0
        %v4180 = vadd.f32 %v3971, %v4179
        %4181 = vmatmul.f32.gmra.mxu0 %v3321
        %v4182 = vpop.f32.mrf.mxu0
        %v4183 = vadd.f32 %v3974, %v4182
        %4184 = vmatmul.f32.gmra.mxu0 %v3329
        %v4185 = vpop.f32.mrf.mxu0
        %v4186 = vadd.f32 %v3977, %v4185
        %4187 = vmatmul.f32.gmra.mxu0 %v3337
        %v4188 = vpop.f32.mrf.mxu0
        %v4189 = vadd.f32 %v3980, %v4188
        %4190 = vmatmul.f32.gmra.mxu0 %v3345
        %v4191 = vpop.f32.mrf.mxu0
        %v4192 = vadd.f32 %v3983, %v4191
        %4193 = vmatmul.f32.gmra.mxu0 %v3353
        %v4194 = vpop.f32.mrf.mxu0
        %v4195 = vadd.f32 %v3986, %v4194
        %4196 = vmatmul.f32.gmra.mxu0 %v3361
        %v4197 = vpop.f32.mrf.mxu0
        %v4198 = vadd.f32 %v3989, %v4197
        %4199 = vmatmul.f32.gmra.mxu0 %v3369
        %v4200 = vpop.f32.mrf.mxu0
        %v4201 = vadd.f32 %v3992, %v4200
        %4202 = vmatmul.f32.gmra.mxu0 %v3377
        %v4203 = vpop.f32.mrf.mxu0
        %v4204 = vadd.f32 %v3995, %v4203
        %4205 = vmatmul.f32.gmra.mxu0 %v3385
        %v4206 = vpop.f32.mrf.mxu0
        %v4207 = vadd.f32 %v3998, %v4206
        %4208 = vmatmul.f32.gmra.mxu0 %v3393
        %v4209 = vpop.f32.mrf.mxu0
        %v4210 = vadd.f32 %v4001, %v4209
        %4211 = vmatmul.f32.gmra.mxu0 %v3401
        %v4212 = vpop.f32.mrf.mxu0
        %v4213 = vadd.f32 %v4004, %v4212
        %4214 = vmatmul.f32.gmra.mxu0 %v3409
        %v4215 = vpop.f32.mrf.mxu0
        %v4216 = vadd.f32 %v4007, %v4215
        %4217 = vdwg.mxu0
        %4218 = vmatpush.msra.mxu0 %v2823
        %4219 = vmatpush.msra.mxu0 %v2822
        %4220 = vmatpush.msra.mxu0 %v2821
        %4221 = vmatpush.msra.mxu0 %v2820
        %4222 = vmatpush.msra.mxu0 %v2819
        %4223 = vmatpush.msra.mxu0 %v2818
        %4224 = vmatpush.msra.mxu0 %v2817
        %4225 = vmatpush.msra.mxu0 %v2816
        %4226 = vmatpush.msra.mxu0 %v2815
        %4227 = vmatpush.msra.mxu0 %v2814
        %4228 = vmatpush.msra.mxu0 %v2813
        %4229 = vmatpush.msra.mxu0 %v2812
        %4230 = vmatpush.msra.mxu0 %v2811
        %4231 = vmatpush.msra.mxu0 %v2810
        %4232 = vmatpush.msra.mxu0 %v2809
        %4233 = vmatpush.msra.mxu0 %v2808
        %4234 = vmatmul.f32.gmra.mxu0 %v2906
        %v4235 = vpop.f32.mrf.mxu0
        %v4236 = vadd.f32 %v4027, %v4235
        %4237 = vmatmul.f32.gmra.mxu0 %v2914
        %v4238 = vpop.f32.mrf.mxu0
        %v4239 = vadd.f32 %v4030, %v4238
        %4240 = vmatmul.f32.gmra.mxu0 %v2922
        %v4241 = vpop.f32.mrf.mxu0
        %v4242 = vadd.f32 %v4033, %v4241
        %4243 = vmatmul.f32.gmra.mxu0 %v2930
        %v4244 = vpop.f32.mrf.mxu0
        %v4245 = vadd.f32 %v4036, %v4244
        %4246 = vmatmul.f32.gmra.mxu0 %v2938
        %v4247 = vpop.f32.mrf.mxu0
        %v4248 = vadd.f32 %v4039, %v4247
        %4249 = vmatmul.f32.gmra.mxu0 %v2946
        %v4250 = vpop.f32.mrf.mxu0
        %v4251 = vadd.f32 %v4042, %v4250
        %4252 = vmatmul.f32.gmra.mxu0 %v2954
        %v4253 = vpop.f32.mrf.mxu0
        %v4254 = vadd.f32 %v4045, %v4253
        %4255 = vmatmul.f32.gmra.mxu0 %v2962
        %v4256 = vpop.f32.mrf.mxu0
        %v4257 = vadd.f32 %v4048, %v4256
        %4258 = vmatmul.f32.gmra.mxu0 %v2970
        %v4259 = vpop.f32.mrf.mxu0
        %v4260 = vadd.f32 %v4051, %v4259
        %4261 = vmatmul.f32.gmra.mxu0 %v2978
        %v4262 = vpop.f32.mrf.mxu0
        %v4263 = vadd.f32 %v4054, %v4262
        %4264 = vmatmul.f32.gmra.mxu0 %v2986
        %v4265 = vpop.f32.mrf.mxu0
        %v4266 = vadd.f32 %v4057, %v4265
        %4267 = vmatmul.f32.gmra.mxu0 %v2994
        %v4268 = vpop.f32.mrf.mxu0
        %v4269 = vadd.f32 %v4060, %v4268
        %4270 = vmatmul.f32.gmra.mxu0 %v3002
        %v4271 = vpop.f32.mrf.mxu0
        %v4272 = vadd.f32 %v4063, %v4271
        %4273 = vmatmul.f32.gmra.mxu0 %v3010
        %v4274 = vpop.f32.mrf.mxu0
        %v4275 = vadd.f32 %v4066, %v4274
        %4276 = vmatmul.f32.gmra.mxu0 %v3018
        %v4277 = vpop.f32.mrf.mxu0
        %v4278 = vadd.f32 %v4069, %v4277
        %4279 = vmatmul.f32.gmra.mxu0 %v3026
        %v4280 = vpop.f32.mrf.mxu0
        %v4281 = vadd.f32 %v4072, %v4280
        %4282 = vmatmul.f32.gmra.mxu0 %v3034
        %v4283 = vpop.f32.mrf.mxu0
        %v4284 = vadd.f32 %v4075, %v4283
        %4285 = vmatmul.f32.gmra.mxu0 %v3042
        %v4286 = vpop.f32.mrf.mxu0
        %v4287 = vadd.f32 %v4078, %v4286
        %4288 = vmatmul.f32.gmra.mxu0 %v3050
        %v4289 = vpop.f32.mrf.mxu0
        %v4290 = vadd.f32 %v4081, %v4289
        %4291 = vmatmul.f32.gmra.mxu0 %v3058
        %v4292 = vpop.f32.mrf.mxu0
        %v4293 = vadd.f32 %v4084, %v4292
        %4294 = vmatmul.f32.gmra.mxu0 %v3066
        %v4295 = vpop.f32.mrf.mxu0
        %v4296 = vadd.f32 %v4087, %v4295
        %4297 = vmatmul.f32.gmra.mxu0 %v3074
        %v4298 = vpop.f32.mrf.mxu0
        %v4299 = vadd.f32 %v4090, %v4298
        %4300 = vmatmul.f32.gmra.mxu0 %v3082
        %v4301 = vpop.f32.mrf.mxu0
        %v4302 = vadd.f32 %v4093, %v4301
        %4303 = vmatmul.f32.gmra.mxu0 %v3090
        %v4304 = vpop.f32.mrf.mxu0
        %v4305 = vadd.f32 %v4096, %v4304
        %4306 = vmatmul.f32.gmra.mxu0 %v3098
        %v4307 = vpop.f32.mrf.mxu0
        %v4308 = vadd.f32 %v4099, %v4307
        %4309 = vmatmul.f32.gmra.mxu0 %v3106
        %v4310 = vpop.f32.mrf.mxu0
        %v4311 = vadd.f32 %v4102, %v4310
        %4312 = vmatmul.f32.gmra.mxu0 %v3114
        %v4313 = vpop.f32.mrf.mxu0
        %v4314 = vadd.f32 %v4105, %v4313
        %4315 = vmatmul.f32.gmra.mxu0 %v3122
        %v4316 = vpop.f32.mrf.mxu0
        %v4317 = vadd.f32 %v4108, %v4316
        %4318 = vmatmul.f32.gmra.mxu0 %v3130
        %v4319 = vpop.f32.mrf.mxu0
        %v4320 = vadd.f32 %v4111, %v4319
        %4321 = vmatmul.f32.gmra.mxu0 %v3138
        %v4322 = vpop.f32.mrf.mxu0
        %v4323 = vadd.f32 %v4114, %v4322
        %4324 = vmatmul.f32.gmra.mxu0 %v3146
        %v4325 = vpop.f32.mrf.mxu0
        %v4326 = vadd.f32 %v4117, %v4325
        %4327 = vmatmul.f32.gmra.mxu0 %v3154
        %v4328 = vpop.f32.mrf.mxu0
        %v4329 = vadd.f32 %v4120, %v4328
        %4330 = vmatmul.f32.gmra.mxu0 %v3162
        %v4331 = vpop.f32.mrf.mxu0
        %v4332 = vadd.f32 %v4123, %v4331
        %4333 = vmatmul.f32.gmra.mxu0 %v3170
        %v4334 = vpop.f32.mrf.mxu0
        %v4335 = vadd.f32 %v4126, %v4334
        %4336 = vmatmul.f32.gmra.mxu0 %v3178
        %v4337 = vpop.f32.mrf.mxu0
        %v4338 = vadd.f32 %v4129, %v4337
        %4339 = vmatmul.f32.gmra.mxu0 %v3186
        %v4340 = vpop.f32.mrf.mxu0
        %v4341 = vadd.f32 %v4132, %v4340
        %4342 = vmatmul.f32.gmra.mxu0 %v3194
        %v4343 = vpop.f32.mrf.mxu0
        %v4344 = vadd.f32 %v4135, %v4343
        %4345 = vmatmul.f32.gmra.mxu0 %v3202
        %v4346 = vpop.f32.mrf.mxu0
        %v4347 = vadd.f32 %v4138, %v4346
        %4348 = vmatmul.f32.gmra.mxu0 %v3210
        %v4349 = vpop.f32.mrf.mxu0
        %v4350 = vadd.f32 %v4141, %v4349
        %4351 = vmatmul.f32.gmra.mxu0 %v3218
        %v4352 = vpop.f32.mrf.mxu0
        %v4353 = vadd.f32 %v4144, %v4352
        %4354 = vmatmul.f32.gmra.mxu0 %v3226
        %v4355 = vpop.f32.mrf.mxu0
        %v4356 = vadd.f32 %v4147, %v4355
        %4357 = vmatmul.f32.gmra.mxu0 %v3234
        %v4358 = vpop.f32.mrf.mxu0
        %v4359 = vadd.f32 %v4150, %v4358
        %4360 = vmatmul.f32.gmra.mxu0 %v3242
        %v4361 = vpop.f32.mrf.mxu0
        %v4362 = vadd.f32 %v4153, %v4361
        %4363 = vmatmul.f32.gmra.mxu0 %v3250
        %v4364 = vpop.f32.mrf.mxu0
        %v4365 = vadd.f32 %v4156, %v4364
        %4366 = vmatmul.f32.gmra.mxu0 %v3258
        %v4367 = vpop.f32.mrf.mxu0
        %v4368 = vadd.f32 %v4159, %v4367
        %4369 = vmatmul.f32.gmra.mxu0 %v3266
        %v4370 = vpop.f32.mrf.mxu0
        %v4371 = vadd.f32 %v4162, %v4370
        %4372 = vmatmul.f32.gmra.mxu0 %v3274
        %v4373 = vpop.f32.mrf.mxu0
        %v4374 = vadd.f32 %v4165, %v4373
        %4375 = vmatmul.f32.gmra.mxu0 %v3282
        %v4376 = vpop.f32.mrf.mxu0
        %v4377 = vadd.f32 %v4168, %v4376
        %4378 = vmatmul.f32.gmra.mxu0 %v3290
        %v4379 = vpop.f32.mrf.mxu0
        %v4380 = vadd.f32 %v4171, %v4379
        %4381 = vmatmul.f32.gmra.mxu0 %v3298
        %v4382 = vpop.f32.mrf.mxu0
        %v4383 = vadd.f32 %v4174, %v4382
        %4384 = vmatmul.f32.gmra.mxu0 %v3306
        %v4385 = vpop.f32.mrf.mxu0
        %v4386 = vadd.f32 %v4177, %v4385
        %4387 = vmatmul.f32.gmra.mxu0 %v3314
        %v4388 = vpop.f32.mrf.mxu0
        %v4389 = vadd.f32 %v4180, %v4388
        %4390 = vmatmul.f32.gmra.mxu0 %v3322
        %v4391 = vpop.f32.mrf.mxu0
        %v4392 = vadd.f32 %v4183, %v4391
        %4393 = vmatmul.f32.gmra.mxu0 %v3330
        %v4394 = vpop.f32.mrf.mxu0
        %v4395 = vadd.f32 %v4186, %v4394
        %4396 = vmatmul.f32.gmra.mxu0 %v3338
        %v4397 = vpop.f32.mrf.mxu0
        %v4398 = vadd.f32 %v4189, %v4397
        %4399 = vmatmul.f32.gmra.mxu0 %v3346
        %v4400 = vpop.f32.mrf.mxu0
        %v4401 = vadd.f32 %v4192, %v4400
        %4402 = vmatmul.f32.gmra.mxu0 %v3354
        %v4403 = vpop.f32.mrf.mxu0
        %v4404 = vadd.f32 %v4195, %v4403
        %4405 = vmatmul.f32.gmra.mxu0 %v3362
        %v4406 = vpop.f32.mrf.mxu0
        %v4407 = vadd.f32 %v4198, %v4406
        %4408 = vmatmul.f32.gmra.mxu0 %v3370
        %v4409 = vpop.f32.mrf.mxu0
        %v4410 = vadd.f32 %v4201, %v4409
        %4411 = vmatmul.f32.gmra.mxu0 %v3378
        %v4412 = vpop.f32.mrf.mxu0
        %v4413 = vadd.f32 %v4204, %v4412
        %4414 = vmatmul.f32.gmra.mxu0 %v3386
        %v4415 = vpop.f32.mrf.mxu0
        %v4416 = vadd.f32 %v4207, %v4415
        %4417 = vmatmul.f32.gmra.mxu0 %v3394
        %v4418 = vpop.f32.mrf.mxu0
        %v4419 = vadd.f32 %v4210, %v4418
        %4420 = vmatmul.f32.gmra.mxu0 %v3402
        %v4421 = vpop.f32.mrf.mxu0
        %v4422 = vadd.f32 %v4213, %v4421
        %4423 = vmatmul.f32.gmra.mxu0 %v3410
        %v4424 = vpop.f32.mrf.mxu0
        %v4425 = vadd.f32 %v4216, %v4424
        %4426 = vdwg.mxu0
        %4427 = vmatpush.msra.mxu0 %v2839
        %4428 = vmatpush.msra.mxu0 %v2838
        %4429 = vmatpush.msra.mxu0 %v2837
        %4430 = vmatpush.msra.mxu0 %v2836
        %4431 = vmatpush.msra.mxu0 %v2835
        %4432 = vmatpush.msra.mxu0 %v2834
        %4433 = vmatpush.msra.mxu0 %v2833
        %4434 = vmatpush.msra.mxu0 %v2832
        %4435 = vmatpush.msra.mxu0 %v2831
        %4436 = vmatpush.msra.mxu0 %v2830
        %4437 = vmatpush.msra.mxu0 %v2829
        %4438 = vmatpush.msra.mxu0 %v2828
        %4439 = vmatpush.msra.mxu0 %v2827
        %4440 = vmatpush.msra.mxu0 %v2826
        %4441 = vmatpush.msra.mxu0 %v2825
        %4442 = vmatpush.msra.mxu0 %v2824
        %4443 = vmatmul.f32.gmra.mxu0 %v2907
        %v4444 = vpop.f32.mrf.mxu0
        %v4445 = vadd.f32 %v4236, %v4444
        %4446 = vmatmul.f32.gmra.mxu0 %v2915
        %v4447 = vpop.f32.mrf.mxu0
        %v4448 = vadd.f32 %v4239, %v4447
        %4449 = vmatmul.f32.gmra.mxu0 %v2923
        %v4450 = vpop.f32.mrf.mxu0
        %v4451 = vadd.f32 %v4242, %v4450
        %4452 = vmatmul.f32.gmra.mxu0 %v2931
        %v4453 = vpop.f32.mrf.mxu0
        %v4454 = vadd.f32 %v4245, %v4453
        %4455 = vmatmul.f32.gmra.mxu0 %v2939
        %v4456 = vpop.f32.mrf.mxu0
        %v4457 = vadd.f32 %v4248, %v4456
        %4458 = vmatmul.f32.gmra.mxu0 %v2947
        %v4459 = vpop.f32.mrf.mxu0
        %v4460 = vadd.f32 %v4251, %v4459
        %4461 = vmatmul.f32.gmra.mxu0 %v2955
        %v4462 = vpop.f32.mrf.mxu0
        %v4463 = vadd.f32 %v4254, %v4462
        %4464 = vmatmul.f32.gmra.mxu0 %v2963
        %v4465 = vpop.f32.mrf.mxu0
        %v4466 = vadd.f32 %v4257, %v4465
        %4467 = vmatmul.f32.gmra.mxu0 %v2971
        %v4468 = vpop.f32.mrf.mxu0
        %v4469 = vadd.f32 %v4260, %v4468
        %4470 = vmatmul.f32.gmra.mxu0 %v2979
        %v4471 = vpop.f32.mrf.mxu0
        %v4472 = vadd.f32 %v4263, %v4471
        %4473 = vmatmul.f32.gmra.mxu0 %v2987
        %v4474 = vpop.f32.mrf.mxu0
        %v4475 = vadd.f32 %v4266, %v4474
        %4476 = vmatmul.f32.gmra.mxu0 %v2995
        %v4477 = vpop.f32.mrf.mxu0
        %v4478 = vadd.f32 %v4269, %v4477
        %4479 = vmatmul.f32.gmra.mxu0 %v3003
        %v4480 = vpop.f32.mrf.mxu0
        %v4481 = vadd.f32 %v4272, %v4480
        %4482 = vmatmul.f32.gmra.mxu0 %v3011
        %v4483 = vpop.f32.mrf.mxu0
        %v4484 = vadd.f32 %v4275, %v4483
        %4485 = vmatmul.f32.gmra.mxu0 %v3019
        %v4486 = vpop.f32.mrf.mxu0
        %v4487 = vadd.f32 %v4278, %v4486
        %4488 = vmatmul.f32.gmra.mxu0 %v3027
        %v4489 = vpop.f32.mrf.mxu0
        %v4490 = vadd.f32 %v4281, %v4489
        %4491 = vmatmul.f32.gmra.mxu0 %v3035
        %v4492 = vpop.f32.mrf.mxu0
        %v4493 = vadd.f32 %v4284, %v4492
        %4494 = vmatmul.f32.gmra.mxu0 %v3043
        %v4495 = vpop.f32.mrf.mxu0
        %v4496 = vadd.f32 %v4287, %v4495
        %4497 = vmatmul.f32.gmra.mxu0 %v3051
        %v4498 = vpop.f32.mrf.mxu0
        %v4499 = vadd.f32 %v4290, %v4498
        %4500 = vmatmul.f32.gmra.mxu0 %v3059
        %v4501 = vpop.f32.mrf.mxu0
        %v4502 = vadd.f32 %v4293, %v4501
        %4503 = vmatmul.f32.gmra.mxu0 %v3067
        %v4504 = vpop.f32.mrf.mxu0
        %v4505 = vadd.f32 %v4296, %v4504
        %4506 = vmatmul.f32.gmra.mxu0 %v3075
        %v4507 = vpop.f32.mrf.mxu0
        %v4508 = vadd.f32 %v4299, %v4507
        %4509 = vmatmul.f32.gmra.mxu0 %v3083
        %v4510 = vpop.f32.mrf.mxu0
        %v4511 = vadd.f32 %v4302, %v4510
        %4512 = vmatmul.f32.gmra.mxu0 %v3091
        %v4513 = vpop.f32.mrf.mxu0
        %v4514 = vadd.f32 %v4305, %v4513
        %4515 = vmatmul.f32.gmra.mxu0 %v3099
        %v4516 = vpop.f32.mrf.mxu0
        %v4517 = vadd.f32 %v4308, %v4516
        %4518 = vmatmul.f32.gmra.mxu0 %v3107
        %v4519 = vpop.f32.mrf.mxu0
        %v4520 = vadd.f32 %v4311, %v4519
        %4521 = vmatmul.f32.gmra.mxu0 %v3115
        %v4522 = vpop.f32.mrf.mxu0
        %v4523 = vadd.f32 %v4314, %v4522
        %4524 = vmatmul.f32.gmra.mxu0 %v3123
        %v4525 = vpop.f32.mrf.mxu0
        %v4526 = vadd.f32 %v4317, %v4525
        %4527 = vmatmul.f32.gmra.mxu0 %v3131
        %v4528 = vpop.f32.mrf.mxu0
        %v4529 = vadd.f32 %v4320, %v4528
        %4530 = vmatmul.f32.gmra.mxu0 %v3139
        %v4531 = vpop.f32.mrf.mxu0
        %v4532 = vadd.f32 %v4323, %v4531
        %4533 = vmatmul.f32.gmra.mxu0 %v3147
        %v4534 = vpop.f32.mrf.mxu0
        %v4535 = vadd.f32 %v4326, %v4534
        %4536 = vmatmul.f32.gmra.mxu0 %v3155
        %v4537 = vpop.f32.mrf.mxu0
        %v4538 = vadd.f32 %v4329, %v4537
        %4539 = vmatmul.f32.gmra.mxu0 %v3163
        %v4540 = vpop.f32.mrf.mxu0
        %v4541 = vadd.f32 %v4332, %v4540
        %4542 = vmatmul.f32.gmra.mxu0 %v3171
        %v4543 = vpop.f32.mrf.mxu0
        %v4544 = vadd.f32 %v4335, %v4543
        %4545 = vmatmul.f32.gmra.mxu0 %v3179
        %v4546 = vpop.f32.mrf.mxu0
        %v4547 = vadd.f32 %v4338, %v4546
        %4548 = vmatmul.f32.gmra.mxu0 %v3187
        %v4549 = vpop.f32.mrf.mxu0
        %v4550 = vadd.f32 %v4341, %v4549
        %4551 = vmatmul.f32.gmra.mxu0 %v3195
        %v4552 = vpop.f32.mrf.mxu0
        %v4553 = vadd.f32 %v4344, %v4552
        %4554 = vmatmul.f32.gmra.mxu0 %v3203
        %v4555 = vpop.f32.mrf.mxu0
        %v4556 = vadd.f32 %v4347, %v4555
        %4557 = vmatmul.f32.gmra.mxu0 %v3211
        %v4558 = vpop.f32.mrf.mxu0
        %v4559 = vadd.f32 %v4350, %v4558
        %4560 = vmatmul.f32.gmra.mxu0 %v3219
        %v4561 = vpop.f32.mrf.mxu0
        %v4562 = vadd.f32 %v4353, %v4561
        %4563 = vmatmul.f32.gmra.mxu0 %v3227
        %v4564 = vpop.f32.mrf.mxu0
        %v4565 = vadd.f32 %v4356, %v4564
        %4566 = vmatmul.f32.gmra.mxu0 %v3235
        %v4567 = vpop.f32.mrf.mxu0
        %v4568 = vadd.f32 %v4359, %v4567
        %4569 = vmatmul.f32.gmra.mxu0 %v3243
        %v4570 = vpop.f32.mrf.mxu0
        %v4571 = vadd.f32 %v4362, %v4570
        %4572 = vmatmul.f32.gmra.mxu0 %v3251
        %v4573 = vpop.f32.mrf.mxu0
        %v4574 = vadd.f32 %v4365, %v4573
        %4575 = vmatmul.f32.gmra.mxu0 %v3259
        %v4576 = vpop.f32.mrf.mxu0
        %v4577 = vadd.f32 %v4368, %v4576
        %4578 = vmatmul.f32.gmra.mxu0 %v3267
        %v4579 = vpop.f32.mrf.mxu0
        %v4580 = vadd.f32 %v4371, %v4579
        %4581 = vmatmul.f32.gmra.mxu0 %v3275
        %v4582 = vpop.f32.mrf.mxu0
        %v4583 = vadd.f32 %v4374, %v4582
        %4584 = vmatmul.f32.gmra.mxu0 %v3283
        %v4585 = vpop.f32.mrf.mxu0
        %v4586 = vadd.f32 %v4377, %v4585
        %4587 = vmatmul.f32.gmra.mxu0 %v3291
        %v4588 = vpop.f32.mrf.mxu0
        %v4589 = vadd.f32 %v4380, %v4588
        %4590 = vmatmul.f32.gmra.mxu0 %v3299
        %v4591 = vpop.f32.mrf.mxu0
        %v4592 = vadd.f32 %v4383, %v4591
        %4593 = vmatmul.f32.gmra.mxu0 %v3307
        %v4594 = vpop.f32.mrf.mxu0
        %v4595 = vadd.f32 %v4386, %v4594
        %4596 = vmatmul.f32.gmra.mxu0 %v3315
        %v4597 = vpop.f32.mrf.mxu0
        %v4598 = vadd.f32 %v4389, %v4597
        %4599 = vmatmul.f32.gmra.mxu0 %v3323
        %v4600 = vpop.f32.mrf.mxu0
        %v4601 = vadd.f32 %v4392, %v4600
        %4602 = vmatmul.f32.gmra.mxu0 %v3331
        %v4603 = vpop.f32.mrf.mxu0
        %v4604 = vadd.f32 %v4395, %v4603
        %4605 = vmatmul.f32.gmra.mxu0 %v3339
        %v4606 = vpop.f32.mrf.mxu0
        %v4607 = vadd.f32 %v4398, %v4606
        %4608 = vmatmul.f32.gmra.mxu0 %v3347
        %v4609 = vpop.f32.mrf.mxu0
        %v4610 = vadd.f32 %v4401, %v4609
        %4611 = vmatmul.f32.gmra.mxu0 %v3355
        %v4612 = vpop.f32.mrf.mxu0
        %v4613 = vadd.f32 %v4404, %v4612
        %4614 = vmatmul.f32.gmra.mxu0 %v3363
        %v4615 = vpop.f32.mrf.mxu0
        %v4616 = vadd.f32 %v4407, %v4615
        %4617 = vmatmul.f32.gmra.mxu0 %v3371
        %v4618 = vpop.f32.mrf.mxu0
        %v4619 = vadd.f32 %v4410, %v4618
        %4620 = vmatmul.f32.gmra.mxu0 %v3379
        %v4621 = vpop.f32.mrf.mxu0
        %v4622 = vadd.f32 %v4413, %v4621
        %4623 = vmatmul.f32.gmra.mxu0 %v3387
        %v4624 = vpop.f32.mrf.mxu0
        %v4625 = vadd.f32 %v4416, %v4624
        %4626 = vmatmul.f32.gmra.mxu0 %v3395
        %v4627 = vpop.f32.mrf.mxu0
        %v4628 = vadd.f32 %v4419, %v4627
        %4629 = vmatmul.f32.gmra.mxu0 %v3403
        %v4630 = vpop.f32.mrf.mxu0
        %v4631 = vadd.f32 %v4422, %v4630
        %4632 = vmatmul.f32.gmra.mxu0 %v3411
        %v4633 = vpop.f32.mrf.mxu0
        %v4634 = vadd.f32 %v4425, %v4633
        %4635 = vdwg.mxu0
        %4636 = vmatpush.msra.mxu0 %v2855
        %4637 = vmatpush.msra.mxu0 %v2854
        %4638 = vmatpush.msra.mxu0 %v2853
        %4639 = vmatpush.msra.mxu0 %v2852
        %4640 = vmatpush.msra.mxu0 %v2851
        %4641 = vmatpush.msra.mxu0 %v2850
        %4642 = vmatpush.msra.mxu0 %v2849
        %4643 = vmatpush.msra.mxu0 %v2848
        %4644 = vmatpush.msra.mxu0 %v2847
        %4645 = vmatpush.msra.mxu0 %v2846
        %4646 = vmatpush.msra.mxu0 %v2845
        %4647 = vmatpush.msra.mxu0 %v2844
        %4648 = vmatpush.msra.mxu0 %v2843
        %4649 = vmatpush.msra.mxu0 %v2842
        %4650 = vmatpush.msra.mxu0 %v2841
        %4651 = vmatpush.msra.mxu0 %v2840
        %4652 = vmatmul.f32.gmra.mxu0 %v2908
        %v4653 = vpop.f32.mrf.mxu0
        %v4654 = vadd.f32 %v4445, %v4653
        %4655 = vmatmul.f32.gmra.mxu0 %v2916
        %v4656 = vpop.f32.mrf.mxu0
        %v4657 = vadd.f32 %v4448, %v4656
        %4658 = vmatmul.f32.gmra.mxu0 %v2924
        %v4659 = vpop.f32.mrf.mxu0
        %v4660 = vadd.f32 %v4451, %v4659
        %4661 = vmatmul.f32.gmra.mxu0 %v2932
        %v4662 = vpop.f32.mrf.mxu0
        %v4663 = vadd.f32 %v4454, %v4662
        %4664 = vmatmul.f32.gmra.mxu0 %v2940
        %v4665 = vpop.f32.mrf.mxu0
        %v4666 = vadd.f32 %v4457, %v4665
        %4667 = vmatmul.f32.gmra.mxu0 %v2948
        %v4668 = vpop.f32.mrf.mxu0
        %v4669 = vadd.f32 %v4460, %v4668
        %4670 = vmatmul.f32.gmra.mxu0 %v2956
        %v4671 = vpop.f32.mrf.mxu0
        %v4672 = vadd.f32 %v4463, %v4671
        %4673 = vmatmul.f32.gmra.mxu0 %v2964
        %v4674 = vpop.f32.mrf.mxu0
        %v4675 = vadd.f32 %v4466, %v4674
        %4676 = vmatmul.f32.gmra.mxu0 %v2972
        %v4677 = vpop.f32.mrf.mxu0
        %v4678 = vadd.f32 %v4469, %v4677
        %4679 = vmatmul.f32.gmra.mxu0 %v2980
        %v4680 = vpop.f32.mrf.mxu0
        %v4681 = vadd.f32 %v4472, %v4680
        %4682 = vmatmul.f32.gmra.mxu0 %v2988
        %v4683 = vpop.f32.mrf.mxu0
        %v4684 = vadd.f32 %v4475, %v4683
        %4685 = vmatmul.f32.gmra.mxu0 %v2996
        %v4686 = vpop.f32.mrf.mxu0
        %v4687 = vadd.f32 %v4478, %v4686
        %4688 = vmatmul.f32.gmra.mxu0 %v3004
        %v4689 = vpop.f32.mrf.mxu0
        %v4690 = vadd.f32 %v4481, %v4689
        %4691 = vmatmul.f32.gmra.mxu0 %v3012
        %v4692 = vpop.f32.mrf.mxu0
        %v4693 = vadd.f32 %v4484, %v4692
        %4694 = vmatmul.f32.gmra.mxu0 %v3020
        %v4695 = vpop.f32.mrf.mxu0
        %v4696 = vadd.f32 %v4487, %v4695
        %4697 = vmatmul.f32.gmra.mxu0 %v3028
        %v4698 = vpop.f32.mrf.mxu0
        %v4699 = vadd.f32 %v4490, %v4698
        %4700 = vmatmul.f32.gmra.mxu0 %v3036
        %v4701 = vpop.f32.mrf.mxu0
        %v4702 = vadd.f32 %v4493, %v4701
        %4703 = vmatmul.f32.gmra.mxu0 %v3044
        %v4704 = vpop.f32.mrf.mxu0
        %v4705 = vadd.f32 %v4496, %v4704
        %4706 = vmatmul.f32.gmra.mxu0 %v3052
        %v4707 = vpop.f32.mrf.mxu0
        %v4708 = vadd.f32 %v4499, %v4707
        %4709 = vmatmul.f32.gmra.mxu0 %v3060
        %v4710 = vpop.f32.mrf.mxu0
        %v4711 = vadd.f32 %v4502, %v4710
        %4712 = vmatmul.f32.gmra.mxu0 %v3068
        %v4713 = vpop.f32.mrf.mxu0
        %v4714 = vadd.f32 %v4505, %v4713
        %4715 = vmatmul.f32.gmra.mxu0 %v3076
        %v4716 = vpop.f32.mrf.mxu0
        %v4717 = vadd.f32 %v4508, %v4716
        %4718 = vmatmul.f32.gmra.mxu0 %v3084
        %v4719 = vpop.f32.mrf.mxu0
        %v4720 = vadd.f32 %v4511, %v4719
        %4721 = vmatmul.f32.gmra.mxu0 %v3092
        %v4722 = vpop.f32.mrf.mxu0
        %v4723 = vadd.f32 %v4514, %v4722
        %4724 = vmatmul.f32.gmra.mxu0 %v3100
        %v4725 = vpop.f32.mrf.mxu0
        %v4726 = vadd.f32 %v4517, %v4725
        %4727 = vmatmul.f32.gmra.mxu0 %v3108
        %v4728 = vpop.f32.mrf.mxu0
        %v4729 = vadd.f32 %v4520, %v4728
        %4730 = vmatmul.f32.gmra.mxu0 %v3116
        %v4731 = vpop.f32.mrf.mxu0
        %v4732 = vadd.f32 %v4523, %v4731
        %4733 = vmatmul.f32.gmra.mxu0 %v3124
        %v4734 = vpop.f32.mrf.mxu0
        %v4735 = vadd.f32 %v4526, %v4734
        %4736 = vmatmul.f32.gmra.mxu0 %v3132
        %v4737 = vpop.f32.mrf.mxu0
        %v4738 = vadd.f32 %v4529, %v4737
        %4739 = vmatmul.f32.gmra.mxu0 %v3140
        %v4740 = vpop.f32.mrf.mxu0
        %v4741 = vadd.f32 %v4532, %v4740
        %4742 = vmatmul.f32.gmra.mxu0 %v3148
        %v4743 = vpop.f32.mrf.mxu0
        %v4744 = vadd.f32 %v4535, %v4743
        %4745 = vmatmul.f32.gmra.mxu0 %v3156
        %v4746 = vpop.f32.mrf.mxu0
        %v4747 = vadd.f32 %v4538, %v4746
        %4748 = vmatmul.f32.gmra.mxu0 %v3164
        %v4749 = vpop.f32.mrf.mxu0
        %v4750 = vadd.f32 %v4541, %v4749
        %4751 = vmatmul.f32.gmra.mxu0 %v3172
        %v4752 = vpop.f32.mrf.mxu0
        %v4753 = vadd.f32 %v4544, %v4752
        %4754 = vmatmul.f32.gmra.mxu0 %v3180
        %v4755 = vpop.f32.mrf.mxu0
        %v4756 = vadd.f32 %v4547, %v4755
        %4757 = vmatmul.f32.gmra.mxu0 %v3188
        %v4758 = vpop.f32.mrf.mxu0
        %v4759 = vadd.f32 %v4550, %v4758
        %4760 = vmatmul.f32.gmra.mxu0 %v3196
        %v4761 = vpop.f32.mrf.mxu0
        %v4762 = vadd.f32 %v4553, %v4761
        %4763 = vmatmul.f32.gmra.mxu0 %v3204
        %v4764 = vpop.f32.mrf.mxu0
        %v4765 = vadd.f32 %v4556, %v4764
        %4766 = vmatmul.f32.gmra.mxu0 %v3212
        %v4767 = vpop.f32.mrf.mxu0
        %v4768 = vadd.f32 %v4559, %v4767
        %4769 = vmatmul.f32.gmra.mxu0 %v3220
        %v4770 = vpop.f32.mrf.mxu0
        %v4771 = vadd.f32 %v4562, %v4770
        %4772 = vmatmul.f32.gmra.mxu0 %v3228
        %v4773 = vpop.f32.mrf.mxu0
        %v4774 = vadd.f32 %v4565, %v4773
        %4775 = vmatmul.f32.gmra.mxu0 %v3236
        %v4776 = vpop.f32.mrf.mxu0
        %v4777 = vadd.f32 %v4568, %v4776
        %4778 = vmatmul.f32.gmra.mxu0 %v3244
        %v4779 = vpop.f32.mrf.mxu0
        %v4780 = vadd.f32 %v4571, %v4779
        %4781 = vmatmul.f32.gmra.mxu0 %v3252
        %v4782 = vpop.f32.mrf.mxu0
        %v4783 = vadd.f32 %v4574, %v4782
        %4784 = vmatmul.f32.gmra.mxu0 %v3260
        %v4785 = vpop.f32.mrf.mxu0
        %v4786 = vadd.f32 %v4577, %v4785
        %4787 = vmatmul.f32.gmra.mxu0 %v3268
        %v4788 = vpop.f32.mrf.mxu0
        %v4789 = vadd.f32 %v4580, %v4788
        %4790 = vmatmul.f32.gmra.mxu0 %v3276
        %v4791 = vpop.f32.mrf.mxu0
        %v4792 = vadd.f32 %v4583, %v4791
        %4793 = vmatmul.f32.gmra.mxu0 %v3284
        %v4794 = vpop.f32.mrf.mxu0
        %v4795 = vadd.f32 %v4586, %v4794
        %4796 = vmatmul.f32.gmra.mxu0 %v3292
        %v4797 = vpop.f32.mrf.mxu0
        %v4798 = vadd.f32 %v4589, %v4797
        %4799 = vmatmul.f32.gmra.mxu0 %v3300
        %v4800 = vpop.f32.mrf.mxu0
        %v4801 = vadd.f32 %v4592, %v4800
        %4802 = vmatmul.f32.gmra.mxu0 %v3308
        %v4803 = vpop.f32.mrf.mxu0
        %v4804 = vadd.f32 %v4595, %v4803
        %4805 = vmatmul.f32.gmra.mxu0 %v3316
        %v4806 = vpop.f32.mrf.mxu0
        %v4807 = vadd.f32 %v4598, %v4806
        %4808 = vmatmul.f32.gmra.mxu0 %v3324
        %v4809 = vpop.f32.mrf.mxu0
        %v4810 = vadd.f32 %v4601, %v4809
        %4811 = vmatmul.f32.gmra.mxu0 %v3332
        %v4812 = vpop.f32.mrf.mxu0
        %v4813 = vadd.f32 %v4604, %v4812
        %4814 = vmatmul.f32.gmra.mxu0 %v3340
        %v4815 = vpop.f32.mrf.mxu0
        %v4816 = vadd.f32 %v4607, %v4815
        %4817 = vmatmul.f32.gmra.mxu0 %v3348
        %v4818 = vpop.f32.mrf.mxu0
        %v4819 = vadd.f32 %v4610, %v4818
        %4820 = vmatmul.f32.gmra.mxu0 %v3356
        %v4821 = vpop.f32.mrf.mxu0
        %v4822 = vadd.f32 %v4613, %v4821
        %4823 = vmatmul.f32.gmra.mxu0 %v3364
        %v4824 = vpop.f32.mrf.mxu0
        %v4825 = vadd.f32 %v4616, %v4824
        %4826 = vmatmul.f32.gmra.mxu0 %v3372
        %v4827 = vpop.f32.mrf.mxu0
        %v4828 = vadd.f32 %v4619, %v4827
        %4829 = vmatmul.f32.gmra.mxu0 %v3380
        %v4830 = vpop.f32.mrf.mxu0
        %v4831 = vadd.f32 %v4622, %v4830
        %4832 = vmatmul.f32.gmra.mxu0 %v3388
        %v4833 = vpop.f32.mrf.mxu0
        %v4834 = vadd.f32 %v4625, %v4833
        %4835 = vmatmul.f32.gmra.mxu0 %v3396
        %v4836 = vpop.f32.mrf.mxu0
        %v4837 = vadd.f32 %v4628, %v4836
        %4838 = vmatmul.f32.gmra.mxu0 %v3404
        %v4839 = vpop.f32.mrf.mxu0
        %v4840 = vadd.f32 %v4631, %v4839
        %4841 = vmatmul.f32.gmra.mxu0 %v3412
        %v4842 = vpop.f32.mrf.mxu0
        %v4843 = vadd.f32 %v4634, %v4842
        %4844 = vdwg.mxu0
        %4845 = vmatpush.msra.mxu0 %v2871
        %4846 = vmatpush.msra.mxu0 %v2870
        %4847 = vmatpush.msra.mxu0 %v2869
        %4848 = vmatpush.msra.mxu0 %v2868
        %4849 = vmatpush.msra.mxu0 %v2867
        %4850 = vmatpush.msra.mxu0 %v2866
        %4851 = vmatpush.msra.mxu0 %v2865
        %4852 = vmatpush.msra.mxu0 %v2864
        %4853 = vmatpush.msra.mxu0 %v2863
        %4854 = vmatpush.msra.mxu0 %v2862
        %4855 = vmatpush.msra.mxu0 %v2861
        %4856 = vmatpush.msra.mxu0 %v2860
        %4857 = vmatpush.msra.mxu0 %v2859
        %4858 = vmatpush.msra.mxu0 %v2858
        %4859 = vmatpush.msra.mxu0 %v2857
        %4860 = vmatpush.msra.mxu0 %v2856
        %4861 = vmatmul.f32.gmra.mxu0 %v2909
        %v4862 = vpop.f32.mrf.mxu0
        %v4863 = vadd.f32 %v4654, %v4862
        %4864 = vmatmul.f32.gmra.mxu0 %v2917
        %v4865 = vpop.f32.mrf.mxu0
        %v4866 = vadd.f32 %v4657, %v4865
        %4867 = vmatmul.f32.gmra.mxu0 %v2925
        %v4868 = vpop.f32.mrf.mxu0
        %v4869 = vadd.f32 %v4660, %v4868
        %4870 = vmatmul.f32.gmra.mxu0 %v2933
        %v4871 = vpop.f32.mrf.mxu0
        %v4872 = vadd.f32 %v4663, %v4871
        %4873 = vmatmul.f32.gmra.mxu0 %v2941
        %v4874 = vpop.f32.mrf.mxu0
        %v4875 = vadd.f32 %v4666, %v4874
        %4876 = vmatmul.f32.gmra.mxu0 %v2949
        %v4877 = vpop.f32.mrf.mxu0
        %v4878 = vadd.f32 %v4669, %v4877
        %4879 = vmatmul.f32.gmra.mxu0 %v2957
        %v4880 = vpop.f32.mrf.mxu0
        %v4881 = vadd.f32 %v4672, %v4880
        %4882 = vmatmul.f32.gmra.mxu0 %v2965
        %v4883 = vpop.f32.mrf.mxu0
        %v4884 = vadd.f32 %v4675, %v4883
        %4885 = vmatmul.f32.gmra.mxu0 %v2973
        %v4886 = vpop.f32.mrf.mxu0
        %v4887 = vadd.f32 %v4678, %v4886
        %4888 = vmatmul.f32.gmra.mxu0 %v2981
        %v4889 = vpop.f32.mrf.mxu0
        %v4890 = vadd.f32 %v4681, %v4889
        %4891 = vmatmul.f32.gmra.mxu0 %v2989
        %v4892 = vpop.f32.mrf.mxu0
        %v4893 = vadd.f32 %v4684, %v4892
        %4894 = vmatmul.f32.gmra.mxu0 %v2997
        %v4895 = vpop.f32.mrf.mxu0
        %v4896 = vadd.f32 %v4687, %v4895
        %4897 = vmatmul.f32.gmra.mxu0 %v3005
        %v4898 = vpop.f32.mrf.mxu0
        %v4899 = vadd.f32 %v4690, %v4898
        %4900 = vmatmul.f32.gmra.mxu0 %v3013
        %v4901 = vpop.f32.mrf.mxu0
        %v4902 = vadd.f32 %v4693, %v4901
        %4903 = vmatmul.f32.gmra.mxu0 %v3021
        %v4904 = vpop.f32.mrf.mxu0
        %v4905 = vadd.f32 %v4696, %v4904
        %4906 = vmatmul.f32.gmra.mxu0 %v3029
        %v4907 = vpop.f32.mrf.mxu0
        %v4908 = vadd.f32 %v4699, %v4907
        %4909 = vmatmul.f32.gmra.mxu0 %v3037
        %v4910 = vpop.f32.mrf.mxu0
        %v4911 = vadd.f32 %v4702, %v4910
        %4912 = vmatmul.f32.gmra.mxu0 %v3045
        %v4913 = vpop.f32.mrf.mxu0
        %v4914 = vadd.f32 %v4705, %v4913
        %4915 = vmatmul.f32.gmra.mxu0 %v3053
        %v4916 = vpop.f32.mrf.mxu0
        %v4917 = vadd.f32 %v4708, %v4916
        %4918 = vmatmul.f32.gmra.mxu0 %v3061
        %v4919 = vpop.f32.mrf.mxu0
        %v4920 = vadd.f32 %v4711, %v4919
        %4921 = vmatmul.f32.gmra.mxu0 %v3069
        %v4922 = vpop.f32.mrf.mxu0
        %v4923 = vadd.f32 %v4714, %v4922
        %4924 = vmatmul.f32.gmra.mxu0 %v3077
        %v4925 = vpop.f32.mrf.mxu0
        %v4926 = vadd.f32 %v4717, %v4925
        %4927 = vmatmul.f32.gmra.mxu0 %v3085
        %v4928 = vpop.f32.mrf.mxu0
        %v4929 = vadd.f32 %v4720, %v4928
        %4930 = vmatmul.f32.gmra.mxu0 %v3093
        %v4931 = vpop.f32.mrf.mxu0
        %v4932 = vadd.f32 %v4723, %v4931
        %4933 = vmatmul.f32.gmra.mxu0 %v3101
        %v4934 = vpop.f32.mrf.mxu0
        %v4935 = vadd.f32 %v4726, %v4934
        %4936 = vmatmul.f32.gmra.mxu0 %v3109
        %v4937 = vpop.f32.mrf.mxu0
        %v4938 = vadd.f32 %v4729, %v4937
        %4939 = vmatmul.f32.gmra.mxu0 %v3117
        %v4940 = vpop.f32.mrf.mxu0
        %v4941 = vadd.f32 %v4732, %v4940
        %4942 = vmatmul.f32.gmra.mxu0 %v3125
        %v4943 = vpop.f32.mrf.mxu0
        %v4944 = vadd.f32 %v4735, %v4943
        %4945 = vmatmul.f32.gmra.mxu0 %v3133
        %v4946 = vpop.f32.mrf.mxu0
        %v4947 = vadd.f32 %v4738, %v4946
        %4948 = vmatmul.f32.gmra.mxu0 %v3141
        %v4949 = vpop.f32.mrf.mxu0
        %v4950 = vadd.f32 %v4741, %v4949
        %4951 = vmatmul.f32.gmra.mxu0 %v3149
        %v4952 = vpop.f32.mrf.mxu0
        %v4953 = vadd.f32 %v4744, %v4952
        %4954 = vmatmul.f32.gmra.mxu0 %v3157
        %v4955 = vpop.f32.mrf.mxu0
        %v4956 = vadd.f32 %v4747, %v4955
        %4957 = vmatmul.f32.gmra.mxu0 %v3165
        %v4958 = vpop.f32.mrf.mxu0
        %v4959 = vadd.f32 %v4750, %v4958
        %4960 = vmatmul.f32.gmra.mxu0 %v3173
        %v4961 = vpop.f32.mrf.mxu0
        %v4962 = vadd.f32 %v4753, %v4961
        %4963 = vmatmul.f32.gmra.mxu0 %v3181
        %v4964 = vpop.f32.mrf.mxu0
        %v4965 = vadd.f32 %v4756, %v4964
        %4966 = vmatmul.f32.gmra.mxu0 %v3189
        %v4967 = vpop.f32.mrf.mxu0
        %v4968 = vadd.f32 %v4759, %v4967
        %4969 = vmatmul.f32.gmra.mxu0 %v3197
        %v4970 = vpop.f32.mrf.mxu0
        %v4971 = vadd.f32 %v4762, %v4970
        %4972 = vmatmul.f32.gmra.mxu0 %v3205
        %v4973 = vpop.f32.mrf.mxu0
        %v4974 = vadd.f32 %v4765, %v4973
        %4975 = vmatmul.f32.gmra.mxu0 %v3213
        %v4976 = vpop.f32.mrf.mxu0
        %v4977 = vadd.f32 %v4768, %v4976
        %4978 = vmatmul.f32.gmra.mxu0 %v3221
        %v4979 = vpop.f32.mrf.mxu0
        %v4980 = vadd.f32 %v4771, %v4979
        %4981 = vmatmul.f32.gmra.mxu0 %v3229
        %v4982 = vpop.f32.mrf.mxu0
        %v4983 = vadd.f32 %v4774, %v4982
        %4984 = vmatmul.f32.gmra.mxu0 %v3237
        %v4985 = vpop.f32.mrf.mxu0
        %v4986 = vadd.f32 %v4777, %v4985
        %4987 = vmatmul.f32.gmra.mxu0 %v3245
        %v4988 = vpop.f32.mrf.mxu0
        %v4989 = vadd.f32 %v4780, %v4988
        %4990 = vmatmul.f32.gmra.mxu0 %v3253
        %v4991 = vpop.f32.mrf.mxu0
        %v4992 = vadd.f32 %v4783, %v4991
        %4993 = vmatmul.f32.gmra.mxu0 %v3261
        %v4994 = vpop.f32.mrf.mxu0
        %v4995 = vadd.f32 %v4786, %v4994
        %4996 = vmatmul.f32.gmra.mxu0 %v3269
        %v4997 = vpop.f32.mrf.mxu0
        %v4998 = vadd.f32 %v4789, %v4997
        %4999 = vmatmul.f32.gmra.mxu0 %v3277
        %v5000 = vpop.f32.mrf.mxu0
        %v5001 = vadd.f32 %v4792, %v5000
        %5002 = vmatmul.f32.gmra.mxu0 %v3285
        %v5003 = vpop.f32.mrf.mxu0
        %v5004 = vadd.f32 %v4795, %v5003
        %5005 = vmatmul.f32.gmra.mxu0 %v3293
        %v5006 = vpop.f32.mrf.mxu0
        %v5007 = vadd.f32 %v4798, %v5006
        %5008 = vmatmul.f32.gmra.mxu0 %v3301
        %v5009 = vpop.f32.mrf.mxu0
        %v5010 = vadd.f32 %v4801, %v5009
        %5011 = vmatmul.f32.gmra.mxu0 %v3309
        %v5012 = vpop.f32.mrf.mxu0
        %v5013 = vadd.f32 %v4804, %v5012
        %5014 = vmatmul.f32.gmra.mxu0 %v3317
        %v5015 = vpop.f32.mrf.mxu0
        %v5016 = vadd.f32 %v4807, %v5015
        %5017 = vmatmul.f32.gmra.mxu0 %v3325
        %v5018 = vpop.f32.mrf.mxu0
        %v5019 = vadd.f32 %v4810, %v5018
        %5020 = vmatmul.f32.gmra.mxu0 %v3333
        %v5021 = vpop.f32.mrf.mxu0
        %v5022 = vadd.f32 %v4813, %v5021
        %5023 = vmatmul.f32.gmra.mxu0 %v3341
        %v5024 = vpop.f32.mrf.mxu0
        %v5025 = vadd.f32 %v4816, %v5024
        %5026 = vmatmul.f32.gmra.mxu0 %v3349
        %v5027 = vpop.f32.mrf.mxu0
        %v5028 = vadd.f32 %v4819, %v5027
        %5029 = vmatmul.f32.gmra.mxu0 %v3357
        %v5030 = vpop.f32.mrf.mxu0
        %v5031 = vadd.f32 %v4822, %v5030
        %5032 = vmatmul.f32.gmra.mxu0 %v3365
        %v5033 = vpop.f32.mrf.mxu0
        %v5034 = vadd.f32 %v4825, %v5033
        %5035 = vmatmul.f32.gmra.mxu0 %v3373
        %v5036 = vpop.f32.mrf.mxu0
        %v5037 = vadd.f32 %v4828, %v5036
        %5038 = vmatmul.f32.gmra.mxu0 %v3381
        %v5039 = vpop.f32.mrf.mxu0
        %v5040 = vadd.f32 %v4831, %v5039
        %5041 = vmatmul.f32.gmra.mxu0 %v3389
        %v5042 = vpop.f32.mrf.mxu0
        %v5043 = vadd.f32 %v4834, %v5042
        %5044 = vmatmul.f32.gmra.mxu0 %v3397
        %v5045 = vpop.f32.mrf.mxu0
        %v5046 = vadd.f32 %v4837, %v5045
        %5047 = vmatmul.f32.gmra.mxu0 %v3405
        %v5048 = vpop.f32.mrf.mxu0
        %v5049 = vadd.f32 %v4840, %v5048
        %5050 = vmatmul.f32.gmra.mxu0 %v3413
        %v5051 = vpop.f32.mrf.mxu0
        %v5052 = vadd.f32 %v4843, %v5051
        %5053 = vdwg.mxu0
        %5054 = vmatpush.msra.mxu0 %v2887
        %5055 = vmatpush.msra.mxu0 %v2886
        %5056 = vmatpush.msra.mxu0 %v2885
        %5057 = vmatpush.msra.mxu0 %v2884
        %5058 = vmatpush.msra.mxu0 %v2883
        %5059 = vmatpush.msra.mxu0 %v2882
        %5060 = vmatpush.msra.mxu0 %v2881
        %5061 = vmatpush.msra.mxu0 %v2880
        %5062 = vmatpush.msra.mxu0 %v2879
        %5063 = vmatpush.msra.mxu0 %v2878
        %5064 = vmatpush.msra.mxu0 %v2877
        %5065 = vmatpush.msra.mxu0 %v2876
        %5066 = vmatpush.msra.mxu0 %v2875
        %5067 = vmatpush.msra.mxu0 %v2874
        %5068 = vmatpush.msra.mxu0 %v2873
        %5069 = vmatpush.msra.mxu0 %v2872
        %5070 = vmatmul.f32.gmra.mxu0 %v2910
        %v5071 = vpop.f32.mrf.mxu0
        %v5072 = vadd.f32 %v4863, %v5071
        %5073 = vmatmul.f32.gmra.mxu0 %v2918
        %v5074 = vpop.f32.mrf.mxu0
        %v5075 = vadd.f32 %v4866, %v5074
        %5076 = vmatmul.f32.gmra.mxu0 %v2926
        %v5077 = vpop.f32.mrf.mxu0
        %v5078 = vadd.f32 %v4869, %v5077
        %5079 = vmatmul.f32.gmra.mxu0 %v2934
        %v5080 = vpop.f32.mrf.mxu0
        %v5081 = vadd.f32 %v4872, %v5080
        %5082 = vmatmul.f32.gmra.mxu0 %v2942
        %v5083 = vpop.f32.mrf.mxu0
        %v5084 = vadd.f32 %v4875, %v5083
        %5085 = vmatmul.f32.gmra.mxu0 %v2950
        %v5086 = vpop.f32.mrf.mxu0
        %v5087 = vadd.f32 %v4878, %v5086
        %5088 = vmatmul.f32.gmra.mxu0 %v2958
        %v5089 = vpop.f32.mrf.mxu0
        %v5090 = vadd.f32 %v4881, %v5089
        %5091 = vmatmul.f32.gmra.mxu0 %v2966
        %v5092 = vpop.f32.mrf.mxu0
        %v5093 = vadd.f32 %v4884, %v5092
        %5094 = vmatmul.f32.gmra.mxu0 %v2974
        %v5095 = vpop.f32.mrf.mxu0
        %v5096 = vadd.f32 %v4887, %v5095
        %5097 = vmatmul.f32.gmra.mxu0 %v2982
        %v5098 = vpop.f32.mrf.mxu0
        %v5099 = vadd.f32 %v4890, %v5098
        %5100 = vmatmul.f32.gmra.mxu0 %v2990
        %v5101 = vpop.f32.mrf.mxu0
        %v5102 = vadd.f32 %v4893, %v5101
        %5103 = vmatmul.f32.gmra.mxu0 %v2998
        %v5104 = vpop.f32.mrf.mxu0
        %v5105 = vadd.f32 %v4896, %v5104
        %5106 = vmatmul.f32.gmra.mxu0 %v3006
        %v5107 = vpop.f32.mrf.mxu0
        %v5108 = vadd.f32 %v4899, %v5107
        %5109 = vmatmul.f32.gmra.mxu0 %v3014
        %v5110 = vpop.f32.mrf.mxu0
        %v5111 = vadd.f32 %v4902, %v5110
        %5112 = vmatmul.f32.gmra.mxu0 %v3022
        %v5113 = vpop.f32.mrf.mxu0
        %v5114 = vadd.f32 %v4905, %v5113
        %5115 = vmatmul.f32.gmra.mxu0 %v3030
        %v5116 = vpop.f32.mrf.mxu0
        %v5117 = vadd.f32 %v4908, %v5116
        %5118 = vmatmul.f32.gmra.mxu0 %v3038
        %v5119 = vpop.f32.mrf.mxu0
        %v5120 = vadd.f32 %v4911, %v5119
        %5121 = vmatmul.f32.gmra.mxu0 %v3046
        %v5122 = vpop.f32.mrf.mxu0
        %v5123 = vadd.f32 %v4914, %v5122
        %5124 = vmatmul.f32.gmra.mxu0 %v3054
        %v5125 = vpop.f32.mrf.mxu0
        %v5126 = vadd.f32 %v4917, %v5125
        %5127 = vmatmul.f32.gmra.mxu0 %v3062
        %v5128 = vpop.f32.mrf.mxu0
        %v5129 = vadd.f32 %v4920, %v5128
        %5130 = vmatmul.f32.gmra.mxu0 %v3070
        %v5131 = vpop.f32.mrf.mxu0
        %v5132 = vadd.f32 %v4923, %v5131
        %5133 = vmatmul.f32.gmra.mxu0 %v3078
        %v5134 = vpop.f32.mrf.mxu0
        %v5135 = vadd.f32 %v4926, %v5134
        %5136 = vmatmul.f32.gmra.mxu0 %v3086
        %v5137 = vpop.f32.mrf.mxu0
        %v5138 = vadd.f32 %v4929, %v5137
        %5139 = vmatmul.f32.gmra.mxu0 %v3094
        %v5140 = vpop.f32.mrf.mxu0
        %v5141 = vadd.f32 %v4932, %v5140
        %5142 = vmatmul.f32.gmra.mxu0 %v3102
        %v5143 = vpop.f32.mrf.mxu0
        %v5144 = vadd.f32 %v4935, %v5143
        %5145 = vmatmul.f32.gmra.mxu0 %v3110
        %v5146 = vpop.f32.mrf.mxu0
        %v5147 = vadd.f32 %v4938, %v5146
        %5148 = vmatmul.f32.gmra.mxu0 %v3118
        %v5149 = vpop.f32.mrf.mxu0
        %v5150 = vadd.f32 %v4941, %v5149
        %5151 = vmatmul.f32.gmra.mxu0 %v3126
        %v5152 = vpop.f32.mrf.mxu0
        %v5153 = vadd.f32 %v4944, %v5152
        %5154 = vmatmul.f32.gmra.mxu0 %v3134
        %v5155 = vpop.f32.mrf.mxu0
        %v5156 = vadd.f32 %v4947, %v5155
        %5157 = vmatmul.f32.gmra.mxu0 %v3142
        %v5158 = vpop.f32.mrf.mxu0
        %v5159 = vadd.f32 %v4950, %v5158
        %5160 = vmatmul.f32.gmra.mxu0 %v3150
        %v5161 = vpop.f32.mrf.mxu0
        %v5162 = vadd.f32 %v4953, %v5161
        %5163 = vmatmul.f32.gmra.mxu0 %v3158
        %v5164 = vpop.f32.mrf.mxu0
        %v5165 = vadd.f32 %v4956, %v5164
        %5166 = vmatmul.f32.gmra.mxu0 %v3166
        %v5167 = vpop.f32.mrf.mxu0
        %v5168 = vadd.f32 %v4959, %v5167
        %5169 = vmatmul.f32.gmra.mxu0 %v3174
        %v5170 = vpop.f32.mrf.mxu0
        %v5171 = vadd.f32 %v4962, %v5170
        %5172 = vmatmul.f32.gmra.mxu0 %v3182
        %v5173 = vpop.f32.mrf.mxu0
        %v5174 = vadd.f32 %v4965, %v5173
        %5175 = vmatmul.f32.gmra.mxu0 %v3190
        %v5176 = vpop.f32.mrf.mxu0
        %v5177 = vadd.f32 %v4968, %v5176
        %5178 = vmatmul.f32.gmra.mxu0 %v3198
        %v5179 = vpop.f32.mrf.mxu0
        %v5180 = vadd.f32 %v4971, %v5179
        %5181 = vmatmul.f32.gmra.mxu0 %v3206
        %v5182 = vpop.f32.mrf.mxu0
        %v5183 = vadd.f32 %v4974, %v5182
        %5184 = vmatmul.f32.gmra.mxu0 %v3214
        %v5185 = vpop.f32.mrf.mxu0
        %v5186 = vadd.f32 %v4977, %v5185
        %5187 = vmatmul.f32.gmra.mxu0 %v3222
        %v5188 = vpop.f32.mrf.mxu0
        %v5189 = vadd.f32 %v4980, %v5188
        %5190 = vmatmul.f32.gmra.mxu0 %v3230
        %v5191 = vpop.f32.mrf.mxu0
        %v5192 = vadd.f32 %v4983, %v5191
        %5193 = vmatmul.f32.gmra.mxu0 %v3238
        %v5194 = vpop.f32.mrf.mxu0
        %v5195 = vadd.f32 %v4986, %v5194
        %5196 = vmatmul.f32.gmra.mxu0 %v3246
        %v5197 = vpop.f32.mrf.mxu0
        %v5198 = vadd.f32 %v4989, %v5197
        %5199 = vmatmul.f32.gmra.mxu0 %v3254
        %v5200 = vpop.f32.mrf.mxu0
        %v5201 = vadd.f32 %v4992, %v5200
        %5202 = vmatmul.f32.gmra.mxu0 %v3262
        %v5203 = vpop.f32.mrf.mxu0
        %v5204 = vadd.f32 %v4995, %v5203
        %5205 = vmatmul.f32.gmra.mxu0 %v3270
        %v5206 = vpop.f32.mrf.mxu0
        %v5207 = vadd.f32 %v4998, %v5206
        %5208 = vmatmul.f32.gmra.mxu0 %v3278
        %v5209 = vpop.f32.mrf.mxu0
        %v5210 = vadd.f32 %v5001, %v5209
        %5211 = vmatmul.f32.gmra.mxu0 %v3286
        %v5212 = vpop.f32.mrf.mxu0
        %v5213 = vadd.f32 %v5004, %v5212
        %5214 = vmatmul.f32.gmra.mxu0 %v3294
        %v5215 = vpop.f32.mrf.mxu0
        %v5216 = vadd.f32 %v5007, %v5215
        %5217 = vmatmul.f32.gmra.mxu0 %v3302
        %v5218 = vpop.f32.mrf.mxu0
        %v5219 = vadd.f32 %v5010, %v5218
        %5220 = vmatmul.f32.gmra.mxu0 %v3310
        %v5221 = vpop.f32.mrf.mxu0
        %v5222 = vadd.f32 %v5013, %v5221
        %5223 = vmatmul.f32.gmra.mxu0 %v3318
        %v5224 = vpop.f32.mrf.mxu0
        %v5225 = vadd.f32 %v5016, %v5224
        %5226 = vmatmul.f32.gmra.mxu0 %v3326
        %v5227 = vpop.f32.mrf.mxu0
        %v5228 = vadd.f32 %v5019, %v5227
        %5229 = vmatmul.f32.gmra.mxu0 %v3334
        %v5230 = vpop.f32.mrf.mxu0
        %v5231 = vadd.f32 %v5022, %v5230
        %5232 = vmatmul.f32.gmra.mxu0 %v3342
        %v5233 = vpop.f32.mrf.mxu0
        %v5234 = vadd.f32 %v5025, %v5233
        %5235 = vmatmul.f32.gmra.mxu0 %v3350
        %v5236 = vpop.f32.mrf.mxu0
        %v5237 = vadd.f32 %v5028, %v5236
        %5238 = vmatmul.f32.gmra.mxu0 %v3358
        %v5239 = vpop.f32.mrf.mxu0
        %v5240 = vadd.f32 %v5031, %v5239
        %5241 = vmatmul.f32.gmra.mxu0 %v3366
        %v5242 = vpop.f32.mrf.mxu0
        %v5243 = vadd.f32 %v5034, %v5242
        %5244 = vmatmul.f32.gmra.mxu0 %v3374
        %v5245 = vpop.f32.mrf.mxu0
        %v5246 = vadd.f32 %v5037, %v5245
        %5247 = vmatmul.f32.gmra.mxu0 %v3382
        %v5248 = vpop.f32.mrf.mxu0
        %v5249 = vadd.f32 %v5040, %v5248
        %5250 = vmatmul.f32.gmra.mxu0 %v3390
        %v5251 = vpop.f32.mrf.mxu0
        %v5252 = vadd.f32 %v5043, %v5251
        %5253 = vmatmul.f32.gmra.mxu0 %v3398
        %v5254 = vpop.f32.mrf.mxu0
        %v5255 = vadd.f32 %v5046, %v5254
        %5256 = vmatmul.f32.gmra.mxu0 %v3406
        %v5257 = vpop.f32.mrf.mxu0
        %v5258 = vadd.f32 %v5049, %v5257
        %5259 = vmatmul.f32.gmra.mxu0 %v3414
        %v5260 = vpop.f32.mrf.mxu0
        %v5261 = vadd.f32 %v5052, %v5260
        %5262 = vdwg.mxu0
        %5263 = vmatpush.msra.mxu0 %v2903
        %5264 = vmatpush.msra.mxu0 %v2902
        %5265 = vmatpush.msra.mxu0 %v2901
        %5266 = vmatpush.msra.mxu0 %v2900
        %5267 = vmatpush.msra.mxu0 %v2899
        %5268 = vmatpush.msra.mxu0 %v2898
        %5269 = vmatpush.msra.mxu0 %v2897
        %5270 = vmatpush.msra.mxu0 %v2896
        %5271 = vmatpush.msra.mxu0 %v2895
        %5272 = vmatpush.msra.mxu0 %v2894
        %5273 = vmatpush.msra.mxu0 %v2893
        %5274 = vmatpush.msra.mxu0 %v2892
        %5275 = vmatpush.msra.mxu0 %v2891
        %5276 = vmatpush.msra.mxu0 %v2890
        %5277 = vmatpush.msra.mxu0 %v2889
        %5278 = vmatpush.msra.mxu0 %v2888
        %5279 = vmatmul.f32.gmra.mxu0 %v2911
        %v5280 = vpop.f32.mrf.mxu0
        %v5281 = vadd.f32 %v5072, %v5280
        %5282 = vmatmul.f32.gmra.mxu0 %v2919
        %v5283 = vpop.f32.mrf.mxu0
        %v5284 = vadd.f32 %v5075, %v5283
        %5285 = vmatmul.f32.gmra.mxu0 %v2927
        %v5286 = vpop.f32.mrf.mxu0
        %v5287 = vadd.f32 %v5078, %v5286
        %5288 = vmatmul.f32.gmra.mxu0 %v2935
        %v5289 = vpop.f32.mrf.mxu0
        %v5290 = vadd.f32 %v5081, %v5289
        %5291 = vmatmul.f32.gmra.mxu0 %v2943
        %v5292 = vpop.f32.mrf.mxu0
        %v5293 = vadd.f32 %v5084, %v5292
        %5294 = vmatmul.f32.gmra.mxu0 %v2951
        %v5295 = vpop.f32.mrf.mxu0
        %v5296 = vadd.f32 %v5087, %v5295
        %5297 = vmatmul.f32.gmra.mxu0 %v2959
        %v5298 = vpop.f32.mrf.mxu0
        %v5299 = vadd.f32 %v5090, %v5298
        %5300 = vmatmul.f32.gmra.mxu0 %v2967
        %v5301 = vpop.f32.mrf.mxu0
        %v5302 = vadd.f32 %v5093, %v5301
        %5303 = vmatmul.f32.gmra.mxu0 %v2975
        %v5304 = vpop.f32.mrf.mxu0
        %v5305 = vadd.f32 %v5096, %v5304
        %5306 = vmatmul.f32.gmra.mxu0 %v2983
        %v5307 = vpop.f32.mrf.mxu0
        %v5308 = vadd.f32 %v5099, %v5307
        %5309 = vmatmul.f32.gmra.mxu0 %v2991
        %v5310 = vpop.f32.mrf.mxu0
        %v5311 = vadd.f32 %v5102, %v5310
        %5312 = vmatmul.f32.gmra.mxu0 %v2999
        %v5313 = vpop.f32.mrf.mxu0
        %v5314 = vadd.f32 %v5105, %v5313
        %5315 = vmatmul.f32.gmra.mxu0 %v3007
        %v5316 = vpop.f32.mrf.mxu0
        %v5317 = vadd.f32 %v5108, %v5316
        %5318 = vmatmul.f32.gmra.mxu0 %v3015
        %v5319 = vpop.f32.mrf.mxu0
        %v5320 = vadd.f32 %v5111, %v5319
        %5321 = vmatmul.f32.gmra.mxu0 %v3023
        %v5322 = vpop.f32.mrf.mxu0
        %v5323 = vadd.f32 %v5114, %v5322
        %5324 = vmatmul.f32.gmra.mxu0 %v3031
        %v5325 = vpop.f32.mrf.mxu0
        %v5326 = vadd.f32 %v5117, %v5325
        %5327 = vmatmul.f32.gmra.mxu0 %v3039
        %v5328 = vpop.f32.mrf.mxu0
        %v5329 = vadd.f32 %v5120, %v5328
        %5330 = vmatmul.f32.gmra.mxu0 %v3047
        %v5331 = vpop.f32.mrf.mxu0
        %v5332 = vadd.f32 %v5123, %v5331
        %5333 = vmatmul.f32.gmra.mxu0 %v3055
        %v5334 = vpop.f32.mrf.mxu0
        %v5335 = vadd.f32 %v5126, %v5334
        %5336 = vmatmul.f32.gmra.mxu0 %v3063
        %v5337 = vpop.f32.mrf.mxu0
        %v5338 = vadd.f32 %v5129, %v5337
        %5339 = vmatmul.f32.gmra.mxu0 %v3071
        %v5340 = vpop.f32.mrf.mxu0
        %v5341 = vadd.f32 %v5132, %v5340
        %5342 = vmatmul.f32.gmra.mxu0 %v3079
        %v5343 = vpop.f32.mrf.mxu0
        %v5344 = vadd.f32 %v5135, %v5343
        %5345 = vmatmul.f32.gmra.mxu0 %v3087
        %v5346 = vpop.f32.mrf.mxu0
        %v5347 = vadd.f32 %v5138, %v5346
        %5348 = vmatmul.f32.gmra.mxu0 %v3095
        %v5349 = vpop.f32.mrf.mxu0
        %v5350 = vadd.f32 %v5141, %v5349
        %5351 = vmatmul.f32.gmra.mxu0 %v3103
        %v5352 = vpop.f32.mrf.mxu0
        %v5353 = vadd.f32 %v5144, %v5352
        %5354 = vmatmul.f32.gmra.mxu0 %v3111
        %v5355 = vpop.f32.mrf.mxu0
        %v5356 = vadd.f32 %v5147, %v5355
        %5357 = vmatmul.f32.gmra.mxu0 %v3119
        %v5358 = vpop.f32.mrf.mxu0
        %v5359 = vadd.f32 %v5150, %v5358
        %5360 = vmatmul.f32.gmra.mxu0 %v3127
        %v5361 = vpop.f32.mrf.mxu0
        %v5362 = vadd.f32 %v5153, %v5361
        %5363 = vmatmul.f32.gmra.mxu0 %v3135
        %v5364 = vpop.f32.mrf.mxu0
        %v5365 = vadd.f32 %v5156, %v5364
        %5366 = vmatmul.f32.gmra.mxu0 %v3143
        %v5367 = vpop.f32.mrf.mxu0
        %v5368 = vadd.f32 %v5159, %v5367
        %5369 = vmatmul.f32.gmra.mxu0 %v3151
        %v5370 = vpop.f32.mrf.mxu0
        %v5371 = vadd.f32 %v5162, %v5370
        %5372 = vmatmul.f32.gmra.mxu0 %v3159
        %v5373 = vpop.f32.mrf.mxu0
        %v5374 = vadd.f32 %v5165, %v5373
        %5375 = vmatmul.f32.gmra.mxu0 %v3167
        %v5376 = vpop.f32.mrf.mxu0
        %v5377 = vadd.f32 %v5168, %v5376
        %5378 = vmatmul.f32.gmra.mxu0 %v3175
        %v5379 = vpop.f32.mrf.mxu0
        %v5380 = vadd.f32 %v5171, %v5379
        %5381 = vmatmul.f32.gmra.mxu0 %v3183
        %v5382 = vpop.f32.mrf.mxu0
        %v5383 = vadd.f32 %v5174, %v5382
        %5384 = vmatmul.f32.gmra.mxu0 %v3191
        %v5385 = vpop.f32.mrf.mxu0
        %v5386 = vadd.f32 %v5177, %v5385
        %5387 = vmatmul.f32.gmra.mxu0 %v3199
        %v5388 = vpop.f32.mrf.mxu0
        %v5389 = vadd.f32 %v5180, %v5388
        %5390 = vmatmul.f32.gmra.mxu0 %v3207
        %v5391 = vpop.f32.mrf.mxu0
        %v5392 = vadd.f32 %v5183, %v5391
        %5393 = vmatmul.f32.gmra.mxu0 %v3215
        %v5394 = vpop.f32.mrf.mxu0
        %v5395 = vadd.f32 %v5186, %v5394
        %5396 = vmatmul.f32.gmra.mxu0 %v3223
        %v5397 = vpop.f32.mrf.mxu0
        %v5398 = vadd.f32 %v5189, %v5397
        %5399 = vmatmul.f32.gmra.mxu0 %v3231
        %v5400 = vpop.f32.mrf.mxu0
        %v5401 = vadd.f32 %v5192, %v5400
        %5402 = vmatmul.f32.gmra.mxu0 %v3239
        %v5403 = vpop.f32.mrf.mxu0
        %v5404 = vadd.f32 %v5195, %v5403
        %5405 = vmatmul.f32.gmra.mxu0 %v3247
        %v5406 = vpop.f32.mrf.mxu0
        %v5407 = vadd.f32 %v5198, %v5406
        %5408 = vmatmul.f32.gmra.mxu0 %v3255
        %v5409 = vpop.f32.mrf.mxu0
        %v5410 = vadd.f32 %v5201, %v5409
        %5411 = vmatmul.f32.gmra.mxu0 %v3263
        %v5412 = vpop.f32.mrf.mxu0
        %v5413 = vadd.f32 %v5204, %v5412
        %5414 = vmatmul.f32.gmra.mxu0 %v3271
        %v5415 = vpop.f32.mrf.mxu0
        %v5416 = vadd.f32 %v5207, %v5415
        %5417 = vmatmul.f32.gmra.mxu0 %v3279
        %v5418 = vpop.f32.mrf.mxu0
        %v5419 = vadd.f32 %v5210, %v5418
        %5420 = vmatmul.f32.gmra.mxu0 %v3287
        %v5421 = vpop.f32.mrf.mxu0
        %v5422 = vadd.f32 %v5213, %v5421
        %5423 = vmatmul.f32.gmra.mxu0 %v3295
        %v5424 = vpop.f32.mrf.mxu0
        %v5425 = vadd.f32 %v5216, %v5424
        %5426 = vmatmul.f32.gmra.mxu0 %v3303
        %v5427 = vpop.f32.mrf.mxu0
        %v5428 = vadd.f32 %v5219, %v5427
        %5429 = vmatmul.f32.gmra.mxu0 %v3311
        %v5430 = vpop.f32.mrf.mxu0
        %v5431 = vadd.f32 %v5222, %v5430
        %5432 = vmatmul.f32.gmra.mxu0 %v3319
        %v5433 = vpop.f32.mrf.mxu0
        %v5434 = vadd.f32 %v5225, %v5433
        %5435 = vmatmul.f32.gmra.mxu0 %v3327
        %v5436 = vpop.f32.mrf.mxu0
        %v5437 = vadd.f32 %v5228, %v5436
        %5438 = vmatmul.f32.gmra.mxu0 %v3335
        %v5439 = vpop.f32.mrf.mxu0
        %v5440 = vadd.f32 %v5231, %v5439
        %5441 = vmatmul.f32.gmra.mxu0 %v3343
        %v5442 = vpop.f32.mrf.mxu0
        %v5443 = vadd.f32 %v5234, %v5442
        %5444 = vmatmul.f32.gmra.mxu0 %v3351
        %v5445 = vpop.f32.mrf.mxu0
        %v5446 = vadd.f32 %v5237, %v5445
        %5447 = vmatmul.f32.gmra.mxu0 %v3359
        %v5448 = vpop.f32.mrf.mxu0
        %v5449 = vadd.f32 %v5240, %v5448
        %5450 = vmatmul.f32.gmra.mxu0 %v3367
        %v5451 = vpop.f32.mrf.mxu0
        %v5452 = vadd.f32 %v5243, %v5451
        %5453 = vmatmul.f32.gmra.mxu0 %v3375
        %v5454 = vpop.f32.mrf.mxu0
        %v5455 = vadd.f32 %v5246, %v5454
        %5456 = vmatmul.f32.gmra.mxu0 %v3383
        %v5457 = vpop.f32.mrf.mxu0
        %v5458 = vadd.f32 %v5249, %v5457
        %5459 = vmatmul.f32.gmra.mxu0 %v3391
        %v5460 = vpop.f32.mrf.mxu0
        %v5461 = vadd.f32 %v5252, %v5460
        %5462 = vmatmul.f32.gmra.mxu0 %v3399
        %v5463 = vpop.f32.mrf.mxu0
        %v5464 = vadd.f32 %v5255, %v5463
        %5465 = vmatmul.f32.gmra.mxu0 %v3407
        %v5466 = vpop.f32.mrf.mxu0
        %v5467 = vadd.f32 %v5258, %v5466
        %5468 = vmatmul.f32.gmra.mxu0 %v3415
        %v5469 = vpop.f32.mrf.mxu0
        %v5470 = vadd.f32 %v5261, %v5469
        %5471 = vdwg.mxu0
        %v5472 = vmax.f32 %v5281, 0.0
        %v5473 = vmax.f32 %v5284, 0.0
        %v5474 = vmax.f32 %v5287, 0.0
        %v5475 = vmax.f32 %v5290, 0.0
        %v5476 = vmax.f32 %v5293, 0.0
        %v5477 = vmax.f32 %v5296, 0.0
        %v5478 = vmax.f32 %v5299, 0.0
        %v5479 = vmax.f32 %v5302, 0.0
        %v5480 = vmax.f32 %v5305, 0.0
        %v5481 = vmax.f32 %v5308, 0.0
        %v5482 = vmax.f32 %v5311, 0.0
        %v5483 = vmax.f32 %v5314, 0.0
        %v5484 = vmax.f32 %v5317, 0.0
        %v5485 = vmax.f32 %v5320, 0.0
        %v5486 = vmax.f32 %v5323, 0.0
        %v5487 = vmax.f32 %v5326, 0.0
        %v5488 = vmax.f32 %v5329, 0.0
        %v5489 = vmax.f32 %v5332, 0.0
        %v5490 = vmax.f32 %v5335, 0.0
        %v5491 = vmax.f32 %v5338, 0.0
        %v5492 = vmax.f32 %v5341, 0.0
        %v5493 = vmax.f32 %v5344, 0.0
        %v5494 = vmax.f32 %v5347, 0.0
        %v5495 = vmax.f32 %v5350, 0.0
        %v5496 = vmax.f32 %v5353, 0.0
        %v5497 = vmax.f32 %v5356, 0.0
        %v5498 = vmax.f32 %v5359, 0.0
        %v5499 = vmax.f32 %v5362, 0.0
        %v5500 = vmax.f32 %v5365, 0.0
        %v5501 = vmax.f32 %v5368, 0.0
        %v5502 = vmax.f32 %v5371, 0.0
        %v5503 = vmax.f32 %v5374, 0.0
        %v5504 = vmax.f32 %v5377, 0.0
        %v5505 = vmax.f32 %v5380, 0.0
        %v5506 = vmax.f32 %v5383, 0.0
        %v5507 = vmax.f32 %v5386, 0.0
        %v5508 = vmax.f32 %v5389, 0.0
        %v5509 = vmax.f32 %v5392, 0.0
        %v5510 = vmax.f32 %v5395, 0.0
        %v5511 = vmax.f32 %v5398, 0.0
        %v5512 = vmax.f32 %v5401, 0.0
        %v5513 = vmax.f32 %v5404, 0.0
        %v5514 = vmax.f32 %v5407, 0.0
        %v5515 = vmax.f32 %v5410, 0.0
        %v5516 = vmax.f32 %v5413, 0.0
        %v5517 = vmax.f32 %v5416, 0.0
        %v5518 = vmax.f32 %v5419, 0.0
        %v5519 = vmax.f32 %v5422, 0.0
        %v5520 = vmax.f32 %v5425, 0.0
        %v5521 = vmax.f32 %v5428, 0.0
        %v5522 = vmax.f32 %v5431, 0.0
        %v5523 = vmax.f32 %v5434, 0.0
        %v5524 = vmax.f32 %v5437, 0.0
        %v5525 = vmax.f32 %v5440, 0.0
        %v5526 = vmax.f32 %v5443, 0.0
        %v5527 = vmax.f32 %v5446, 0.0
        %v5528 = vmax.f32 %v5449, 0.0
        %v5529 = vmax.f32 %v5452, 0.0
        %v5530 = vmax.f32 %v5455, 0.0
        %v5531 = vmax.f32 %v5458, 0.0
        %v5532 = vmax.f32 %v5461, 0.0
        %v5533 = vmax.f32 %v5464, 0.0
        %v5534 = vmax.f32 %v5467, 0.0
        %v5535 = vmax.f32 %v5470, 0.0
        %v5536 = vld [vmem:[#allocation13] sm:$0xff]
        %v5537 = vld [vmem:[#allocation13 + $0x8] sm:$0xff]
        %v5538 = vld [vmem:[#allocation13 + $0x10] sm:$0xff]
        %v5539 = vld [vmem:[#allocation13 + $0x18] sm:$0xff]
        %v5540 = vld [vmem:[#allocation13 + $0x20] sm:$0xff]
        %v5541 = vld [vmem:[#allocation13 + $0x28] sm:$0xff]
        %v5542 = vld [vmem:[#allocation13 + $0x30] sm:$0xff]
        %v5543 = vld [vmem:[#allocation13 + $0x38] sm:$0xff]
        %v5544 = vld [vmem:[#allocation13 + $0x40] sm:$0xff]
        %v5545 = vld [vmem:[#allocation13 + $0x48] sm:$0xff]
        %v5546 = vld [vmem:[#allocation13 + $0x50] sm:$0xff]
        %v5547 = vld [vmem:[#allocation13 + $0x58] sm:$0xff]
        %v5548 = vld [vmem:[#allocation15] sm:$0xff]
        %v5549 = vld [vmem:[#allocation15 + $0x8] sm:$0xff]
        %v5550 = vld [vmem:[#allocation15 + $0x10] sm:$0xff]
        %5552 = vset.pattern.permute.xlu0 0
        %5553 = vperm.xlu0 %5552, %v5548
        %v5554 = vpop.permute.xlu0 %5553
        %5557 = vset.pattern.permute.xlu0 0
        %5558 = vperm.xlu0 %5557, %v5549
        %v5559 = vpop.permute.xlu0 %5558
        %5562 = vset.pattern.permute.xlu0 0
        %5563 = vperm.xlu0 %5562, %v5550
        %v5564 = vpop.permute.xlu0 %5563
        %5566 = vmatpush.msra.mxu0 %v5487
        %5567 = vmatpush.msra.mxu0 %v5486
        %5568 = vmatpush.msra.mxu0 %v5485
        %5569 = vmatpush.msra.mxu0 %v5484
        %5570 = vmatpush.msra.mxu0 %v5483
        %5571 = vmatpush.msra.mxu0 %v5482
        %5572 = vmatpush.msra.mxu0 %v5481
        %5573 = vmatpush.msra.mxu0 %v5480
        %5574 = vmatpush.msra.mxu0 %v5479
        %5575 = vmatpush.msra.mxu0 %v5478
        %5576 = vmatpush.msra.mxu0 %v5477
        %5577 = vmatpush.msra.mxu0 %v5476
        %5578 = vmatpush.msra.mxu0 %v5475
        %5579 = vmatpush.msra.mxu0 %v5474
        %5580 = vmatpush.msra.mxu0 %v5473
        %5581 = vmatpush.msra.mxu0 %v5472
        %5582 = vmatmul.f32.gmra.mxu0 %v5536
        %v5583 = vpop.f32.mrf.mxu0
        %v5584 = vadd.f32 %v5554, %v5583
        %5585 = vmatmul.f32.gmra.mxu0 %v5540
        %v5586 = vpop.f32.mrf.mxu0
        %v5587 = vadd.f32 %v5559, %v5586
        %5588 = vmatmul.f32.gmra.mxu0 %v5544
        %v5589 = vpop.f32.mrf.mxu0
        %v5590 = vadd.f32 %v5564, %v5589
        %5591 = vdwg.mxu0
        %5592 = vmatpush.msra.mxu0 %v5503
        %5593 = vmatpush.msra.mxu0 %v5502
        %5594 = vmatpush.msra.mxu0 %v5501
        %5595 = vmatpush.msra.mxu0 %v5500
        %5596 = vmatpush.msra.mxu0 %v5499
        %5597 = vmatpush.msra.mxu0 %v5498
        %5598 = vmatpush.msra.mxu0 %v5497
        %5599 = vmatpush.msra.mxu0 %v5496
        %5600 = vmatpush.msra.mxu0 %v5495
        %5601 = vmatpush.msra.mxu0 %v5494
        %5602 = vmatpush.msra.mxu0 %v5493
        %5603 = vmatpush.msra.mxu0 %v5492
        %5604 = vmatpush.msra.mxu0 %v5491
        %5605 = vmatpush.msra.mxu0 %v5490
        %5606 = vmatpush.msra.mxu0 %v5489
        %5607 = vmatpush.msra.mxu0 %v5488
        %5608 = vmatmul.f32.gmra.mxu0 %v5537
        %v5609 = vpop.f32.mrf.mxu0
        %v5610 = vadd.f32 %v5584, %v5609
        %5611 = vmatmul.f32.gmra.mxu0 %v5541
        %v5612 = vpop.f32.mrf.mxu0
        %v5613 = vadd.f32 %v5587, %v5612
        %5614 = vmatmul.f32.gmra.mxu0 %v5545
        %v5615 = vpop.f32.mrf.mxu0
        %v5616 = vadd.f32 %v5590, %v5615
        %5617 = vdwg.mxu0
        %5618 = vmatpush.msra.mxu0 %v5519
        %5619 = vmatpush.msra.mxu0 %v5518
        %5620 = vmatpush.msra.mxu0 %v5517
        %5621 = vmatpush.msra.mxu0 %v5516
        %5622 = vmatpush.msra.mxu0 %v5515
        %5623 = vmatpush.msra.mxu0 %v5514
        %5624 = vmatpush.msra.mxu0 %v5513
        %5625 = vmatpush.msra.mxu0 %v5512
        %5626 = vmatpush.msra.mxu0 %v5511
        %5627 = vmatpush.msra.mxu0 %v5510
        %5628 = vmatpush.msra.mxu0 %v5509
        %5629 = vmatpush.msra.mxu0 %v5508
        %5630 = vmatpush.msra.mxu0 %v5507
        %5631 = vmatpush.msra.mxu0 %v5506
        %5632 = vmatpush.msra.mxu0 %v5505
        %5633 = vmatpush.msra.mxu0 %v5504
        %5634 = vmatmul.f32.gmra.mxu0 %v5538
        %v5635 = vpop.f32.mrf.mxu0
        %v5636 = vadd.f32 %v5610, %v5635
        %5637 = vmatmul.f32.gmra.mxu0 %v5542
        %v5638 = vpop.f32.mrf.mxu0
        %v5639 = vadd.f32 %v5613, %v5638
        %5640 = vmatmul.f32.gmra.mxu0 %v5546
        %v5641 = vpop.f32.mrf.mxu0
        %v5642 = vadd.f32 %v5616, %v5641
        %5643 = vdwg.mxu0
        %5644 = vmatpush.msra.mxu0 %v5535
        %5645 = vmatpush.msra.mxu0 %v5534
        %5646 = vmatpush.msra.mxu0 %v5533
        %5647 = vmatpush.msra.mxu0 %v5532
        %5648 = vmatpush.msra.mxu0 %v5531
        %5649 = vmatpush.msra.mxu0 %v5530
        %5650 = vmatpush.msra.mxu0 %v5529
        %5651 = vmatpush.msra.mxu0 %v5528
        %5652 = vmatpush.msra.mxu0 %v5527
        %5653 = vmatpush.msra.mxu0 %v5526
        %5654 = vmatpush.msra.mxu0 %v5525
        %5655 = vmatpush.msra.mxu0 %v5524
        %5656 = vmatpush.msra.mxu0 %v5523
        %5657 = vmatpush.msra.mxu0 %v5522
        %5658 = vmatpush.msra.mxu0 %v5521
        %5659 = vmatpush.msra.mxu0 %v5520
        %5660 = vmatmul.f32.gmra.mxu0 %v5539
        %v5661 = vpop.f32.mrf.mxu0
        %v5662 = vadd.f32 %v5636, %v5661
        %5663 = vmatmul.f32.gmra.mxu0 %v5543
        %v5664 = vpop.f32.mrf.mxu0
        %v5665 = vadd.f32 %v5639, %v5664
        %5666 = vmatmul.f32.gmra.mxu0 %v5547
        %v5667 = vpop.f32.mrf.mxu0
        %v5668 = vadd.f32 %v5642, %v5667
        %5669 = vdwg.mxu0
        %v5670 = vrot.slane %v5662, 4
        %v5671 = vmax.f32 %v5662, %v5670
        %v5672 = vrot.slane %v5671, 2
        %v5673 = vmax.f32 %v5671, %v5672
        %v5674 = vrot.slane %v5673, 1
        %v5675 = vmax.f32 %v5673, %v5674
        %v5676 = vrot.slane %v5665, 4
        %v5677 = vmax.f32 %v5665, %v5676
        %v5678 = vrot.slane %v5677, 2
        %v5679 = vmax.f32 %v5677, %v5678
        %v5680 = vrot.slane %v5679, 1
        %v5681 = vmax.f32 %v5679, %v5680
        %v5682 = vrot.slane %v5668, 4
        %v5683 = vmax.f32 %v5668, %v5682
        %v5684 = vrot.slane %v5683, 2
        %v5685 = vmax.f32 %v5683, %v5684
        %v5686 = vrot.slane %v5685, 1
        %v5687 = vmax.f32 %v5685, %v5686
        %v5688 = vsub.f32 %v5662, %v5675
        %v5689 = vsub.f32 %v5665, %v5681
        %v5690 = vsub.f32 %v5668, %v5687
        %v5691 = vmul.f32 %v5688, 1.442695
        %v5692 = vpow.pop %v5691
        %v5693 = vmul.f32 %v5689, 1.442695
        %v5694 = vpow.pop %v5693
        %v5695 = vmul.f32 %v5690, 1.442695
        %v5696 = vpow.pop %v5695
        %v5697 = vrot.slane %v5692, 4
        %v5698 = vadd.f32 %v5692, %v5697
        %v5699 = vrot.slane %v5698, 2
        %v5700 = vadd.f32 %v5698, %v5699
        %v5701 = vrot.slane %v5700, 1
        %v5702 = vadd.f32 %v5700, %v5701
        %v5703 = vrot.slane %v5694, 4
        %v5704 = vadd.f32 %v5694, %v5703
        %v5705 = vrot.slane %v5704, 2
        %v5706 = vadd.f32 %v5704, %v5705
        %v5707 = vrot.slane %v5706, 1
        %v5708 = vadd.f32 %v5706, %v5707
        %v5709 = vrot.slane %v5696, 4
        %v5710 = vadd.f32 %v5696, %v5709
        %v5711 = vrot.slane %v5710, 2
        %v5712 = vadd.f32 %v5710, %v5711
        %v5713 = vrot.slane %v5712, 1
        %v5714 = vadd.f32 %v5712, %v5713
        %v5715 = vrcp.pop %v5702
        %v5716 = vmul.f32 %v5702, %v5715
        %v5717 = vsub.f32 1.0, %v5716
        %v5718 = vmul.f32 %v5715, %v5717
        %v5719 = vadd.f32 %v5715, %v5718
        %vm5720 = vweird.f32 %v5702
        %vm5721 = vweird.f32 %v5715
        %vm5722 = vmor %vm5720, %vm5721
        %v5723 = vsel %vm5722, %v5715, %v5719
        %v5724 = vand.u32 2147483647, %v5702
        %vm5725 = vcmp.eq.f32.partialorder %v5724, 8.507059e+37
        %v5726 = vand.u32 %v5702, 2147483648
        %v5727 = vor.u32 1.1754944e-38, %v5726
        %v5728 = vsel %vm5725, %v5727, %v5723
        %v5729 = vrcp.pop %v5708
        %v5730 = vmul.f32 %v5708, %v5729
        %v5731 = vsub.f32 1.0, %v5730
        %v5732 = vmul.f32 %v5729, %v5731
        %v5733 = vadd.f32 %v5729, %v5732
        %vm5734 = vweird.f32 %v5708
        %vm5735 = vweird.f32 %v5729
        %vm5736 = vmor %vm5734, %vm5735
        %v5737 = vsel %vm5736, %v5729, %v5733
        %v5738 = vand.u32 2147483647, %v5708
        %vm5739 = vcmp.eq.f32.partialorder %v5738, 8.507059e+37
        %v5740 = vand.u32 %v5708, 2147483648
        %v5741 = vor.u32 1.1754944e-38, %v5740
        %v5742 = vsel %vm5739, %v5741, %v5737
        %v5743 = vrcp.pop %v5714
        %v5744 = vmul.f32 %v5714, %v5743
        %v5745 = vsub.f32 1.0, %v5744
        %v5746 = vmul.f32 %v5743, %v5745
        %v5747 = vadd.f32 %v5743, %v5746
        %vm5748 = vweird.f32 %v5714
        %vm5749 = vweird.f32 %v5743
        %vm5750 = vmor %vm5748, %vm5749
        %v5751 = vsel %vm5750, %v5743, %v5747
        %v5752 = vand.u32 2147483647, %v5714
        %vm5753 = vcmp.eq.f32.partialorder %v5752, 8.507059e+37
        %v5754 = vand.u32 %v5714, 2147483648
        %v5755 = vor.u32 1.1754944e-38, %v5754
        %v5756 = vsel %vm5753, %v5755, %v5751
        %v5757 = vmul.f32 %v5692, %v5728
        %v5758 = vmul.f32 %v5694, %v5742
        %v5759 = vmul.f32 %v5696, %v5756
        %5760 = vst [vmem:[%s479] sm:$0xff] %v5757
        %5761 = vst [vmem:[%s479 + $0x8] sm:$0xff] %v5758
        %5762 = vst [vmem:[%s479 + $0x10] sm:$0xff] %v5759
        %s5763 = sand.u32 %s229, 1
        %s5764 = sand.u32 %s229, 1
        %s5765 = smul.addr %s5764, 24
        %s5766 = scalar_lea.vmem [#allocation16], %s5765
        // Predicated region
        $region93: #{fwd.1} parent=55 // pred_check
          %p5767 = pneg %p239
        $region94: #{fwd.1} parent=55 // pred_check_branch
          %5769 = sbr.rel (%p5767) target = $region96
        $region95: #{fwd.1} parent=55 // pred_region
          %s5770 = smul.addr %s27, 8
          %s5771 = scalar_lea.vmem %s9, %s5770
          // Predicated region
          $region97: #{fwd.1} parent=95 // pred_check
            _
          $region98: #{fwd.1} parent=95 // pred_check_branch
            %5773 = sbr.rel (0) target = $region100
          $region99: #{fwd.1} parent=95 // pred_region
            // Predicated region
            $region101: #{fwd.1} parent=99 // pred_check
              _
            $region102: #{fwd.1} parent=99 // pred_check_branch
              %5775 = sbr.rel (0) target = $region104
            $region103: #{fwd.1} parent=99 // pred_region
              // Predicated region
              $region116: #{fwd.1} parent=103 // pred_check
                _
              $region117: #{fwd.1} parent=103 // pred_check_branch
                %5795 = sbr.rel (0) target = $region119
              $region118: #{fwd.1} parent=103 // pred_region
                loop: start=0, step=1, limit=1
                $region120: #{fwd.1} parent=118 // loop_pre_header
                  _
                $region121: #{fwd.1} parent=118 // loop_header
                  %s5797 = sphi 0, %s5801
                  %p5798 = scmp.ge.s32.totalorder %s5797, 1
                  %s5802 = sphi %s5766, %s5766
                  %s5803 = sphi %s5771, %s5771
                $region122: #{fwd.1} parent=118 // loop_header_branch
                  %5800 = sbr.rel (%p5798) target = $region126
                $region123: #{fwd.1} parent=118 // loop_body
                  %v5804 = vld [vmem:[%s5802] sm:$0xff]
                  %5805 = vst [vmem:[%s5803] sm:$0xff] %v5804
                  %v5806 = vld [vmem:[%s5802 + $0x8] sm:$0xff]
                  %5807 = vst [vmem:[%s5803 + $0x10] sm:$0xff] %v5806
                  %v5808 = vld [vmem:[%s5802 + $0x10] sm:$0xff]
                  %5809 = vst [vmem:[%s5803 + $0x20] sm:$0xff] %v5808
                $region124: #{fwd.1} parent=118 // loop_footer
                  %s5801 = sadd.s32 1, %s5797
                $region125: #{fwd.1} parent=118 // loop_footer_branch
                  %5796 = sbr.rel target = $region121
                $region126: #{fwd.1} parent=118 // loop_exit
                  _
              $region119: #{fwd.1} parent=103 // pred_fallthru
                _
              // Predicated region
              $region127: #{fwd.1} parent=103 // pred_check
                _
              $region128: #{fwd.1} parent=103 // pred_check_branch
                %5811 = sbr.rel target = $region130
              $region129: #{fwd.1} parent=103 // pred_region
                _
              $region130: #{fwd.1} parent=103 // pred_fallthru
                _
            $region104: #{fwd.1} parent=99 // pred_fallthru
              _
            // Predicated region
            $region105: #{fwd.1} parent=99 // pred_check
              _
            $region106: #{fwd.1} parent=99 // pred_check_branch
              %5777 = sbr.rel target = $region108
            $region107: #{fwd.1} parent=99 // pred_region
              %s5779 = ssub.s32 256, 1
              loop: start=0, step=1, limit=1
              $region109: #{fwd.1} parent=107 // loop_pre_header
                _
              $region110: #{fwd.1} parent=107 // loop_header
                %s5781 = sphi 0, %s5785
                %p5782 = scmp.ge.s32.totalorder %s5781, 1
                %s5786 = sphi %s5766, %s5766
                %s5787 = sphi %s5771, %s5771
              $region111: #{fwd.1} parent=107 // loop_header_branch
                %5784 = sbr.rel (%p5782) target = $region115
              $region112: #{fwd.1} parent=107 // loop_body
                %v5788 = vld [vmem:[%s5786] sm:%s5779]
                %5789 = vst [vmem:[%s5787] sm:%s5779] %v5788
                %v5790 = vld [vmem:[%s5786 + $0x8] sm:%s5779]
                %5791 = vst [vmem:[%s5787 + $0x10] sm:%s5779] %v5790
                %v5792 = vld [vmem:[%s5786 + $0x10] sm:%s5779]
                %5793 = vst [vmem:[%s5787 + $0x20] sm:%s5779] %v5792
              $region113: #{fwd.1} parent=107 // loop_footer
                %s5785 = sadd.s32 1, %s5781
              $region114: #{fwd.1} parent=107 // loop_footer_branch
                %5780 = sbr.rel target = $region110
              $region115: #{fwd.1} parent=107 // loop_exit
                _
            $region108: #{fwd.1} parent=99 // pred_fallthru
              _
          $region100: #{fwd.1} parent=95 // pred_fallthru
            _
          %5812 = vnop
        $region96: #{fwd.1} parent=55 // pred_fallthru
          _
      $region56: #{fwd.1} parent=5 // pred_fallthru
        _
      %p5813 = scmp.le.s32.totalorder 2, %s22
      // Predicated region
      $region131: #{fwd.1} parent=5 // pred_check
        %p5814 = pneg %p5813
      $region132: #{fwd.1} parent=5 // pred_check_branch
        %5816 = sbr.rel (%p5814) target = $region134
      $region133: #{fwd.1} parent=5 // pred_region
        %s5817 = ssub.s32 %s22, 2
        // Predicated region
        $region135: #{fwd.1} parent=133 // pred_check
          %p5818 = pneg %p245
        $region136: #{fwd.1} parent=133 // pred_check_branch
          %5820 = sbr.rel (%p5818) target = $region138
        $region137: #{fwd.1} parent=133 // pred_region
          %s5821 = sand.u32 %s230, 1
          %s5822 = sand.u32 %s230, 1
          %s5823 = smul.addr %s5822, 24
          %s5824 = scalar_lea.vmem [#allocation16], %s5823
        $region138: #{fwd.1} parent=133 // pred_fallthru
          _
      $region134: #{fwd.1} parent=5 // pred_fallthru
        _
    $region6: #{fwd.1} parent=1 // loop_footer
      %s26 = sadd.s32 1, %s22
    $region7: #{fwd.1} parent=1 // loop_footer_branch
      %21 = sbr.rel target = $region3
    $region8: #{fwd.1} parent=1 // loop_exit
      _
    %5825 = vsyncpa [#allocation3], 1
    %s5826 = scalar_lea.sflag [#allocation3], 1
    %5827 = vsyncpa %s5826, 1
    %5828 = vsyncpa [#allocation5], 1
    %5829 = vsyncpa [#allocation8], 1
    %5830 = vsyncpa [#allocation11], 1
    %5831 = vsyncpa [#allocation14], 1

</llo_original>
